<compile_context>
chip_gen: v7x
topology: tpu7x:2x2x1
jax: 0.10.0
libtpu: 0.0.40
codegen_flags: <defaults>
</compile_context>

<pallas_src>
import functools

import numpy as np
import jax
import jax.numpy as jnp
from jax.experimental import pallas as pl
from jax.experimental.pallas import tpu as pltpu

EPS = 1e-5


# --------------------------------------------------------------------------
# Host-side helpers
# --------------------------------------------------------------------------
def bn_scale_bias(bn):
    scale = bn["gamma"] / jnp.sqrt(bn["var"] + EPS)
    bias = bn["beta"] - bn["mean"] * scale
    return scale.reshape(1, -1), bias.reshape(1, -1)


def _bn_fold_np(bn):
    gamma = np.asarray(bn["gamma"], np.float32)
    beta = np.asarray(bn["beta"], np.float32)
    mean = np.asarray(bn["mean"], np.float32)
    var = np.asarray(bn["var"], np.float32)
    scale = gamma / np.sqrt(var + EPS)
    bias = beta - mean * scale
    return scale, bias


def _sel_block_diag(win, wout, stride, pad, ksize, bt):
    """sel[k, b*wout+wo, b*win+i] = 1 iff i == stride*wo + k - pad, 0<=i<win.

    The block-diagonal structure implements per-sample zero padding with the
    batch stacked on the sublane axis (no cross-sample leakage).
    """
    sel1 = np.zeros((ksize, wout, win), np.float32)
    wo = np.arange(wout)
    for k in range(ksize):
        src = stride * wo + k - pad
        valid = (src >= 0) & (src < win)
        sel1[k, wo[valid], src[valid]] = 1.0
    sel = np.zeros((ksize, bt * wout, bt * win), np.float32)
    for b in range(bt):
        sel[:, b * wout:(b + 1) * wout, b * win:(b + 1) * win] = sel1
    return sel


def _pool_expand(w, bt):
    """Per-sample mean (bt, bt*w) and broadcast-back (bt*w, bt) matrices."""
    e = np.zeros((bt * w, bt), np.float32)
    for b in range(bt):
        e[b * w:(b + 1) * w, b] = 1.0
    p = (e / float(w)).T.copy()
    return p, e


# --------------------------------------------------------------------------
# The single fused Pallas kernel (whole network, whole batch tile per program)
# --------------------------------------------------------------------------
def _fused_drsn_kernel(*refs, plan):
    stem_plan, block_plans, fc_bias_row = plan
    out_ref = refs[-1]
    it = iter(refs[:-1])

    def nxt():
        return next(it)

    x_ref = nxt()
    bias_ref = nxt()                                   # packed (rows, 128) biases

    def bias(row, width):
        full = bias_ref[pl.ds(row, 1), :]              # (1, 128)
        return full[:, :width] if width < 128 else full

    def conv3(a, w_ref, sel_ref, b, relu):
        # a: (Rin, Cin); sel_ref: (3, Rout, Rin); w_ref: (3*Cin, Cout), BN folded.
        taps = [jnp.dot(sel_ref[k], a, preferred_element_type=jnp.float32)
                for k in range(3)]
        patches = jnp.concatenate(taps, axis=1)        # (Rout, 3*Cin)
        y = jnp.dot(patches, w_ref[...],
                    preferred_element_type=jnp.float32) + b
        if relu:
            y = jnp.maximum(y, 0.0)
        # taps[1] (src = stride*wo) is exactly the strided 1x1 downsample input.
        return y, taps[1]

    def soft_threshold(a, pool_ref, exp_ref, w1_ref, w2_ref, b1, b2):
        x_abs = jnp.abs(a)                                            # (R, C)
        avg = jnp.dot(pool_ref[...], x_abs,
                      preferred_element_type=jnp.float32)             # (BT, C)
        h = jnp.dot(avg, w1_ref[...],
                    preferred_element_type=jnp.float32) + b1          # BN1d folded
        h = jnp.maximum(h, 0.0)                                       # ReLU
        h = jnp.dot(h, w2_ref[...],
                    preferred_element_type=jnp.float32) + b2
        sig = pl.reciprocal(1.0 + jnp.exp(-h), approx=True)           # Sigmoid (EUP)
        thr = jnp.dot(exp_ref[...], avg * sig,
                      preferred_element_type=jnp.float32)             # (R, C)
        # == sign(a) * max(|a| - thr, 0), including sign(0) = 0.
        return a - jnp.clip(a, -thr, thr)

    a = x_ref[...]                                     # (BT*L, 1)

    # Stem: conv(1,3) stride 2 pad 3 + (folded) BN + ReLU
    stem_row, stem_c = stem_plan
    a, _ = conv3(a, nxt(), nxt(), bias(stem_row, stem_c), relu=True)

    pool_ref = None
    for (planes, b1r, b2r, s1r, s2r, has_down, dbr) in block_plans:
        c1_w, c1_sel = nxt(), nxt()
        c2_w, c2_sel = nxt(), nxt()
        st_w1, st_w2 = nxt(), nxt()
        pool_ref, exp_ref = nxt(), nxt()

        out, mid_tap = conv3(a, c1_w, c1_sel, bias(b1r, planes), relu=True)
        out, _ = conv3(out, c2_w, c2_sel, bias(b2r, planes), relu=False)
        out = soft_threshold(out, pool_ref, exp_ref, st_w1, st_w2,
                             bias(s1r, planes), bias(s2r, planes))
        if has_down:
            dw = nxt()
            identity = jnp.dot(mid_tap, dw[...],
                               preferred_element_type=jnp.float32) + bias(dbr, planes)
        else:
            identity = a
        a = jnp.maximum(out + identity, 0.0)

    # Head: global average pool (reuse last block's pool matrix) + FC.
    fc_w = nxt()
    pooled = jnp.dot(pool_ref[...], a, preferred_element_type=jnp.float32)  # (BT, C)
    out_ref[...] = (jnp.dot(pooled, fc_w[...],
                            preferred_element_type=jnp.float32)
                    + bias(fc_bias_row, 128))                               # (BT, 128)


# --------------------------------------------------------------------------
# Wrapper: fold BN, pack weights / sel matrices / biases, one pallas_call
# --------------------------------------------------------------------------
def drsn_cw_forward(params, x, batch_tile=None):
    """x: (N, 1, 1, L) — PyTorch NCHW with H == 1. Returns (logits, logits)."""
    N = int(x.shape[0])
    L = int(x.shape[3])
    num_classes = int(params["fc_w"].shape[1])

    # One grid step covers `bt` samples stacked on the sublane axis.  For small
    # batches the whole batch runs in one step (best on v5e/v6e); for big
    # batches on v7x pick a tile so the grid has >= 2 "parallel" steps.
    if batch_tile is None:
        batch_tile = N if N <= 8 else 8
    bt = int(batch_tile)
    n_pad = -(-N // bt) * bt
    G = n_pad // bt

    x2 = x[:, 0, 0, :].astype(jnp.float32)                    # (N, L)
    if n_pad != N:
        x2 = jnp.concatenate(
            [x2, jnp.zeros((n_pad - N, L), jnp.float32)], axis=0)
    x_col = x2.reshape(G, bt * L, 1)                          # samples on sublanes

    ops = [x_col, None]                                       # [1] <- packed biases
    specs = [pl.BlockSpec((None, bt * L, 1), lambda i: (i, 0, 0)), None]

    def add_const(arr):
        arr = jnp.asarray(arr, jnp.float32)
        nd = arr.ndim
        ops.append(arr)
        specs.append(pl.BlockSpec(arr.shape, lambda i, nd=nd: (0,) * nd))

    bias_rows = []

    def add_bias(vec):
        vec = np.asarray(vec, np.float32).reshape(-1)
        row = np.zeros((128,), np.float32)
        row[:vec.size] = vec
        bias_rows.append(row)
        return len(bias_rows) - 1

    def add_conv3(w, bn, win, stride, pad):
        w = np.asarray(w, np.float32)                         # (Cout, Cin, 3)
        cout, cin, _ = w.shape
        scale, b = _bn_fold_np(bn)
        wout = (win + 2 * pad - 3) // stride + 1
        # rows ordered [k*Cin + c] to match the in-kernel tap concat order;
        # BN scale folded into the weight columns.
        wp = np.transpose(w, (2, 1, 0)).reshape(3 * cin, cout) * scale[None, :]
        add_const(wp)
        add_const(_sel_block_diag(win, wout, stride, pad, 3, bt))
        return wout, cout, add_bias(b)

    # ---- stem ---------------------------------------------------------------
    w_cur, stem_c, stem_row = add_conv3(params["conv1_w"], params["bn1"], L, 2, 3)
    stem_plan = (stem_row, stem_c)

    # ---- residual shrinkage blocks -------------------------------------------
    block_plans = []
    for layer_name in ("layer1", "layer2", "layer3"):
        for blk in params[layer_name]:
            win = w_cur
            wmid, planes, b1r = add_conv3(blk["conv1_w"], blk["bn1"], win,
                                          blk["stride"], 1)
            _, _, b2r = add_conv3(blk["conv2_w"], blk["bn2"], wmid, 1, 1)

            st = blk["st"]
            bn_s = np.asarray(st["bn_scale"], np.float32)
            bn_b = np.asarray(st["bn_bias"], np.float32)
            w1 = np.asarray(st["w1"], np.float32) * bn_s      # fold BatchNorm1d
            b1 = np.asarray(st["b1"], np.float32) * bn_s + bn_b
            add_const(w1)
            add_const(np.asarray(st["w2"], np.float32))
            s1r = add_bias(b1)
            s2r = add_bias(st["b2"])

            p_mat, e_mat = _pool_expand(wmid, bt)
            add_const(p_mat)
            add_const(e_mat)

            has_down = blk["down"] is not None
            dbr = -1
            if has_down:
                dscale, db = _bn_fold_np(blk["down"]["bn"])
                dw = np.asarray(blk["down"]["w"], np.float32).T * dscale[None, :]
                add_const(dw)
                dbr = add_bias(db)

            block_plans.append((planes, b1r, b2r, s1r, s2r, has_down, dbr))
            w_cur = wmid

    # ---- head (lane-dense: pad classes to 128) --------------------------------
    fc_w = np.asarray(params["fc_w"], np.float32)             # (C_last, ncls)
    fc_w_pad = np.zeros((fc_w.shape[0], 128), np.float32)
    fc_w_pad[:, :num_classes] = fc_w
    add_const(fc_w_pad)
    fc_row = add_bias(params["fc_b"])

    bias_pack = np.stack(bias_rows, axis=0)                   # (rows, 128)
    ops[1] = jnp.asarray(bias_pack)
    specs[1] = pl.BlockSpec(bias_pack.shape, lambda i: (0, 0))

    kernel = functools.partial(
        _fused_drsn_kernel,
        plan=(stem_plan, tuple(block_plans), fc_row))

    out = pl.pallas_call(
        kernel,
        out_shape=jax.ShapeDtypeStruct((G, bt, 128), jnp.float32),
        grid=(G,),
        in_specs=specs,
        out_specs=pl.BlockSpec((None, bt, 128), lambda i: (i, 0, 0)),
        compiler_params=pltpu.CompilerParams(
            dimension_semantics=("parallel",)),
    )(*ops)

    logits = out.reshape(G * bt, 128)[:N, :num_classes]
    return logits, logits                                     # module returns (x, x)


# --------------------------------------------------------------------------
# Pure-JAX reference (same math, independent im2col path) for validation
# --------------------------------------------------------------------------
def _ref_forward(params, x):
    def conv3(h, w, bn, stride, pad, relu):
        n, cin, win = h.shape
        wout = (win + 2 * pad - 3) // stride + 1
        hp = jnp.pad(h, ((0, 0), (0, 0), (pad, pad)))
        taps = [hp[:, :, k:k + stride * (wout - 1) + 1:stride] for k in range(3)]
        patches = jnp.stack(taps, axis=-1)                    # (N, Cin, Wout, 3)
        y = jnp.einsum("ncwk,ock->now", patches, w)
        s, b = bn_scale_bias(bn)
        y = y * s[:, :, None] + b[:, :, None]
        return jnp.maximum(y, 0.0) if relu else y

    def conv1(h, w, bn, stride):
        hs = h[:, :, ::stride]
        y = jnp.einsum("ncw,oc->now", hs, w)
        s, b = bn_scale_bias(bn)
        return y * s[:, :, None] + b[:, :, None]

    def st_ref(h, p):
        x_abs = jnp.abs(h)
        avg = jnp.mean(x_abs, axis=-1)                        # (N, C)
        z = avg @ p["w1"] + p["b1"]
        z = z * p["bn_scale"] + p["bn_bias"]
        z = jnp.maximum(z, 0.0)
        z = z @ p["w2"] + p["b2"]
        sig = jax.nn.sigmoid(z)
        thr = (avg * sig)[:, :, None]
        return jnp.sign(h) * jnp.maximum(x_abs - thr, 0.0)

    h = x[:, 0, 0, :][:, None, :].astype(jnp.float32)         # (N, 1, L)
    h = conv3(h, params["conv1_w"], params["bn1"], 2, 3, True)
    for layer_name in ("layer1", "layer2", "layer3"):
        for blk in params[layer_name]:
            idn = h
            o = conv3(h, blk["conv1_w"], blk["bn1"], blk["stride"], 1, True)
            o = conv3(o, blk["conv2_w"], blk["bn2"], 1, 1, False)
            o = st_ref(o, blk["st"])
            if blk["down"] is not None:
                idn = conv1(h, blk["down"]["w"], blk["down"]["bn"], blk["stride"])
            h = jnp.maximum(o + idn, 0.0)
    pooled = jnp.mean(h, axis=-1)
    return pooled @ params["fc_w"] + params["fc_b"]


# --------------------------------------------------------------------------
# Deterministic parameter init (mirrors the module's __init__ shapes)
# --------------------------------------------------------------------------
def init_bn(c):
    return dict(gamma=jnp.ones((c,), jnp.float32),
                beta=jnp.zeros((c,), jnp.float32),
                mean=jnp.zeros((c,), jnp.float32),
                var=jnp.ones((c,), jnp.float32))


def kaiming_conv3(key, cout, cin):
    std = float(np.sqrt(2.0 / (cout * 3)))        # fan_out mode, k=(1,3)
    return std * jax.random.normal(key, (cout, cin, 3), dtype=jnp.float32)


def kaiming_conv1(key, cout, cin):
    std = float(np.sqrt(2.0 / cout))              # fan_out mode, k=1
    return std * jax.random.normal(key, (cout, cin), dtype=jnp.float32)


def init_linear(key, fan_in, fan_out):
    k1, k2 = jax.random.split(key)
    bound = 1.0 / float(np.sqrt(fan_in))
    w = jax.random.uniform(k1, (fan_out, fan_in), jnp.float32, -bound, bound)
    b = jax.random.uniform(k2, (fan_out,), jnp.float32, -bound, bound)
    return w, b


def init_soft_threshold(key, c):
    k1, k2 = jax.random.split(key)
    w1, b1 = init_linear(k1, c, c)
    w2, b2 = init_linear(k2, c, c)
    scale, bias = bn_scale_bias(init_bn(c))       # BatchNorm1d, inference
    return dict(w1=w1.T, b1=b1.reshape(1, -1), bn_scale=scale, bn_bias=bias,
                w2=w2.T, b2=b2.reshape(1, -1))


def init_params(key, layers=(1, 1, 1), num_classes=15):
    keys = iter(jax.random.split(key, 256))
    params = {}
    inplanes = 16
    params["conv1_w"] = kaiming_conv3(next(keys), inplanes, 1)
    params["bn1"] = init_bn(inplanes)

    def make_layer(planes, blocks, stride):
        nonlocal inplanes
        layer = []
        blk = dict(
            conv1_w=kaiming_conv3(next(keys), planes, inplanes),
            bn1=init_bn(planes),
            conv2_w=kaiming_conv3(next(keys), planes, planes),
            bn2=init_bn(planes),
            st=init_soft_threshold(next(keys), planes),
            stride=stride,
            down=None,
        )
        if stride != 1 or inplanes != planes:
            blk["down"] = dict(w=kaiming_conv1(next(keys), planes, inplanes),
                               bn=init_bn(planes))
        layer.append(blk)
        inplanes = planes
        for _ in range(1, blocks):
            layer.append(dict(
                conv1_w=kaiming_conv3(next(keys), planes, planes),
                bn1=init_bn(planes),
                conv2_w=kaiming_conv3(next(keys), planes, planes),
                bn2=init_bn(planes),
                st=init_soft_threshold(next(keys), planes),
                stride=1,
                down=None,
            ))
        return layer

    params["layer1"] = make_layer(16, layers[0], 2)   # stride (1,2)
    params["layer2"] = make_layer(32, layers[1], 2)
    params["layer3"] = make_layer(64, layers[2], 2)

    fc_w, fc_b = init_linear(next(keys), 64, num_classes)
    params["fc_w"] = fc_w.T                    # (64, num_classes)
    params["fc_b"] = fc_b.reshape(1, -1)
    return params


if __name__ == "__main__":
    key = jax.random.PRNGKey(0)
    pkey, xkey = jax.random.split(key)
    # DRSN_CW(BasicBlock, layers=[1,1,1], num_classes=15); input (N, 1, 1, L).
    params = init_params(pkey, layers=(1, 1, 1), num_classes=15)
    x = jax.random.normal(xkey, (2, 1, 1, 64), dtype=jnp.float32)

    logits, logits2 = drsn_cw_forward(params, x)
    jax.block_until_ready(logits)

    assert logits.shape == (2, 15)
    assert bool(jnp.all(jnp.isfinite(logits)))

    ref = _ref_forward(params, x)
    err = float(jnp.max(jnp.abs(logits - ref)))
    assert err < 1e-2, f"kernel vs reference mismatch: max abs err = {err}"

    print("KERNEL_OK")
</pallas_src>

<mosaic_0001>
module attributes {stable_mosaic.version = 11 : i64} {
  func.func @_fused_drsn_kernel(%arg0: i32, %arg1: memref<1x128x1xf32, #tpu.memory_space<vmem>>, %arg2: memref<17x128xf32, #tpu.memory_space<vmem>>, %arg3: memref<3x16xf32, #tpu.memory_space<vmem>>, %arg4: memref<3x68x128xf32, #tpu.memory_space<vmem>>, %arg5: memref<48x16xf32, #tpu.memory_space<vmem>>, %arg6: memref<3x34x68xf32, #tpu.memory_space<vmem>>, %arg7: memref<48x16xf32, #tpu.memory_space<vmem>>, %arg8: memref<3x34x34xf32, #tpu.memory_space<vmem>>, %arg9: memref<16x16xf32, #tpu.memory_space<vmem>>, %arg10: memref<16x16xf32, #tpu.memory_space<vmem>>, %arg11: memref<2x34xf32, #tpu.memory_space<vmem>>, %arg12: memref<34x2xf32, #tpu.memory_space<vmem>>, %arg13: memref<16x16xf32, #tpu.memory_space<vmem>>, %arg14: memref<48x32xf32, #tpu.memory_space<vmem>>, %arg15: memref<3x18x34xf32, #tpu.memory_space<vmem>>, %arg16: memref<96x32xf32, #tpu.memory_space<vmem>>, %arg17: memref<3x18x18xf32, #tpu.memory_space<vmem>>, %arg18: memref<32x32xf32, #tpu.memory_space<vmem>>, %arg19: memref<32x32xf32, #tpu.memory_space<vmem>>, %arg20: memref<2x18xf32, #tpu.memory_space<vmem>>, %arg21: memref<18x2xf32, #tpu.memory_space<vmem>>, %arg22: memref<16x32xf32, #tpu.memory_space<vmem>>, %arg23: memref<96x64xf32, #tpu.memory_space<vmem>>, %arg24: memref<3x10x18xf32, #tpu.memory_space<vmem>>, %arg25: memref<192x64xf32, #tpu.memory_space<vmem>>, %arg26: memref<3x10x10xf32, #tpu.memory_space<vmem>>, %arg27: memref<64x64xf32, #tpu.memory_space<vmem>>, %arg28: memref<64x64xf32, #tpu.memory_space<vmem>>, %arg29: memref<2x10xf32, #tpu.memory_space<vmem>>, %arg30: memref<10x2xf32, #tpu.memory_space<vmem>>, %arg31: memref<32x64xf32, #tpu.memory_space<vmem>>, %arg32: memref<64x128xf32, #tpu.memory_space<vmem>>, %arg33: memref<1x2x128xf32, #tpu.memory_space<vmem>>) attributes {dimension_semantics = [#tpu.dimension_semantics<parallel>], iteration_bounds = array<i64: 1>, scalar_prefetch = 0 : i64, scratch_operands = 0 : i64, tpu.core_type = #tpu.core_type<tc>, window_params = [{transform_indices = @transform_0, window_bounds = array<i64: 1, 128, 1>}, {pipeline_mode = #tpu.pipeline_mode<synchronous>, transform_indices = @transform_1, window_bounds = array<i64: 17, 128>}, {pipeline_mode = #tpu.pipeline_mode<synchronous>, transform_indices = @transform_2, window_bounds = array<i64: 3, 16>}, {pipeline_mode = #tpu.pipeline_mode<synchronous>, transform_indices = @transform_3, window_bounds = array<i64: 3, 68, 128>}, {pipeline_mode = #tpu.pipeline_mode<synchronous>, transform_indices = @transform_4, window_bounds = array<i64: 48, 16>}, {pipeline_mode = #tpu.pipeline_mode<synchronous>, transform_indices = @transform_5, window_bounds = array<i64: 3, 34, 68>}, {pipeline_mode = #tpu.pipeline_mode<synchronous>, transform_indices = @transform_6, window_bounds = array<i64: 48, 16>}, {pipeline_mode = #tpu.pipeline_mode<synchronous>, transform_indices = @transform_7, window_bounds = array<i64: 3, 34, 34>}, {pipeline_mode = #tpu.pipeline_mode<synchronous>, transform_indices = @transform_8, window_bounds = array<i64: 16, 16>}, {pipeline_mode = #tpu.pipeline_mode<synchronous>, transform_indices = @transform_9, window_bounds = array<i64: 16, 16>}, {pipeline_mode = #tpu.pipeline_mode<synchronous>, transform_indices = @transform_10, window_bounds = array<i64: 2, 34>}, {pipeline_mode = #tpu.pipeline_mode<synchronous>, transform_indices = @transform_11, window_bounds = array<i64: 34, 2>}, {pipeline_mode = #tpu.pipeline_mode<synchronous>, transform_indices = @transform_12, window_bounds = array<i64: 16, 16>}, {pipeline_mode = #tpu.pipeline_mode<synchronous>, transform_indices = @transform_13, window_bounds = array<i64: 48, 32>}, {pipeline_mode = #tpu.pipeline_mode<synchronous>, transform_indices = @transform_14, window_bounds = array<i64: 3, 18, 34>}, {pipeline_mode = #tpu.pipeline_mode<synchronous>, transform_indices = @transform_15, window_bounds = array<i64: 96, 32>}, {pipeline_mode = #tpu.pipeline_mode<synchronous>, transform_indices = @transform_16, window_bounds = array<i64: 3, 18, 18>}, {pipeline_mode = #tpu.pipeline_mode<synchronous>, transform_indices = @transform_17, window_bounds = array<i64: 32, 32>}, {pipeline_mode = #tpu.pipeline_mode<synchronous>, transform_indices = @transform_18, window_bounds = array<i64: 32, 32>}, {pipeline_mode = #tpu.pipeline_mode<synchronous>, transform_indices = @transform_19, window_bounds = array<i64: 2, 18>}, {pipeline_mode = #tpu.pipeline_mode<synchronous>, transform_indices = @transform_20, window_bounds = array<i64: 18, 2>}, {pipeline_mode = #tpu.pipeline_mode<synchronous>, transform_indices = @transform_21, window_bounds = array<i64: 16, 32>}, {pipeline_mode = #tpu.pipeline_mode<synchronous>, transform_indices = @transform_22, window_bounds = array<i64: 96, 64>}, {pipeline_mode = #tpu.pipeline_mode<synchronous>, transform_indices = @transform_23, window_bounds = array<i64: 3, 10, 18>}, {pipeline_mode = #tpu.pipeline_mode<synchronous>, transform_indices = @transform_24, window_bounds = array<i64: 192, 64>}, {pipeline_mode = #tpu.pipeline_mode<synchronous>, transform_indices = @transform_25, window_bounds = array<i64: 3, 10, 10>}, {pipeline_mode = #tpu.pipeline_mode<synchronous>, transform_indices = @transform_26, window_bounds = array<i64: 64, 64>}, {pipeline_mode = #tpu.pipeline_mode<synchronous>, transform_indices = @transform_27, window_bounds = array<i64: 64, 64>}, {pipeline_mode = #tpu.pipeline_mode<synchronous>, transform_indices = @transform_28, window_bounds = array<i64: 2, 10>}, {pipeline_mode = #tpu.pipeline_mode<synchronous>, transform_indices = @transform_29, window_bounds = array<i64: 10, 2>}, {pipeline_mode = #tpu.pipeline_mode<synchronous>, transform_indices = @transform_30, window_bounds = array<i64: 32, 64>}, {pipeline_mode = #tpu.pipeline_mode<synchronous>, transform_indices = @transform_31, window_bounds = array<i64: 64, 128>}, {transform_indices = @transform_32, window_bounds = array<i64: 1, 2, 128>}]} {
    %c0 = arith.constant 0 : index
    %c0_0 = arith.constant 0 : index
    %c0_1 = arith.constant 0 : index
    %0 = vector.load %arg1[%c0, %c0_0, %c0_1] : memref<1x128x1xf32, #tpu.memory_space<vmem>>, vector<1x128x1xf32>
    %1 = vector.shape_cast %0 : vector<1x128x1xf32> to vector<128x1xf32>
    %c0_2 = arith.constant 0 : index
    %c0_3 = arith.constant 0 : index
    %2 = vector.load %arg2[%c0_2, %c0_3] : memref<17x128xf32, #tpu.memory_space<vmem>>, vector<1x128xf32>
    %3 = vector.extract_strided_slice %2 {offsets = [0, 0], sizes = [1, 16], strides = [1, 1]} : vector<1x128xf32> to vector<1x16xf32>
    %c0_4 = arith.constant 0 : index
    %c0_5 = arith.constant 0 : index
    %c0_6 = arith.constant 0 : index
    %4 = vector.load %arg4[%c0_4, %c0_5, %c0_6] : memref<3x68x128xf32, #tpu.memory_space<vmem>>, vector<1x68x128xf32>
    %5 = vector.shape_cast %4 : vector<1x68x128xf32> to vector<68x128xf32>
    %cst = arith.constant dense<0.000000e+00> : vector<68x1xf32>
    %6 = tpu.matmul %5, %1, %cst {dimension_numbers = #tpu.dot_dimension_numbers<[1], [0], [0], [1], [0, 0, 1, 1], [], []>} : vector<68x128xf32>, vector<128x1xf32>, vector<68x1xf32> -> vector<68x1xf32>
    %c1 = arith.constant 1 : index
    %c0_7 = arith.constant 0 : index
    %c0_8 = arith.constant 0 : index
    %7 = vector.load %arg4[%c1, %c0_7, %c0_8] : memref<3x68x128xf32, #tpu.memory_space<vmem>>, vector<1x68x128xf32>
    %8 = vector.shape_cast %7 : vector<1x68x128xf32> to vector<68x128xf32>
    %cst_9 = arith.constant dense<0.000000e+00> : vector<68x1xf32>
    %9 = tpu.matmul %8, %1, %cst_9 {dimension_numbers = #tpu.dot_dimension_numbers<[1], [0], [0], [1], [0, 0, 1, 1], [], []>} : vector<68x128xf32>, vector<128x1xf32>, vector<68x1xf32> -> vector<68x1xf32>
    %c2 = arith.constant 2 : index
    %c0_10 = arith.constant 0 : index
    %c0_11 = arith.constant 0 : index
    %10 = vector.load %arg4[%c2, %c0_10, %c0_11] : memref<3x68x128xf32, #tpu.memory_space<vmem>>, vector<1x68x128xf32>
    %11 = vector.shape_cast %10 : vector<1x68x128xf32> to vector<68x128xf32>
    %cst_12 = arith.constant dense<0.000000e+00> : vector<68x1xf32>
    %12 = tpu.matmul %11, %1, %cst_12 {dimension_numbers = #tpu.dot_dimension_numbers<[1], [0], [0], [1], [0, 0, 1, 1], [], []>} : vector<68x128xf32>, vector<128x1xf32>, vector<68x1xf32> -> vector<68x1xf32>
    %13 = tpu.concatenate %6, %9, %12 in 1 : vector<68x1xf32>, vector<68x1xf32>, vector<68x1xf32> -> vector<68x3xf32>
    %c0_13 = arith.constant 0 : index
    %c0_14 = arith.constant 0 : index
    %14 = vector.load %arg3[%c0_13, %c0_14] : memref<3x16xf32, #tpu.memory_space<vmem>>, vector<3x16xf32>
    %cst_15 = arith.constant dense<0.000000e+00> : vector<68x16xf32>
    %15 = tpu.matmul %13, %14, %cst_15 {dimension_numbers = #tpu.dot_dimension_numbers<[1], [0], [0], [1], [0, 0, 1, 1], [], []>} : vector<68x3xf32>, vector<3x16xf32>, vector<68x16xf32> -> vector<68x16xf32>
    %16 = vector.broadcast %3 : vector<1x16xf32> to vector<68x16xf32>
    %17 = arith.addf %15, %16 : vector<68x16xf32>
    %cst_16 = arith.constant 0.000000e+00 : f32
    %18 = vector.broadcast %cst_16 : f32 to vector<68x16xf32>
    %19 = arith.maximumf %17, %18 : vector<68x16xf32>
    %c1_17 = arith.constant 1 : index
    %c0_18 = arith.constant 0 : index
    %20 = vector.load %arg2[%c1_17, %c0_18] : memref<17x128xf32, #tpu.memory_space<vmem>>, vector<1x128xf32>
    %21 = vector.extract_strided_slice %20 {offsets = [0, 0], sizes = [1, 16], strides = [1, 1]} : vector<1x128xf32> to vector<1x16xf32>
    %c0_19 = arith.constant 0 : index
    %c0_20 = arith.constant 0 : index
    %c0_21 = arith.constant 0 : index
    %22 = vector.load %arg6[%c0_19, %c0_20, %c0_21] : memref<3x34x68xf32, #tpu.memory_space<vmem>>, vector<1x34x68xf32>
    %23 = vector.shape_cast %22 : vector<1x34x68xf32> to vector<34x68xf32>
    %cst_22 = arith.constant dense<0.000000e+00> : vector<34x16xf32>
    %24 = tpu.matmul %23, %19, %cst_22 {dimension_numbers = #tpu.dot_dimension_numbers<[1], [0], [0], [1], [0, 0, 1, 1], [], []>} : vector<34x68xf32>, vector<68x16xf32>, vector<34x16xf32> -> vector<34x16xf32>
    %c1_23 = arith.constant 1 : index
    %c0_24 = arith.constant 0 : index
    %c0_25 = arith.constant 0 : index
    %25 = vector.load %arg6[%c1_23, %c0_24, %c0_25] : memref<3x34x68xf32, #tpu.memory_space<vmem>>, vector<1x34x68xf32>
    %26 = vector.shape_cast %25 : vector<1x34x68xf32> to vector<34x68xf32>
    %cst_26 = arith.constant dense<0.000000e+00> : vector<34x16xf32>
    %27 = tpu.matmul %26, %19, %cst_26 {dimension_numbers = #tpu.dot_dimension_numbers<[1], [0], [0], [1], [0, 0, 1, 1], [], []>} : vector<34x68xf32>, vector<68x16xf32>, vector<34x16xf32> -> vector<34x16xf32>
    %c2_27 = arith.constant 2 : index
    %c0_28 = arith.constant 0 : index
    %c0_29 = arith.constant 0 : index
    %28 = vector.load %arg6[%c2_27, %c0_28, %c0_29] : memref<3x34x68xf32, #tpu.memory_space<vmem>>, vector<1x34x68xf32>
    %29 = vector.shape_cast %28 : vector<1x34x68xf32> to vector<34x68xf32>
    %cst_30 = arith.constant dense<0.000000e+00> : vector<34x16xf32>
    %30 = tpu.matmul %29, %19, %cst_30 {dimension_numbers = #tpu.dot_dimension_numbers<[1], [0], [0], [1], [0, 0, 1, 1], [], []>} : vector<34x68xf32>, vector<68x16xf32>, vector<34x16xf32> -> vector<34x16xf32>
    %31 = tpu.concatenate %24, %27, %30 in 1 : vector<34x16xf32>, vector<34x16xf32>, vector<34x16xf32> -> vector<34x48xf32>
    %c0_31 = arith.constant 0 : index
    %c0_32 = arith.constant 0 : index
    %32 = vector.load %arg5[%c0_31, %c0_32] : memref<48x16xf32, #tpu.memory_space<vmem>>, vector<48x16xf32>
    %cst_33 = arith.constant dense<0.000000e+00> : vector<34x16xf32>
    %33 = tpu.matmul %31, %32, %cst_33 {dimension_numbers = #tpu.dot_dimension_numbers<[1], [0], [0], [1], [0, 0, 1, 1], [], []>} : vector<34x48xf32>, vector<48x16xf32>, vector<34x16xf32> -> vector<34x16xf32>
    %34 = vector.broadcast %21 : vector<1x16xf32> to vector<34x16xf32>
    %35 = arith.addf %33, %34 : vector<34x16xf32>
    %cst_34 = arith.constant 0.000000e+00 : f32
    %36 = vector.broadcast %cst_34 : f32 to vector<34x16xf32>
    %37 = arith.maximumf %35, %36 : vector<34x16xf32>
    %c2_35 = arith.constant 2 : index
    %c0_36 = arith.constant 0 : index
    %38 = vector.load %arg2[%c2_35, %c0_36] : memref<17x128xf32, #tpu.memory_space<vmem>>, vector<1x128xf32>
    %39 = vector.extract_strided_slice %38 {offsets = [0, 0], sizes = [1, 16], strides = [1, 1]} : vector<1x128xf32> to vector<1x16xf32>
    %c0_37 = arith.constant 0 : index
    %c0_38 = arith.constant 0 : index
    %c0_39 = arith.constant 0 : index
    %40 = vector.load %arg8[%c0_37, %c0_38, %c0_39] : memref<3x34x34xf32, #tpu.memory_space<vmem>>, vector<1x34x34xf32>
    %41 = vector.shape_cast %40 : vector<1x34x34xf32> to vector<34x34xf32>
    %cst_40 = arith.constant dense<0.000000e+00> : vector<34x16xf32>
    %42 = tpu.matmul %41, %37, %cst_40 {dimension_numbers = #tpu.dot_dimension_numbers<[1], [0], [0], [1], [0, 0, 1, 1], [], []>} : vector<34x34xf32>, vector<34x16xf32>, vector<34x16xf32> -> vector<34x16xf32>
    %c1_41 = arith.constant 1 : index
    %c0_42 = arith.constant 0 : index
    %c0_43 = arith.constant 0 : index
    %43 = vector.load %arg8[%c1_41, %c0_42, %c0_43] : memref<3x34x34xf32, #tpu.memory_space<vmem>>, vector<1x34x34xf32>
    %44 = vector.shape_cast %43 : vector<1x34x34xf32> to vector<34x34xf32>
    %cst_44 = arith.constant dense<0.000000e+00> : vector<34x16xf32>
    %45 = tpu.matmul %44, %37, %cst_44 {dimension_numbers = #tpu.dot_dimension_numbers<[1], [0], [0], [1], [0, 0, 1, 1], [], []>} : vector<34x34xf32>, vector<34x16xf32>, vector<34x16xf32> -> vector<34x16xf32>
    %c2_45 = arith.constant 2 : index
    %c0_46 = arith.constant 0 : index
    %c0_47 = arith.constant 0 : index
    %46 = vector.load %arg8[%c2_45, %c0_46, %c0_47] : memref<3x34x34xf32, #tpu.memory_space<vmem>>, vector<1x34x34xf32>
    %47 = vector.shape_cast %46 : vector<1x34x34xf32> to vector<34x34xf32>
    %cst_48 = arith.constant dense<0.000000e+00> : vector<34x16xf32>
    %48 = tpu.matmul %47, %37, %cst_48 {dimension_numbers = #tpu.dot_dimension_numbers<[1], [0], [0], [1], [0, 0, 1, 1], [], []>} : vector<34x34xf32>, vector<34x16xf32>, vector<34x16xf32> -> vector<34x16xf32>
    %49 = tpu.concatenate %42, %45, %48 in 1 : vector<34x16xf32>, vector<34x16xf32>, vector<34x16xf32> -> vector<34x48xf32>
    %c0_49 = arith.constant 0 : index
    %c0_50 = arith.constant 0 : index
    %50 = vector.load %arg7[%c0_49, %c0_50] : memref<48x16xf32, #tpu.memory_space<vmem>>, vector<48x16xf32>
    %cst_51 = arith.constant dense<0.000000e+00> : vector<34x16xf32>
    %51 = tpu.matmul %49, %50, %cst_51 {dimension_numbers = #tpu.dot_dimension_numbers<[1], [0], [0], [1], [0, 0, 1, 1], [], []>} : vector<34x48xf32>, vector<48x16xf32>, vector<34x16xf32> -> vector<34x16xf32>
    %52 = vector.broadcast %39 : vector<1x16xf32> to vector<34x16xf32>
    %53 = arith.addf %51, %52 : vector<34x16xf32>
    %c3 = arith.constant 3 : index
    %c0_52 = arith.constant 0 : index
    %54 = vector.load %arg2[%c3, %c0_52] : memref<17x128xf32, #tpu.memory_space<vmem>>, vector<1x128xf32>
    %55 = vector.extract_strided_slice %54 {offsets = [0, 0], sizes = [1, 16], strides = [1, 1]} : vector<1x128xf32> to vector<1x16xf32>
    %c4 = arith.constant 4 : index
    %c0_53 = arith.constant 0 : index
    %56 = vector.load %arg2[%c4, %c0_53] : memref<17x128xf32, #tpu.memory_space<vmem>>, vector<1x128xf32>
    %57 = vector.extract_strided_slice %56 {offsets = [0, 0], sizes = [1, 16], strides = [1, 1]} : vector<1x128xf32> to vector<1x16xf32>
    %58 = math.absf %53 : vector<34x16xf32>
    %c0_54 = arith.constant 0 : index
    %c0_55 = arith.constant 0 : index
    %59 = vector.load %arg11[%c0_54, %c0_55] : memref<2x34xf32, #tpu.memory_space<vmem>>, vector<2x34xf32>
    %cst_56 = arith.constant dense<0.000000e+00> : vector<2x16xf32>
    %60 = tpu.matmul %59, %58, %cst_56 {dimension_numbers = #tpu.dot_dimension_numbers<[1], [0], [0], [1], [0, 0, 1, 1], [], []>} : vector<2x34xf32>, vector<34x16xf32>, vector<2x16xf32> -> vector<2x16xf32>
    %c0_57 = arith.constant 0 : index
    %c0_58 = arith.constant 0 : index
    %61 = vector.load %arg9[%c0_57, %c0_58] : memref<16x16xf32, #tpu.memory_space<vmem>>, vector<16x16xf32>
    %cst_59 = arith.constant dense<0.000000e+00> : vector<2x16xf32>
    %62 = tpu.matmul %60, %61, %cst_59 {dimension_numbers = #tpu.dot_dimension_numbers<[1], [0], [0], [1], [0, 0, 1, 1], [], []>} : vector<2x16xf32>, vector<16x16xf32>, vector<2x16xf32> -> vector<2x16xf32>
    %63 = vector.broadcast %55 : vector<1x16xf32> to vector<2x16xf32>
    %64 = arith.addf %62, %63 : vector<2x16xf32>
    %cst_60 = arith.constant 0.000000e+00 : f32
    %65 = vector.broadcast %cst_60 : f32 to vector<2x16xf32>
    %66 = arith.maximumf %64, %65 : vector<2x16xf32>
    %c0_61 = arith.constant 0 : index
    %c0_62 = arith.constant 0 : index
    %67 = vector.load %arg10[%c0_61, %c0_62] : memref<16x16xf32, #tpu.memory_space<vmem>>, vector<16x16xf32>
    %cst_63 = arith.constant dense<0.000000e+00> : vector<2x16xf32>
    %68 = tpu.matmul %66, %67, %cst_63 {dimension_numbers = #tpu.dot_dimension_numbers<[1], [0], [0], [1], [0, 0, 1, 1], [], []>} : vector<2x16xf32>, vector<16x16xf32>, vector<2x16xf32> -> vector<2x16xf32>
    %69 = vector.broadcast %57 : vector<1x16xf32> to vector<2x16xf32>
    %70 = arith.addf %68, %69 : vector<2x16xf32>
    %cst_64 = arith.constant 0.000000e+00 : f32
    %71 = vector.broadcast %cst_64 : f32 to vector<2x16xf32>
    %72 = arith.subf %71, %70 : vector<2x16xf32>
    %73 = math.exp %72 : vector<2x16xf32>
    %cst_65 = arith.constant 1.000000e+00 : f32
    %74 = vector.broadcast %cst_65 : f32 to vector<2x16xf32>
    %75 = arith.addf %74, %73 : vector<2x16xf32>
    %76 = tpu.reciprocal %75 {approx = true} : vector<2x16xf32> -> vector<2x16xf32>
    %c0_66 = arith.constant 0 : index
    %c0_67 = arith.constant 0 : index
    %77 = vector.load %arg12[%c0_66, %c0_67] : memref<34x2xf32, #tpu.memory_space<vmem>>, vector<34x2xf32>
    %78 = arith.mulf %60, %76 : vector<2x16xf32>
    %cst_68 = arith.constant dense<0.000000e+00> : vector<34x16xf32>
    %79 = tpu.matmul %77, %78, %cst_68 {dimension_numbers = #tpu.dot_dimension_numbers<[1], [0], [0], [1], [0, 0, 1, 1], [], []>} : vector<34x2xf32>, vector<2x16xf32>, vector<34x16xf32> -> vector<34x16xf32>
    %cst_69 = arith.constant 0.000000e+00 : f32
    %80 = vector.broadcast %cst_69 : f32 to vector<34x16xf32>
    %81 = arith.subf %80, %79 : vector<34x16xf32>
    %82 = arith.maximumf %81, %53 : vector<34x16xf32>
    %83 = arith.minimumf %79, %82 : vector<34x16xf32>
    %84 = arith.subf %53, %83 : vector<34x16xf32>
    %c0_70 = arith.constant 0 : index
    %c0_71 = arith.constant 0 : index
    %85 = vector.load %arg13[%c0_70, %c0_71] : memref<16x16xf32, #tpu.memory_space<vmem>>, vector<16x16xf32>
    %cst_72 = arith.constant dense<0.000000e+00> : vector<34x16xf32>
    %86 = tpu.matmul %27, %85, %cst_72 {dimension_numbers = #tpu.dot_dimension_numbers<[1], [0], [0], [1], [0, 0, 1, 1], [], []>} : vector<34x16xf32>, vector<16x16xf32>, vector<34x16xf32> -> vector<34x16xf32>
    %c5 = arith.constant 5 : index
    %c0_73 = arith.constant 0 : index
    %87 = vector.load %arg2[%c5, %c0_73] : memref<17x128xf32, #tpu.memory_space<vmem>>, vector<1x128xf32>
    %88 = vector.extract_strided_slice %87 {offsets = [0, 0], sizes = [1, 16], strides = [1, 1]} : vector<1x128xf32> to vector<1x16xf32>
    %89 = vector.broadcast %88 : vector<1x16xf32> to vector<34x16xf32>
    %90 = arith.addf %86, %89 : vector<34x16xf32>
    %91 = arith.addf %84, %90 : vector<34x16xf32>
    %cst_74 = arith.constant 0.000000e+00 : f32
    %92 = vector.broadcast %cst_74 : f32 to vector<34x16xf32>
    %93 = arith.maximumf %91, %92 : vector<34x16xf32>
    %c6 = arith.constant 6 : index
    %c0_75 = arith.constant 0 : index
    %94 = vector.load %arg2[%c6, %c0_75] : memref<17x128xf32, #tpu.memory_space<vmem>>, vector<1x128xf32>
    %95 = vector.extract_strided_slice %94 {offsets = [0, 0], sizes = [1, 32], strides = [1, 1]} : vector<1x128xf32> to vector<1x32xf32>
    %c0_76 = arith.constant 0 : index
    %c0_77 = arith.constant 0 : index
    %c0_78 = arith.constant 0 : index
    %96 = vector.load %arg15[%c0_76, %c0_77, %c0_78] : memref<3x18x34xf32, #tpu.memory_space<vmem>>, vector<1x18x34xf32>
    %97 = vector.shape_cast %96 : vector<1x18x34xf32> to vector<18x34xf32>
    %cst_79 = arith.constant dense<0.000000e+00> : vector<18x16xf32>
    %98 = tpu.matmul %97, %93, %cst_79 {dimension_numbers = #tpu.dot_dimension_numbers<[1], [0], [0], [1], [0, 0, 1, 1], [], []>} : vector<18x34xf32>, vector<34x16xf32>, vector<18x16xf32> -> vector<18x16xf32>
    %c1_80 = arith.constant 1 : index
    %c0_81 = arith.constant 0 : index
    %c0_82 = arith.constant 0 : index
    %99 = vector.load %arg15[%c1_80, %c0_81, %c0_82] : memref<3x18x34xf32, #tpu.memory_space<vmem>>, vector<1x18x34xf32>
    %100 = vector.shape_cast %99 : vector<1x18x34xf32> to vector<18x34xf32>
    %cst_83 = arith.constant dense<0.000000e+00> : vector<18x16xf32>
    %101 = tpu.matmul %100, %93, %cst_83 {dimension_numbers = #tpu.dot_dimension_numbers<[1], [0], [0], [1], [0, 0, 1, 1], [], []>} : vector<18x34xf32>, vector<34x16xf32>, vector<18x16xf32> -> vector<18x16xf32>
    %c2_84 = arith.constant 2 : index
    %c0_85 = arith.constant 0 : index
    %c0_86 = arith.constant 0 : index
    %102 = vector.load %arg15[%c2_84, %c0_85, %c0_86] : memref<3x18x34xf32, #tpu.memory_space<vmem>>, vector<1x18x34xf32>
    %103 = vector.shape_cast %102 : vector<1x18x34xf32> to vector<18x34xf32>
    %cst_87 = arith.constant dense<0.000000e+00> : vector<18x16xf32>
    %104 = tpu.matmul %103, %93, %cst_87 {dimension_numbers = #tpu.dot_dimension_numbers<[1], [0], [0], [1], [0, 0, 1, 1], [], []>} : vector<18x34xf32>, vector<34x16xf32>, vector<18x16xf32> -> vector<18x16xf32>
    %105 = tpu.concatenate %98, %101, %104 in 1 : vector<18x16xf32>, vector<18x16xf32>, vector<18x16xf32> -> vector<18x48xf32>
    %c0_88 = arith.constant 0 : index
    %c0_89 = arith.constant 0 : index
    %106 = vector.load %arg14[%c0_88, %c0_89] : memref<48x32xf32, #tpu.memory_space<vmem>>, vector<48x32xf32>
    %cst_90 = arith.constant dense<0.000000e+00> : vector<18x32xf32>
    %107 = tpu.matmul %105, %106, %cst_90 {dimension_numbers = #tpu.dot_dimension_numbers<[1], [0], [0], [1], [0, 0, 1, 1], [], []>} : vector<18x48xf32>, vector<48x32xf32>, vector<18x32xf32> -> vector<18x32xf32>
    %108 = vector.broadcast %95 : vector<1x32xf32> to vector<18x32xf32>
    %109 = arith.addf %107, %108 : vector<18x32xf32>
    %cst_91 = arith.constant 0.000000e+00 : f32
    %110 = vector.broadcast %cst_91 : f32 to vector<18x32xf32>
    %111 = arith.maximumf %109, %110 : vector<18x32xf32>
    %c7 = arith.constant 7 : index
    %c0_92 = arith.constant 0 : index
    %112 = vector.load %arg2[%c7, %c0_92] : memref<17x128xf32, #tpu.memory_space<vmem>>, vector<1x128xf32>
    %113 = vector.extract_strided_slice %112 {offsets = [0, 0], sizes = [1, 32], strides = [1, 1]} : vector<1x128xf32> to vector<1x32xf32>
    %c0_93 = arith.constant 0 : index
    %c0_94 = arith.constant 0 : index
    %c0_95 = arith.constant 0 : index
    %114 = vector.load %arg17[%c0_93, %c0_94, %c0_95] : memref<3x18x18xf32, #tpu.memory_space<vmem>>, vector<1x18x18xf32>
    %115 = vector.shape_cast %114 : vector<1x18x18xf32> to vector<18x18xf32>
    %cst_96 = arith.constant dense<0.000000e+00> : vector<18x32xf32>
    %116 = tpu.matmul %115, %111, %cst_96 {dimension_numbers = #tpu.dot_dimension_numbers<[1], [0], [0], [1], [0, 0, 1, 1], [], []>} : vector<18x18xf32>, vector<18x32xf32>, vector<18x32xf32> -> vector<18x32xf32>
    %c1_97 = arith.constant 1 : index
    %c0_98 = arith.constant 0 : index
    %c0_99 = arith.constant 0 : index
    %117 = vector.load %arg17[%c1_97, %c0_98, %c0_99] : memref<3x18x18xf32, #tpu.memory_space<vmem>>, vector<1x18x18xf32>
    %118 = vector.shape_cast %117 : vector<1x18x18xf32> to vector<18x18xf32>
    %cst_100 = arith.constant dense<0.000000e+00> : vector<18x32xf32>
    %119 = tpu.matmul %118, %111, %cst_100 {dimension_numbers = #tpu.dot_dimension_numbers<[1], [0], [0], [1], [0, 0, 1, 1], [], []>} : vector<18x18xf32>, vector<18x32xf32>, vector<18x32xf32> -> vector<18x32xf32>
    %c2_101 = arith.constant 2 : index
    %c0_102 = arith.constant 0 : index
    %c0_103 = arith.constant 0 : index
    %120 = vector.load %arg17[%c2_101, %c0_102, %c0_103] : memref<3x18x18xf32, #tpu.memory_space<vmem>>, vector<1x18x18xf32>
    %121 = vector.shape_cast %120 : vector<1x18x18xf32> to vector<18x18xf32>
    %cst_104 = arith.constant dense<0.000000e+00> : vector<18x32xf32>
    %122 = tpu.matmul %121, %111, %cst_104 {dimension_numbers = #tpu.dot_dimension_numbers<[1], [0], [0], [1], [0, 0, 1, 1], [], []>} : vector<18x18xf32>, vector<18x32xf32>, vector<18x32xf32> -> vector<18x32xf32>
    %123 = tpu.concatenate %116, %119, %122 in 1 : vector<18x32xf32>, vector<18x32xf32>, vector<18x32xf32> -> vector<18x96xf32>
    %c0_105 = arith.constant 0 : index
    %c0_106 = arith.constant 0 : index
    %124 = vector.load %arg16[%c0_105, %c0_106] : memref<96x32xf32, #tpu.memory_space<vmem>>, vector<96x32xf32>
    %cst_107 = arith.constant dense<0.000000e+00> : vector<18x32xf32>
    %125 = tpu.matmul %123, %124, %cst_107 {dimension_numbers = #tpu.dot_dimension_numbers<[1], [0], [0], [1], [0, 0, 1, 1], [], []>} : vector<18x96xf32>, vector<96x32xf32>, vector<18x32xf32> -> vector<18x32xf32>
    %126 = vector.broadcast %113 : vector<1x32xf32> to vector<18x32xf32>
    %127 = arith.addf %125, %126 : vector<18x32xf32>
    %c8 = arith.constant 8 : index
    %c0_108 = arith.constant 0 : index
    %128 = vector.load %arg2[%c8, %c0_108] : memref<17x128xf32, #tpu.memory_space<vmem>>, vector<1x128xf32>
    %129 = vector.extract_strided_slice %128 {offsets = [0, 0], sizes = [1, 32], strides = [1, 1]} : vector<1x128xf32> to vector<1x32xf32>
    %c9 = arith.constant 9 : index
    %c0_109 = arith.constant 0 : index
    %130 = vector.load %arg2[%c9, %c0_109] : memref<17x128xf32, #tpu.memory_space<vmem>>, vector<1x128xf32>
    %131 = vector.extract_strided_slice %130 {offsets = [0, 0], sizes = [1, 32], strides = [1, 1]} : vector<1x128xf32> to vector<1x32xf32>
    %132 = math.absf %127 : vector<18x32xf32>
    %c0_110 = arith.constant 0 : index
    %c0_111 = arith.constant 0 : index
    %133 = vector.load %arg20[%c0_110, %c0_111] : memref<2x18xf32, #tpu.memory_space<vmem>>, vector<2x18xf32>
    %cst_112 = arith.constant dense<0.000000e+00> : vector<2x32xf32>
    %134 = tpu.matmul %133, %132, %cst_112 {dimension_numbers = #tpu.dot_dimension_numbers<[1], [0], [0], [1], [0, 0, 1, 1], [], []>} : vector<2x18xf32>, vector<18x32xf32>, vector<2x32xf32> -> vector<2x32xf32>
    %c0_113 = arith.constant 0 : index
    %c0_114 = arith.constant 0 : index
    %135 = vector.load %arg18[%c0_113, %c0_114] : memref<32x32xf32, #tpu.memory_space<vmem>>, vector<32x32xf32>
    %cst_115 = arith.constant dense<0.000000e+00> : vector<2x32xf32>
    %136 = tpu.matmul %134, %135, %cst_115 {dimension_numbers = #tpu.dot_dimension_numbers<[1], [0], [0], [1], [0, 0, 1, 1], [], []>} : vector<2x32xf32>, vector<32x32xf32>, vector<2x32xf32> -> vector<2x32xf32>
    %137 = vector.broadcast %129 : vector<1x32xf32> to vector<2x32xf32>
    %138 = arith.addf %136, %137 : vector<2x32xf32>
    %cst_116 = arith.constant 0.000000e+00 : f32
    %139 = vector.broadcast %cst_116 : f32 to vector<2x32xf32>
    %140 = arith.maximumf %138, %139 : vector<2x32xf32>
    %c0_117 = arith.constant 0 : index
    %c0_118 = arith.constant 0 : index
    %141 = vector.load %arg19[%c0_117, %c0_118] : memref<32x32xf32, #tpu.memory_space<vmem>>, vector<32x32xf32>
    %cst_119 = arith.constant dense<0.000000e+00> : vector<2x32xf32>
    %142 = tpu.matmul %140, %141, %cst_119 {dimension_numbers = #tpu.dot_dimension_numbers<[1], [0], [0], [1], [0, 0, 1, 1], [], []>} : vector<2x32xf32>, vector<32x32xf32>, vector<2x32xf32> -> vector<2x32xf32>
    %143 = vector.broadcast %131 : vector<1x32xf32> to vector<2x32xf32>
    %144 = arith.addf %142, %143 : vector<2x32xf32>
    %cst_120 = arith.constant 0.000000e+00 : f32
    %145 = vector.broadcast %cst_120 : f32 to vector<2x32xf32>
    %146 = arith.subf %145, %144 : vector<2x32xf32>
    %147 = math.exp %146 : vector<2x32xf32>
    %cst_121 = arith.constant 1.000000e+00 : f32
    %148 = vector.broadcast %cst_121 : f32 to vector<2x32xf32>
    %149 = arith.addf %148, %147 : vector<2x32xf32>
    %150 = tpu.reciprocal %149 {approx = true} : vector<2x32xf32> -> vector<2x32xf32>
    %c0_122 = arith.constant 0 : index
    %c0_123 = arith.constant 0 : index
    %151 = vector.load %arg21[%c0_122, %c0_123] : memref<18x2xf32, #tpu.memory_space<vmem>>, vector<18x2xf32>
    %152 = arith.mulf %134, %150 : vector<2x32xf32>
    %cst_124 = arith.constant dense<0.000000e+00> : vector<18x32xf32>
    %153 = tpu.matmul %151, %152, %cst_124 {dimension_numbers = #tpu.dot_dimension_numbers<[1], [0], [0], [1], [0, 0, 1, 1], [], []>} : vector<18x2xf32>, vector<2x32xf32>, vector<18x32xf32> -> vector<18x32xf32>
    %cst_125 = arith.constant 0.000000e+00 : f32
    %154 = vector.broadcast %cst_125 : f32 to vector<18x32xf32>
    %155 = arith.subf %154, %153 : vector<18x32xf32>
    %156 = arith.maximumf %155, %127 : vector<18x32xf32>
    %157 = arith.minimumf %153, %156 : vector<18x32xf32>
    %158 = arith.subf %127, %157 : vector<18x32xf32>
    %c0_126 = arith.constant 0 : index
    %c0_127 = arith.constant 0 : index
    %159 = vector.load %arg22[%c0_126, %c0_127] : memref<16x32xf32, #tpu.memory_space<vmem>>, vector<16x32xf32>
    %cst_128 = arith.constant dense<0.000000e+00> : vector<18x32xf32>
    %160 = tpu.matmul %101, %159, %cst_128 {dimension_numbers = #tpu.dot_dimension_numbers<[1], [0], [0], [1], [0, 0, 1, 1], [], []>} : vector<18x16xf32>, vector<16x32xf32>, vector<18x32xf32> -> vector<18x32xf32>
    %c10 = arith.constant 10 : index
    %c0_129 = arith.constant 0 : index
    %161 = vector.load %arg2[%c10, %c0_129] : memref<17x128xf32, #tpu.memory_space<vmem>>, vector<1x128xf32>
    %162 = vector.extract_strided_slice %161 {offsets = [0, 0], sizes = [1, 32], strides = [1, 1]} : vector<1x128xf32> to vector<1x32xf32>
    %163 = vector.broadcast %162 : vector<1x32xf32> to vector<18x32xf32>
    %164 = arith.addf %160, %163 : vector<18x32xf32>
    %165 = arith.addf %158, %164 : vector<18x32xf32>
    %cst_130 = arith.constant 0.000000e+00 : f32
    %166 = vector.broadcast %cst_130 : f32 to vector<18x32xf32>
    %167 = arith.maximumf %165, %166 : vector<18x32xf32>
    %c11 = arith.constant 11 : index
    %c0_131 = arith.constant 0 : index
    %168 = vector.load %arg2[%c11, %c0_131] : memref<17x128xf32, #tpu.memory_space<vmem>>, vector<1x128xf32>
    %169 = vector.extract_strided_slice %168 {offsets = [0, 0], sizes = [1, 64], strides = [1, 1]} : vector<1x128xf32> to vector<1x64xf32>
    %c0_132 = arith.constant 0 : index
    %c0_133 = arith.constant 0 : index
    %c0_134 = arith.constant 0 : index
    %170 = vector.load %arg24[%c0_132, %c0_133, %c0_134] : memref<3x10x18xf32, #tpu.memory_space<vmem>>, vector<1x10x18xf32>
    %171 = vector.shape_cast %170 : vector<1x10x18xf32> to vector<10x18xf32>
    %cst_135 = arith.constant dense<0.000000e+00> : vector<10x32xf32>
    %172 = tpu.matmul %171, %167, %cst_135 {dimension_numbers = #tpu.dot_dimension_numbers<[1], [0], [0], [1], [0, 0, 1, 1], [], []>} : vector<10x18xf32>, vector<18x32xf32>, vector<10x32xf32> -> vector<10x32xf32>
    %c1_136 = arith.constant 1 : index
    %c0_137 = arith.constant 0 : index
    %c0_138 = arith.constant 0 : index
    %173 = vector.load %arg24[%c1_136, %c0_137, %c0_138] : memref<3x10x18xf32, #tpu.memory_space<vmem>>, vector<1x10x18xf32>
    %174 = vector.shape_cast %173 : vector<1x10x18xf32> to vector<10x18xf32>
    %cst_139 = arith.constant dense<0.000000e+00> : vector<10x32xf32>
    %175 = tpu.matmul %174, %167, %cst_139 {dimension_numbers = #tpu.dot_dimension_numbers<[1], [0], [0], [1], [0, 0, 1, 1], [], []>} : vector<10x18xf32>, vector<18x32xf32>, vector<10x32xf32> -> vector<10x32xf32>
    %c2_140 = arith.constant 2 : index
    %c0_141 = arith.constant 0 : index
    %c0_142 = arith.constant 0 : index
    %176 = vector.load %arg24[%c2_140, %c0_141, %c0_142] : memref<3x10x18xf32, #tpu.memory_space<vmem>>, vector<1x10x18xf32>
    %177 = vector.shape_cast %176 : vector<1x10x18xf32> to vector<10x18xf32>
    %cst_143 = arith.constant dense<0.000000e+00> : vector<10x32xf32>
    %178 = tpu.matmul %177, %167, %cst_143 {dimension_numbers = #tpu.dot_dimension_numbers<[1], [0], [0], [1], [0, 0, 1, 1], [], []>} : vector<10x18xf32>, vector<18x32xf32>, vector<10x32xf32> -> vector<10x32xf32>
    %179 = tpu.concatenate %172, %175, %178 in 1 : vector<10x32xf32>, vector<10x32xf32>, vector<10x32xf32> -> vector<10x96xf32>
    %c0_144 = arith.constant 0 : index
    %c0_145 = arith.constant 0 : index
    %180 = vector.load %arg23[%c0_144, %c0_145] : memref<96x64xf32, #tpu.memory_space<vmem>>, vector<96x64xf32>
    %cst_146 = arith.constant dense<0.000000e+00> : vector<10x64xf32>
    %181 = tpu.matmul %179, %180, %cst_146 {dimension_numbers = #tpu.dot_dimension_numbers<[1], [0], [0], [1], [0, 0, 1, 1], [], []>} : vector<10x96xf32>, vector<96x64xf32>, vector<10x64xf32> -> vector<10x64xf32>
    %182 = vector.broadcast %169 : vector<1x64xf32> to vector<10x64xf32>
    %183 = arith.addf %181, %182 : vector<10x64xf32>
    %cst_147 = arith.constant 0.000000e+00 : f32
    %184 = vector.broadcast %cst_147 : f32 to vector<10x64xf32>
    %185 = arith.maximumf %183, %184 : vector<10x64xf32>
    %c12 = arith.constant 12 : index
    %c0_148 = arith.constant 0 : index
    %186 = vector.load %arg2[%c12, %c0_148] : memref<17x128xf32, #tpu.memory_space<vmem>>, vector<1x128xf32>
    %187 = vector.extract_strided_slice %186 {offsets = [0, 0], sizes = [1, 64], strides = [1, 1]} : vector<1x128xf32> to vector<1x64xf32>
    %c0_149 = arith.constant 0 : index
    %c0_150 = arith.constant 0 : index
    %c0_151 = arith.constant 0 : index
    %188 = vector.load %arg26[%c0_149, %c0_150, %c0_151] : memref<3x10x10xf32, #tpu.memory_space<vmem>>, vector<1x10x10xf32>
    %189 = vector.shape_cast %188 : vector<1x10x10xf32> to vector<10x10xf32>
    %cst_152 = arith.constant dense<0.000000e+00> : vector<10x64xf32>
    %190 = tpu.matmul %189, %185, %cst_152 {dimension_numbers = #tpu.dot_dimension_numbers<[1], [0], [0], [1], [0, 0, 1, 1], [], []>} : vector<10x10xf32>, vector<10x64xf32>, vector<10x64xf32> -> vector<10x64xf32>
    %c1_153 = arith.constant 1 : index
    %c0_154 = arith.constant 0 : index
    %c0_155 = arith.constant 0 : index
    %191 = vector.load %arg26[%c1_153, %c0_154, %c0_155] : memref<3x10x10xf32, #tpu.memory_space<vmem>>, vector<1x10x10xf32>
    %192 = vector.shape_cast %191 : vector<1x10x10xf32> to vector<10x10xf32>
    %cst_156 = arith.constant dense<0.000000e+00> : vector<10x64xf32>
    %193 = tpu.matmul %192, %185, %cst_156 {dimension_numbers = #tpu.dot_dimension_numbers<[1], [0], [0], [1], [0, 0, 1, 1], [], []>} : vector<10x10xf32>, vector<10x64xf32>, vector<10x64xf32> -> vector<10x64xf32>
    %c2_157 = arith.constant 2 : index
    %c0_158 = arith.constant 0 : index
    %c0_159 = arith.constant 0 : index
    %194 = vector.load %arg26[%c2_157, %c0_158, %c0_159] : memref<3x10x10xf32, #tpu.memory_space<vmem>>, vector<1x10x10xf32>
    %195 = vector.shape_cast %194 : vector<1x10x10xf32> to vector<10x10xf32>
    %cst_160 = arith.constant dense<0.000000e+00> : vector<10x64xf32>
    %196 = tpu.matmul %195, %185, %cst_160 {dimension_numbers = #tpu.dot_dimension_numbers<[1], [0], [0], [1], [0, 0, 1, 1], [], []>} : vector<10x10xf32>, vector<10x64xf32>, vector<10x64xf32> -> vector<10x64xf32>
    %197 = tpu.concatenate %190, %193, %196 in 1 : vector<10x64xf32>, vector<10x64xf32>, vector<10x64xf32> -> vector<10x192xf32>
    %c0_161 = arith.constant 0 : index
    %c0_162 = arith.constant 0 : index
    %198 = vector.load %arg25[%c0_161, %c0_162] : memref<192x64xf32, #tpu.memory_space<vmem>>, vector<192x64xf32>
    %cst_163 = arith.constant dense<0.000000e+00> : vector<10x64xf32>
    %199 = tpu.matmul %197, %198, %cst_163 {dimension_numbers = #tpu.dot_dimension_numbers<[1], [0], [0], [1], [0, 0, 1, 1], [], []>} : vector<10x192xf32>, vector<192x64xf32>, vector<10x64xf32> -> vector<10x64xf32>
    %200 = vector.broadcast %187 : vector<1x64xf32> to vector<10x64xf32>
    %201 = arith.addf %199, %200 : vector<10x64xf32>
    %c13 = arith.constant 13 : index
    %c0_164 = arith.constant 0 : index
    %202 = vector.load %arg2[%c13, %c0_164] : memref<17x128xf32, #tpu.memory_space<vmem>>, vector<1x128xf32>
    %203 = vector.extract_strided_slice %202 {offsets = [0, 0], sizes = [1, 64], strides = [1, 1]} : vector<1x128xf32> to vector<1x64xf32>
    %c14 = arith.constant 14 : index
    %c0_165 = arith.constant 0 : index
    %204 = vector.load %arg2[%c14, %c0_165] : memref<17x128xf32, #tpu.memory_space<vmem>>, vector<1x128xf32>
    %205 = vector.extract_strided_slice %204 {offsets = [0, 0], sizes = [1, 64], strides = [1, 1]} : vector<1x128xf32> to vector<1x64xf32>
    %206 = math.absf %201 : vector<10x64xf32>
    %c0_166 = arith.constant 0 : index
    %c0_167 = arith.constant 0 : index
    %207 = vector.load %arg29[%c0_166, %c0_167] : memref<2x10xf32, #tpu.memory_space<vmem>>, vector<2x10xf32>
    %cst_168 = arith.constant dense<0.000000e+00> : vector<2x64xf32>
    %208 = tpu.matmul %207, %206, %cst_168 {dimension_numbers = #tpu.dot_dimension_numbers<[1], [0], [0], [1], [0, 0, 1, 1], [], []>} : vector<2x10xf32>, vector<10x64xf32>, vector<2x64xf32> -> vector<2x64xf32>
    %c0_169 = arith.constant 0 : index
    %c0_170 = arith.constant 0 : index
    %209 = vector.load %arg27[%c0_169, %c0_170] : memref<64x64xf32, #tpu.memory_space<vmem>>, vector<64x64xf32>
    %cst_171 = arith.constant dense<0.000000e+00> : vector<2x64xf32>
    %210 = tpu.matmul %208, %209, %cst_171 {dimension_numbers = #tpu.dot_dimension_numbers<[1], [0], [0], [1], [0, 0, 1, 1], [], []>} : vector<2x64xf32>, vector<64x64xf32>, vector<2x64xf32> -> vector<2x64xf32>
    %211 = vector.broadcast %203 : vector<1x64xf32> to vector<2x64xf32>
    %212 = arith.addf %210, %211 : vector<2x64xf32>
    %cst_172 = arith.constant 0.000000e+00 : f32
    %213 = vector.broadcast %cst_172 : f32 to vector<2x64xf32>
    %214 = arith.maximumf %212, %213 : vector<2x64xf32>
    %c0_173 = arith.constant 0 : index
    %c0_174 = arith.constant 0 : index
    %215 = vector.load %arg28[%c0_173, %c0_174] : memref<64x64xf32, #tpu.memory_space<vmem>>, vector<64x64xf32>
    %cst_175 = arith.constant dense<0.000000e+00> : vector<2x64xf32>
    %216 = tpu.matmul %214, %215, %cst_175 {dimension_numbers = #tpu.dot_dimension_numbers<[1], [0], [0], [1], [0, 0, 1, 1], [], []>} : vector<2x64xf32>, vector<64x64xf32>, vector<2x64xf32> -> vector<2x64xf32>
    %217 = vector.broadcast %205 : vector<1x64xf32> to vector<2x64xf32>
    %218 = arith.addf %216, %217 : vector<2x64xf32>
    %cst_176 = arith.constant 0.000000e+00 : f32
    %219 = vector.broadcast %cst_176 : f32 to vector<2x64xf32>
    %220 = arith.subf %219, %218 : vector<2x64xf32>
    %221 = math.exp %220 : vector<2x64xf32>
    %cst_177 = arith.constant 1.000000e+00 : f32
    %222 = vector.broadcast %cst_177 : f32 to vector<2x64xf32>
    %223 = arith.addf %222, %221 : vector<2x64xf32>
    %224 = tpu.reciprocal %223 {approx = true} : vector<2x64xf32> -> vector<2x64xf32>
    %c0_178 = arith.constant 0 : index
    %c0_179 = arith.constant 0 : index
    %225 = vector.load %arg30[%c0_178, %c0_179] : memref<10x2xf32, #tpu.memory_space<vmem>>, vector<10x2xf32>
    %226 = arith.mulf %208, %224 : vector<2x64xf32>
    %cst_180 = arith.constant dense<0.000000e+00> : vector<10x64xf32>
    %227 = tpu.matmul %225, %226, %cst_180 {dimension_numbers = #tpu.dot_dimension_numbers<[1], [0], [0], [1], [0, 0, 1, 1], [], []>} : vector<10x2xf32>, vector<2x64xf32>, vector<10x64xf32> -> vector<10x64xf32>
    %cst_181 = arith.constant 0.000000e+00 : f32
    %228 = vector.broadcast %cst_181 : f32 to vector<10x64xf32>
    %229 = arith.subf %228, %227 : vector<10x64xf32>
    %230 = arith.maximumf %229, %201 : vector<10x64xf32>
    %231 = arith.minimumf %227, %230 : vector<10x64xf32>
    %232 = arith.subf %201, %231 : vector<10x64xf32>
    %c0_182 = arith.constant 0 : index
    %c0_183 = arith.constant 0 : index
    %233 = vector.load %arg31[%c0_182, %c0_183] : memref<32x64xf32, #tpu.memory_space<vmem>>, vector<32x64xf32>
    %cst_184 = arith.constant dense<0.000000e+00> : vector<10x64xf32>
    %234 = tpu.matmul %175, %233, %cst_184 {dimension_numbers = #tpu.dot_dimension_numbers<[1], [0], [0], [1], [0, 0, 1, 1], [], []>} : vector<10x32xf32>, vector<32x64xf32>, vector<10x64xf32> -> vector<10x64xf32>
    %c15 = arith.constant 15 : index
    %c0_185 = arith.constant 0 : index
    %235 = vector.load %arg2[%c15, %c0_185] : memref<17x128xf32, #tpu.memory_space<vmem>>, vector<1x128xf32>
    %236 = vector.extract_strided_slice %235 {offsets = [0, 0], sizes = [1, 64], strides = [1, 1]} : vector<1x128xf32> to vector<1x64xf32>
    %237 = vector.broadcast %236 : vector<1x64xf32> to vector<10x64xf32>
    %238 = arith.addf %234, %237 : vector<10x64xf32>
    %239 = arith.addf %232, %238 : vector<10x64xf32>
    %cst_186 = arith.constant 0.000000e+00 : f32
    %240 = vector.broadcast %cst_186 : f32 to vector<10x64xf32>
    %241 = arith.maximumf %239, %240 : vector<10x64xf32>
    %c0_187 = arith.constant 0 : index
    %c0_188 = arith.constant 0 : index
    %242 = vector.load %arg29[%c0_187, %c0_188] : memref<2x10xf32, #tpu.memory_space<vmem>>, vector<2x10xf32>
    %cst_189 = arith.constant dense<0.000000e+00> : vector<2x64xf32>
    %243 = tpu.matmul %242, %241, %cst_189 {dimension_numbers = #tpu.dot_dimension_numbers<[1], [0], [0], [1], [0, 0, 1, 1], [], []>} : vector<2x10xf32>, vector<10x64xf32>, vector<2x64xf32> -> vector<2x64xf32>
    %c0_190 = arith.constant 0 : index
    %c0_191 = arith.constant 0 : index
    %244 = vector.load %arg32[%c0_190, %c0_191] : memref<64x128xf32, #tpu.memory_space<vmem>>, vector<64x128xf32>
    %cst_192 = arith.constant dense<0.000000e+00> : vector<2x128xf32>
    %245 = tpu.matmul %243, %244, %cst_192 {dimension_numbers = #tpu.dot_dimension_numbers<[1], [0], [0], [1], [0, 0, 1, 1], [], []>} : vector<2x64xf32>, vector<64x128xf32>, vector<2x128xf32> -> vector<2x128xf32>
    %c16 = arith.constant 16 : index
    %c0_193 = arith.constant 0 : index
    %246 = vector.load %arg2[%c16, %c0_193] : memref<17x128xf32, #tpu.memory_space<vmem>>, vector<1x128xf32>
    %247 = vector.broadcast %246 : vector<1x128xf32> to vector<2x128xf32>
    %248 = arith.addf %245, %247 : vector<2x128xf32>
    %c0_194 = arith.constant 0 : index
    %c0_195 = arith.constant 0 : index
    %c0_196 = arith.constant 0 : index
    %249 = vector.load %arg33[%c0_194, %c0_195, %c0_196] : memref<1x2x128xf32, #tpu.memory_space<vmem>>, vector<1x2x128xf32>
    %250 = vector.shape_cast %249 : vector<1x2x128xf32> to vector<2x128xf32>
    %251 = vector.shape_cast %248 : vector<2x128xf32> to vector<1x2x128xf32>
    tpu.vector_store %arg33[%c0_194, %c0_195, %c0_196], %251 {strides = array<i32>} : memref<1x2x128xf32, #tpu.memory_space<vmem>>, vector<1x2x128xf32>,
    return
  }
  func.func @transform_0(%arg0: i32) -> (i32, i32, i32) {
    %c0_i32 = arith.constant 0 : i32
    %c0_i32_0 = arith.constant 0 : i32
    %c0_i32_1 = arith.constant 0 : i32
    return %arg0, %c0_i32, %c0_i32_0 : i32, i32, i32
  }
  func.func @transform_1(%arg0: i32) -> (i32, i32) {
    %c0_i32 = arith.constant 0 : i32
    %c0_i32_0 = arith.constant 0 : i32
    %c0_i32_1 = arith.constant 0 : i32
    return %c0_i32, %c0_i32_0 : i32, i32
  }
  func.func @transform_2(%arg0: i32) -> (i32, i32) {
    %c0_i32 = arith.constant 0 : i32
    %c0_i32_0 = arith.constant 0 : i32
    %c0_i32_1 = arith.constant 0 : i32
    return %c0_i32, %c0_i32_0 : i32, i32
  }
  func.func @transform_3(%arg0: i32) -> (i32, i32, i32) {
    %c0_i32 = arith.constant 0 : i32
    %c0_i32_0 = arith.constant 0 : i32
    %c0_i32_1 = arith.constant 0 : i32
    %c0_i32_2 = arith.constant 0 : i32
    return %c0_i32, %c0_i32_0, %c0_i32_1 : i32, i32, i32
  }
  func.func @transform_4(%arg0: i32) -> (i32, i32) {
    %c0_i32 = arith.constant 0 : i32
    %c0_i32_0 = arith.constant 0 : i32
    %c0_i32_1 = arith.constant 0 : i32
    return %c0_i32, %c0_i32_0 : i32, i32
  }
  func.func @transform_5(%arg0: i32) -> (i32, i32, i32) {
    %c0_i32 = arith.constant 0 : i32
    %c0_i32_0 = arith.constant 0 : i32
    %c0_i32_1 = arith.constant 0 : i32
    %c0_i32_2 = arith.constant 0 : i32
    return %c0_i32, %c0_i32_0, %c0_i32_1 : i32, i32, i32
  }
  func.func @transform_6(%arg0: i32) -> (i32, i32) {
    %c0_i32 = arith.constant 0 : i32
    %c0_i32_0 = arith.constant 0 : i32
    %c0_i32_1 = arith.constant 0 : i32
    return %c0_i32, %c0_i32_0 : i32, i32
  }
  func.func @transform_7(%arg0: i32) -> (i32, i32, i32) {
    %c0_i32 = arith.constant 0 : i32
    %c0_i32_0 = arith.constant 0 : i32
    %c0_i32_1 = arith.constant 0 : i32
    %c0_i32_2 = arith.constant 0 : i32
    return %c0_i32, %c0_i32_0, %c0_i32_1 : i32, i32, i32
  }
  func.func @transform_8(%arg0: i32) -> (i32, i32) {
    %c0_i32 = arith.constant 0 : i32
    %c0_i32_0 = arith.constant 0 : i32
    %c0_i32_1 = arith.constant 0 : i32
    return %c0_i32, %c0_i32_0 : i32, i32
  }
  func.func @transform_9(%arg0: i32) -> (i32, i32) {
    %c0_i32 = arith.constant 0 : i32
    %c0_i32_0 = arith.constant 0 : i32
    %c0_i32_1 = arith.constant 0 : i32
    return %c0_i32, %c0_i32_0 : i32, i32
  }
  func.func @transform_10(%arg0: i32) -> (i32, i32) {
    %c0_i32 = arith.constant 0 : i32
    %c0_i32_0 = arith.constant 0 : i32
    %c0_i32_1 = arith.constant 0 : i32
    return %c0_i32, %c0_i32_0 : i32, i32
  }
  func.func @transform_11(%arg0: i32) -> (i32, i32) {
    %c0_i32 = arith.constant 0 : i32
    %c0_i32_0 = arith.constant 0 : i32
    %c0_i32_1 = arith.constant 0 : i32
    return %c0_i32, %c0_i32_0 : i32, i32
  }
  func.func @transform_12(%arg0: i32) -> (i32, i32) {
    %c0_i32 = arith.constant 0 : i32
    %c0_i32_0 = arith.constant 0 : i32
    %c0_i32_1 = arith.constant 0 : i32
    return %c0_i32, %c0_i32_0 : i32, i32
  }
  func.func @transform_13(%arg0: i32) -> (i32, i32) {
    %c0_i32 = arith.constant 0 : i32
    %c0_i32_0 = arith.constant 0 : i32
    %c0_i32_1 = arith.constant 0 : i32
    return %c0_i32, %c0_i32_0 : i32, i32
  }
  func.func @transform_14(%arg0: i32) -> (i32, i32, i32) {
    %c0_i32 = arith.constant 0 : i32
    %c0_i32_0 = arith.constant 0 : i32
    %c0_i32_1 = arith.constant 0 : i32
    %c0_i32_2 = arith.constant 0 : i32
    return %c0_i32, %c0_i32_0, %c0_i32_1 : i32, i32, i32
  }
  func.func @transform_15(%arg0: i32) -> (i32, i32) {
    %c0_i32 = arith.constant 0 : i32
    %c0_i32_0 = arith.constant 0 : i32
    %c0_i32_1 = arith.constant 0 : i32
    return %c0_i32, %c0_i32_0 : i32, i32
  }
  func.func @transform_16(%arg0: i32) -> (i32, i32, i32) {
    %c0_i32 = arith.constant 0 : i32
    %c0_i32_0 = arith.constant 0 : i32
    %c0_i32_1 = arith.constant 0 : i32
    %c0_i32_2 = arith.constant 0 : i32
    return %c0_i32, %c0_i32_0, %c0_i32_1 : i32, i32, i32
  }
  func.func @transform_17(%arg0: i32) -> (i32, i32) {
    %c0_i32 = arith.constant 0 : i32
    %c0_i32_0 = arith.constant 0 : i32
    %c0_i32_1 = arith.constant 0 : i32
    return %c0_i32, %c0_i32_0 : i32, i32
  }
  func.func @transform_18(%arg0: i32) -> (i32, i32) {
    %c0_i32 = arith.constant 0 : i32
    %c0_i32_0 = arith.constant 0 : i32
    %c0_i32_1 = arith.constant 0 : i32
    return %c0_i32, %c0_i32_0 : i32, i32
  }
  func.func @transform_19(%arg0: i32) -> (i32, i32) {
    %c0_i32 = arith.constant 0 : i32
    %c0_i32_0 = arith.constant 0 : i32
    %c0_i32_1 = arith.constant 0 : i32
    return %c0_i32, %c0_i32_0 : i32, i32
  }
  func.func @transform_20(%arg0: i32) -> (i32, i32) {
    %c0_i32 = arith.constant 0 : i32
    %c0_i32_0 = arith.constant 0 : i32
    %c0_i32_1 = arith.constant 0 : i32
    return %c0_i32, %c0_i32_0 : i32, i32
  }
  func.func @transform_21(%arg0: i32) -> (i32, i32) {
    %c0_i32 = arith.constant 0 : i32
    %c0_i32_0 = arith.constant 0 : i32
    %c0_i32_1 = arith.constant 0 : i32
    return %c0_i32, %c0_i32_0 : i32, i32
  }
  func.func @transform_22(%arg0: i32) -> (i32, i32) {
    %c0_i32 = arith.constant 0 : i32
    %c0_i32_0 = arith.constant 0 : i32
    %c0_i32_1 = arith.constant 0 : i32
    return %c0_i32, %c0_i32_0 : i32, i32
  }
  func.func @transform_23(%arg0: i32) -> (i32, i32, i32) {
    %c0_i32 = arith.constant 0 : i32
    %c0_i32_0 = arith.constant 0 : i32
    %c0_i32_1 = arith.constant 0 : i32
    %c0_i32_2 = arith.constant 0 : i32
    return %c0_i32, %c0_i32_0, %c0_i32_1 : i32, i32, i32
  }
  func.func @transform_24(%arg0: i32) -> (i32, i32) {
    %c0_i32 = arith.constant 0 : i32
    %c0_i32_0 = arith.constant 0 : i32
    %c0_i32_1 = arith.constant 0 : i32
    return %c0_i32, %c0_i32_0 : i32, i32
  }
  func.func @transform_25(%arg0: i32) -> (i32, i32, i32) {
    %c0_i32 = arith.constant 0 : i32
    %c0_i32_0 = arith.constant 0 : i32
    %c0_i32_1 = arith.constant 0 : i32
    %c0_i32_2 = arith.constant 0 : i32
    return %c0_i32, %c0_i32_0, %c0_i32_1 : i32, i32, i32
  }
  func.func @transform_26(%arg0: i32) -> (i32, i32) {
    %c0_i32 = arith.constant 0 : i32
    %c0_i32_0 = arith.constant 0 : i32
    %c0_i32_1 = arith.constant 0 : i32
    return %c0_i32, %c0_i32_0 : i32, i32
  }
  func.func @transform_27(%arg0: i32) -> (i32, i32) {
    %c0_i32 = arith.constant 0 : i32
    %c0_i32_0 = arith.constant 0 : i32
    %c0_i32_1 = arith.constant 0 : i32
    return %c0_i32, %c0_i32_0 : i32, i32
  }
  func.func @transform_28(%arg0: i32) -> (i32, i32) {
    %c0_i32 = arith.constant 0 : i32
    %c0_i32_0 = arith.constant 0 : i32
    %c0_i32_1 = arith.constant 0 : i32
    return %c0_i32, %c0_i32_0 : i32, i32
  }
  func.func @transform_29(%arg0: i32) -> (i32, i32) {
    %c0_i32 = arith.constant 0 : i32
    %c0_i32_0 = arith.constant 0 : i32
    %c0_i32_1 = arith.constant 0 : i32
    return %c0_i32, %c0_i32_0 : i32, i32
  }
  func.func @transform_30(%arg0: i32) -> (i32, i32) {
    %c0_i32 = arith.constant 0 : i32
    %c0_i32_0 = arith.constant 0 : i32
    %c0_i32_1 = arith.constant 0 : i32
    return %c0_i32, %c0_i32_0 : i32, i32
  }
  func.func @transform_31(%arg0: i32) -> (i32, i32) {
    %c0_i32 = arith.constant 0 : i32
    %c0_i32_0 = arith.constant 0 : i32
    %c0_i32_1 = arith.constant 0 : i32
    return %c0_i32, %c0_i32_0 : i32, i32
  }
  func.func @transform_32(%arg0: i32) -> (i32, i32, i32) {
    %c0_i32 = arith.constant 0 : i32
    %c0_i32_0 = arith.constant 0 : i32
    %c0_i32_1 = arith.constant 0 : i32
    return %arg0, %c0_i32, %c0_i32_0 : i32, i32, i32
  }
}

</mosaic_0001>

<llo_original>
// kernel: tpu_custom_call.1
$region0: #{tpu_custom_call.1}
  #allocation0 [shape = 'u32[]', space=smem, size = 0x4, offset = 0x4, fixed_abs, tag = 'smem constant byte address 0x4 - core index']
  #allocation1 [shape = 'u32[144,128]{1,0:T(1,128)}', space=vmem, size = 0x12000, scoped, tag = 'internal scratch']
  %s0 = inlined_call_operand.smem [shape: u32[33], index: -1, kind: input, shape index: {}]
  %s1 = sld [smem:[%s0]]
  %s2 = scalar_lea.smem %s0, 1
  %s3 = sld [smem:[%s2]]
  %s4 = scalar_lea.smem %s0, 2
  %s5 = sld [smem:[%s4]]
  %s6 = scalar_lea.smem %s0, 3
  %s7 = sld [smem:[%s6]]
  %s8 = scalar_lea.smem %s0, 4
  %s9 = sld [smem:[%s8]]
  %s10 = scalar_lea.smem %s0, 5
  %s11 = sld [smem:[%s10]]
  %s12 = scalar_lea.smem %s0, 6
  %s13 = sld [smem:[%s12]]
  %s14 = scalar_lea.smem %s0, 7
  %s15 = sld [smem:[%s14]]
  %s16 = scalar_lea.smem %s0, 8
  %s17 = sld [smem:[%s16]]
  %s18 = scalar_lea.smem %s0, 9
  %s19 = sld [smem:[%s18]]
  %s20 = scalar_lea.smem %s0, 10
  %s21 = sld [smem:[%s20]]
  %s22 = scalar_lea.smem %s0, 11
  %s23 = sld [smem:[%s22]]
  %s24 = scalar_lea.smem %s0, 12
  %s25 = sld [smem:[%s24]]
  %s26 = scalar_lea.smem %s0, 13
  %s27 = sld [smem:[%s26]]
  %s28 = scalar_lea.smem %s0, 14
  %s29 = sld [smem:[%s28]]
  %s30 = scalar_lea.smem %s0, 15
  %s31 = sld [smem:[%s30]]
  %s32 = scalar_lea.smem %s0, 16
  %s33 = sld [smem:[%s32]]
  %s34 = scalar_lea.smem %s0, 17
  %s35 = sld [smem:[%s34]]
  %s36 = scalar_lea.smem %s0, 18
  %s37 = sld [smem:[%s36]]
  %s38 = scalar_lea.smem %s0, 19
  %s39 = sld [smem:[%s38]]
  %s40 = scalar_lea.smem %s0, 20
  %s41 = sld [smem:[%s40]]
  %s42 = scalar_lea.smem %s0, 21
  %s43 = sld [smem:[%s42]]
  %s44 = scalar_lea.smem %s0, 22
  %s45 = sld [smem:[%s44]]
  %s46 = scalar_lea.smem %s0, 23
  %s47 = sld [smem:[%s46]]
  %s48 = scalar_lea.smem %s0, 24
  %s49 = sld [smem:[%s48]]
  %s50 = scalar_lea.smem %s0, 25
  %s51 = sld [smem:[%s50]]
  %s52 = scalar_lea.smem %s0, 26
  %s53 = sld [smem:[%s52]]
  %s54 = scalar_lea.smem %s0, 27
  %s55 = sld [smem:[%s54]]
  %s56 = scalar_lea.smem %s0, 28
  %s57 = sld [smem:[%s56]]
  %s58 = scalar_lea.smem %s0, 29
  %s59 = sld [smem:[%s58]]
  %s60 = scalar_lea.smem %s0, 30
  %s61 = sld [smem:[%s60]]
  %s62 = scalar_lea.smem %s0, 31
  %s63 = sld [smem:[%s62]]
  %s64 = scalar_lea.smem %s0, 32
  %s65 = sld [smem:[%s64]]
  %s66 = sld [smem:[#allocation0]]
  $region150: #{tpu_custom_call.1} parent=0
    _
  %s68 = ssub.s32 1, %s66
  %s69 = scalar_select 0, %s68, %s66
  $region1: #{tpu_custom_call.1} parent=0
    #allocation2 [shape = 'u8[12288]{0}', space=vmem, size = 0x3000, scoped, tag = 'input window, operand 1, single buffered']
    #allocation3 [shape = 's32[1]{0}', space=sflag, size = 0x4, scoped, tag = 'scoped memory for tpu_custom_call.1']
    #allocation4 [shape = 's32[1]{0}', space=sflag, size = 0x4, scoped, tag = 'scoped memory for tpu_custom_call.1']
    #allocation5 [shape = 'u8[8192]{0}', space=vmem, size = 0x2000, scoped, tag = 'input window, operand 8, single buffered']
    #allocation6 [shape = 's32[1]{0}', space=sflag, size = 0x4, scoped, tag = 'scoped memory for tpu_custom_call.1']
    #allocation7 [shape = 'u8[8192]{0}', space=vmem, size = 0x2000, scoped, tag = 'input window, operand 9, single buffered']
    #allocation8 [shape = 'u8[1024]{0}', space=vmem, size = 0x400, scoped, tag = 'output window, operand 0, single buffered']
    %70 = vsyncpa [#allocation3], 0
    %71 = vsyncpa [#allocation6], 0
    %72 = vsyncpa [#allocation4], 0
    // Predicated region
    $region2: #{tpu_custom_call.1} parent=1 // pred_check
      _
    $region3: #{tpu_custom_call.1} parent=1 // pred_check_branch
      %74 = sbr.rel (0) target = $region5
    $region4: #{tpu_custom_call.1} parent=1 // pred_region
      _
    $region5: #{tpu_custom_call.1} parent=1 // pred_fallthru
      _
    // Predicated region
    $region6: #{tpu_custom_call.1} parent=1 // pred_check
      _
    $region7: #{tpu_custom_call.1} parent=1 // pred_check_branch
      %76 = sbr.rel (0) target = $region9
    $region8: #{tpu_custom_call.1} parent=1 // pred_region
      %s78 = ssub.s32 384, 384
      %79 = vsyncadd [#allocation3], %s78
      %s80 = sshll.u32 [#allocation2], 4
      %s81 = int_to_ptr.vmem [resolvable:$true] %s80
      %86 = dma.hbm_to_vmem [thread:$0]  %s3, 384, %s81, [#allocation3], 128, 128, 8
    $region9: #{tpu_custom_call.1} parent=1 // pred_fallthru
      _
    // Predicated region
    $region10: #{tpu_custom_call.1} parent=1 // pred_check
      _
    $region11: #{tpu_custom_call.1} parent=1 // pred_check_branch
      %88 = sbr.rel (0) target = $region13
    $region12: #{tpu_custom_call.1} parent=1 // pred_region
      _
    $region13: #{tpu_custom_call.1} parent=1 // pred_fallthru
      _
    // Predicated region
    $region14: #{tpu_custom_call.1} parent=1 // pred_check
      _
    $region15: #{tpu_custom_call.1} parent=1 // pred_check_branch
      %90 = sbr.rel (0) target = $region17
    $region16: #{tpu_custom_call.1} parent=1 // pred_region
      _
    $region17: #{tpu_custom_call.1} parent=1 // pred_fallthru
      _
    // Predicated region
    $region18: #{tpu_custom_call.1} parent=1 // pred_check
      _
    $region19: #{tpu_custom_call.1} parent=1 // pred_check_branch
      %92 = sbr.rel (0) target = $region21
    $region20: #{tpu_custom_call.1} parent=1 // pred_region
      _
    $region21: #{tpu_custom_call.1} parent=1 // pred_fallthru
      _
    // Predicated region
    $region22: #{tpu_custom_call.1} parent=1 // pred_check
      _
    $region23: #{tpu_custom_call.1} parent=1 // pred_check_branch
      %94 = sbr.rel (0) target = $region25
    $region24: #{tpu_custom_call.1} parent=1 // pred_region
      _
    $region25: #{tpu_custom_call.1} parent=1 // pred_fallthru
      _
    // Predicated region
    $region26: #{tpu_custom_call.1} parent=1 // pred_check
      _
    $region27: #{tpu_custom_call.1} parent=1 // pred_check_branch
      %96 = sbr.rel (0) target = $region29
    $region28: #{tpu_custom_call.1} parent=1 // pred_region
      _
    $region29: #{tpu_custom_call.1} parent=1 // pred_fallthru
      _
    // Predicated region
    $region30: #{tpu_custom_call.1} parent=1 // pred_check
      _
    $region31: #{tpu_custom_call.1} parent=1 // pred_check_branch
      %98 = sbr.rel (0) target = $region33
    $region32: #{tpu_custom_call.1} parent=1 // pred_region
      _
    $region33: #{tpu_custom_call.1} parent=1 // pred_fallthru
      _
    // Predicated region
    $region34: #{tpu_custom_call.1} parent=1 // pred_check
      _
    $region35: #{tpu_custom_call.1} parent=1 // pred_check_branch
      %100 = sbr.rel (0) target = $region37
    $region36: #{tpu_custom_call.1} parent=1 // pred_region
      %s102 = ssub.s32 256, 256
      %103 = vsyncadd [#allocation6], %s102
      %s104 = sshll.u32 [#allocation5], 4
      %s105 = int_to_ptr.vmem [resolvable:$true] %s104
      %110 = dma.hbm_to_vmem [thread:$0]  %s17, 256, %s105, [#allocation6], 128, 128, 8
    $region37: #{tpu_custom_call.1} parent=1 // pred_fallthru
      _
    // Predicated region
    $region38: #{tpu_custom_call.1} parent=1 // pred_check
      _
    $region39: #{tpu_custom_call.1} parent=1 // pred_check_branch
      %112 = sbr.rel (0) target = $region41
    $region40: #{tpu_custom_call.1} parent=1 // pred_region
      %s114 = ssub.s32 256, 256
      %115 = vsyncadd [#allocation6], %s114
      %s116 = sshll.u32 [#allocation7], 4
      %s117 = int_to_ptr.vmem [resolvable:$true] %s116
      %122 = dma.hbm_to_vmem [thread:$0]  %s19, 256, %s117, [#allocation6], 128, 128, 8
    $region41: #{tpu_custom_call.1} parent=1 // pred_fallthru
      _
    // Predicated region
    $region42: #{tpu_custom_call.1} parent=1 // pred_check
      _
    $region43: #{tpu_custom_call.1} parent=1 // pred_check_branch
      %124 = sbr.rel (0) target = $region45
    $region44: #{tpu_custom_call.1} parent=1 // pred_region
      _
    $region45: #{tpu_custom_call.1} parent=1 // pred_fallthru
      _
    // Predicated region
    $region46: #{tpu_custom_call.1} parent=1 // pred_check
      _
    $region47: #{tpu_custom_call.1} parent=1 // pred_check_branch
      %126 = sbr.rel (0) target = $region49
    $region48: #{tpu_custom_call.1} parent=1 // pred_region
      _
    $region49: #{tpu_custom_call.1} parent=1 // pred_fallthru
      _
    // Predicated region
    $region50: #{tpu_custom_call.1} parent=1 // pred_check
      _
    $region51: #{tpu_custom_call.1} parent=1 // pred_check_branch
      %128 = sbr.rel (0) target = $region53
    $region52: #{tpu_custom_call.1} parent=1 // pred_region
      _
    $region53: #{tpu_custom_call.1} parent=1 // pred_fallthru
      _
    // Predicated region
    $region54: #{tpu_custom_call.1} parent=1 // pred_check
      _
    $region55: #{tpu_custom_call.1} parent=1 // pred_check_branch
      %130 = sbr.rel (0) target = $region57
    $region56: #{tpu_custom_call.1} parent=1 // pred_region
      _
    $region57: #{tpu_custom_call.1} parent=1 // pred_fallthru
      _
    // Predicated region
    $region58: #{tpu_custom_call.1} parent=1 // pred_check
      _
    $region59: #{tpu_custom_call.1} parent=1 // pred_check_branch
      %132 = sbr.rel (0) target = $region61
    $region60: #{tpu_custom_call.1} parent=1 // pred_region
      _
    $region61: #{tpu_custom_call.1} parent=1 // pred_fallthru
      _
    // Predicated region
    $region62: #{tpu_custom_call.1} parent=1 // pred_check
      _
    $region63: #{tpu_custom_call.1} parent=1 // pred_check_branch
      %134 = sbr.rel (0) target = $region65
    $region64: #{tpu_custom_call.1} parent=1 // pred_region
      _
    $region65: #{tpu_custom_call.1} parent=1 // pred_fallthru
      _
    // Predicated region
    $region66: #{tpu_custom_call.1} parent=1 // pred_check
      _
    $region67: #{tpu_custom_call.1} parent=1 // pred_check_branch
      %136 = sbr.rel (0) target = $region69
    $region68: #{tpu_custom_call.1} parent=1 // pred_region
      _
    $region69: #{tpu_custom_call.1} parent=1 // pred_fallthru
      _
    // Predicated region
    $region70: #{tpu_custom_call.1} parent=1 // pred_check
      _
    $region71: #{tpu_custom_call.1} parent=1 // pred_check_branch
      %138 = sbr.rel (0) target = $region73
    $region72: #{tpu_custom_call.1} parent=1 // pred_region
      _
    $region73: #{tpu_custom_call.1} parent=1 // pred_fallthru
      _
    // Predicated region
    $region74: #{tpu_custom_call.1} parent=1 // pred_check
      _
    $region75: #{tpu_custom_call.1} parent=1 // pred_check_branch
      %140 = sbr.rel (0) target = $region77
    $region76: #{tpu_custom_call.1} parent=1 // pred_region
      _
    $region77: #{tpu_custom_call.1} parent=1 // pred_fallthru
      _
    // Predicated region
    $region78: #{tpu_custom_call.1} parent=1 // pred_check
      _
    $region79: #{tpu_custom_call.1} parent=1 // pred_check_branch
      %142 = sbr.rel (0) target = $region81
    $region80: #{tpu_custom_call.1} parent=1 // pred_region
      _
    $region81: #{tpu_custom_call.1} parent=1 // pred_fallthru
      _
    // Predicated region
    $region82: #{tpu_custom_call.1} parent=1 // pred_check
      _
    $region83: #{tpu_custom_call.1} parent=1 // pred_check_branch
      %144 = sbr.rel (0) target = $region85
    $region84: #{tpu_custom_call.1} parent=1 // pred_region
      _
    $region85: #{tpu_custom_call.1} parent=1 // pred_fallthru
      _
    // Predicated region
    $region86: #{tpu_custom_call.1} parent=1 // pred_check
      _
    $region87: #{tpu_custom_call.1} parent=1 // pred_check_branch
      %146 = sbr.rel (0) target = $region89
    $region88: #{tpu_custom_call.1} parent=1 // pred_region
      _
    $region89: #{tpu_custom_call.1} parent=1 // pred_fallthru
      _
    // Predicated region
    $region90: #{tpu_custom_call.1} parent=1 // pred_check
      _
    $region91: #{tpu_custom_call.1} parent=1 // pred_check_branch
      %148 = sbr.rel (0) target = $region93
    $region92: #{tpu_custom_call.1} parent=1 // pred_region
      _
    $region93: #{tpu_custom_call.1} parent=1 // pred_fallthru
      _
    // Predicated region
    $region94: #{tpu_custom_call.1} parent=1 // pred_check
      _
    $region95: #{tpu_custom_call.1} parent=1 // pred_check_branch
      %150 = sbr.rel (0) target = $region97
    $region96: #{tpu_custom_call.1} parent=1 // pred_region
      _
    $region97: #{tpu_custom_call.1} parent=1 // pred_fallthru
      _
    // Predicated region
    $region98: #{tpu_custom_call.1} parent=1 // pred_check
      _
    $region99: #{tpu_custom_call.1} parent=1 // pred_check_branch
      %152 = sbr.rel (0) target = $region101
    $region100: #{tpu_custom_call.1} parent=1 // pred_region
      _
    $region101: #{tpu_custom_call.1} parent=1 // pred_fallthru
      _
    // Predicated region
    $region102: #{tpu_custom_call.1} parent=1 // pred_check
      _
    $region103: #{tpu_custom_call.1} parent=1 // pred_check_branch
      %154 = sbr.rel (0) target = $region105
    $region104: #{tpu_custom_call.1} parent=1 // pred_region
      _
    $region105: #{tpu_custom_call.1} parent=1 // pred_fallthru
      _
    // Predicated region
    $region106: #{tpu_custom_call.1} parent=1 // pred_check
      _
    $region107: #{tpu_custom_call.1} parent=1 // pred_check_branch
      %156 = sbr.rel (0) target = $region109
    $region108: #{tpu_custom_call.1} parent=1 // pred_region
      _
    $region109: #{tpu_custom_call.1} parent=1 // pred_fallthru
      _
    // Predicated region
    $region110: #{tpu_custom_call.1} parent=1 // pred_check
      _
    $region111: #{tpu_custom_call.1} parent=1 // pred_check_branch
      %158 = sbr.rel (0) target = $region113
    $region112: #{tpu_custom_call.1} parent=1 // pred_region
      _
    $region113: #{tpu_custom_call.1} parent=1 // pred_fallthru
      _
    // Predicated region
    $region114: #{tpu_custom_call.1} parent=1 // pred_check
      _
    $region115: #{tpu_custom_call.1} parent=1 // pred_check_branch
      %160 = sbr.rel (0) target = $region117
    $region116: #{tpu_custom_call.1} parent=1 // pred_region
      _
    $region117: #{tpu_custom_call.1} parent=1 // pred_fallthru
      _
    // Predicated region
    $region118: #{tpu_custom_call.1} parent=1 // pred_check
      _
    $region119: #{tpu_custom_call.1} parent=1 // pred_check_branch
      %162 = sbr.rel (0) target = $region121
    $region120: #{tpu_custom_call.1} parent=1 // pred_region
      _
    $region121: #{tpu_custom_call.1} parent=1 // pred_fallthru
      _
    // Predicated region
    $region122: #{tpu_custom_call.1} parent=1 // pred_check
      _
    $region123: #{tpu_custom_call.1} parent=1 // pred_check_branch
      %164 = sbr.rel (0) target = $region125
    $region124: #{tpu_custom_call.1} parent=1 // pred_region
      _
    $region125: #{tpu_custom_call.1} parent=1 // pred_fallthru
      _
    // Predicated region
    $region126: #{tpu_custom_call.1} parent=1 // pred_check
      _
    $region127: #{tpu_custom_call.1} parent=1 // pred_check_branch
      %166 = sbr.rel (0) target = $region129
    $region128: #{tpu_custom_call.1} parent=1 // pred_region
      _
    $region129: #{tpu_custom_call.1} parent=1 // pred_fallthru
      _
    // Predicated region
    $region130: #{tpu_custom_call.1} parent=1 // pred_check
      _
    $region131: #{tpu_custom_call.1} parent=1 // pred_check_branch
      %168 = sbr.rel (0) target = $region133
    $region132: #{tpu_custom_call.1} parent=1 // pred_region
      %169 = dma.done [#allocation3], 384
    $region133: #{tpu_custom_call.1} parent=1 // pred_fallthru
      _
    // Predicated region
    $region134: #{tpu_custom_call.1} parent=1 // pred_check
      _
    $region135: #{tpu_custom_call.1} parent=1 // pred_check_branch
      %171 = sbr.rel (0) target = $region137
    $region136: #{tpu_custom_call.1} parent=1 // pred_region
      %172 = dma.done [#allocation6], 256
    $region137: #{tpu_custom_call.1} parent=1 // pred_fallthru
      _
    // Predicated region
    $region138: #{tpu_custom_call.1} parent=1 // pred_check
      _
    $region139: #{tpu_custom_call.1} parent=1 // pred_check_branch
      %174 = sbr.rel (0) target = $region141
    $region140: #{tpu_custom_call.1} parent=1 // pred_region
      %175 = dma.done [#allocation6], 256
    $region141: #{tpu_custom_call.1} parent=1 // pred_fallthru
      _
    %v176 = vld [vmem:[%s1] sm:$0xff]
    %v177 = vld [vmem:[%s1 + $0x8] sm:$0xff]
    %v178 = vld [vmem:[%s1 + $0x10] sm:$0xff]
    %v179 = vld [vmem:[%s1 + $0x18] sm:$0xff]
    %v180 = vld [vmem:[%s1 + $0x20] sm:$0xff]
    %v181 = vld [vmem:[%s1 + $0x28] sm:$0xff]
    %v182 = vld [vmem:[%s1 + $0x30] sm:$0xff]
    %v183 = vld [vmem:[%s1 + $0x38] sm:$0xff]
    %v184 = vld [vmem:[%s1 + $0x40] sm:$0xff]
    %v185 = vld [vmem:[%s1 + $0x48] sm:$0xff]
    %v186 = vld [vmem:[%s1 + $0x50] sm:$0xff]
    %v187 = vld [vmem:[%s1 + $0x58] sm:$0xff]
    %v188 = vld [vmem:[%s1 + $0x60] sm:$0xff]
    %v189 = vld [vmem:[%s1 + $0x68] sm:$0xff]
    %v190 = vld [vmem:[%s1 + $0x70] sm:$0xff]
    %v191 = vld [vmem:[%s1 + $0x78] sm:$0xff]
    %v192 = vld [vmem:[#allocation2] sm:$0x1]
    %v193 = vld [vmem:[%s7] sm:$0xff]
    %v194 = vld [vmem:[%s7 + $0x8] sm:$0xff]
    %v195 = vld [vmem:[%s7 + $0x10] sm:$0xff]
    %v196 = vld [vmem:[%s7 + $0x18] sm:$0xff]
    %v197 = vld [vmem:[%s7 + $0x20] sm:$0xff]
    %v198 = vld [vmem:[%s7 + $0x28] sm:$0xff]
    %v199 = vld [vmem:[%s7 + $0x30] sm:$0xff]
    %v200 = vld [vmem:[%s7 + $0x38] sm:$0xff]
    %v201 = vld [vmem:[%s7 + $0x40] sm:$0xf]
    %202 = vmatprep.subr.mxu0 0.0
    %203 = vmatpush1.msra.mxu0 %v176
    %204 = vmatprep.subr.mxu0 0.0
    %205 = vmatpush1.msra.mxu0 %v177
    %206 = vmatprep.subr.mxu0 0.0
    %207 = vmatpush1.msra.mxu0 %v178
    %208 = vmatprep.subr.mxu0 0.0
    %209 = vmatpush1.msra.mxu0 %v179
    %210 = vmatprep.subr.mxu0 0.0
    %211 = vmatpush1.msra.mxu0 %v180
    %212 = vmatprep.subr.mxu0 0.0
    %213 = vmatpush1.msra.mxu0 %v181
    %214 = vmatprep.subr.mxu0 0.0
    %215 = vmatpush1.msra.mxu0 %v182
    %216 = vmatprep.subr.mxu0 0.0
    %217 = vmatpush1.msra.mxu0 %v183
    %218 = vmatprep.subr.mxu0 0.0
    %219 = vmatpush1.msra.mxu0 %v184
    %220 = vmatprep.subr.mxu0 0.0
    %221 = vmatpush1.msra.mxu0 %v185
    %222 = vmatprep.subr.mxu0 0.0
    %223 = vmatpush1.msra.mxu0 %v186
    %224 = vmatprep.subr.mxu0 0.0
    %225 = vmatpush1.msra.mxu0 %v187
    %226 = vmatprep.subr.mxu0 0.0
    %227 = vmatpush1.msra.mxu0 %v188
    %228 = vmatprep.subr.mxu0 0.0
    %229 = vmatpush1.msra.mxu0 %v189
    %230 = vmatprep.subr.mxu0 0.0
    %231 = vmatpush1.msra.mxu0 %v190
    %232 = vmatprep.subr.mxu0 0.0
    %233 = vmatpush1.msra.mxu0 %v191
    %234 = vmatprep.subr.mxu0 0.0
    %235 = vmatpush1.msra.mxu0 0.0
    %236 = vmatprep.subr.mxu0 0.0
    %237 = vmatpush1.msra.mxu0 0.0
    %238 = vmatprep.subr.mxu0 0.0
    %239 = vmatpush1.msra.mxu0 0.0
    %240 = vmatprep.subr.mxu0 0.0
    %241 = vmatpush1.msra.mxu0 0.0
    %242 = vmatprep.subr.mxu0 0.0
    %243 = vmatpush1.msra.mxu0 0.0
    %244 = vmatprep.subr.mxu0 0.0
    %245 = vmatpush1.msra.mxu0 0.0
    %246 = vmatprep.subr.mxu0 0.0
    %247 = vmatpush1.msra.mxu0 0.0
    %248 = vmatprep.subr.mxu0 0.0
    %249 = vmatpush1.msra.mxu0 0.0
    %250 = vmatprep.subr.mxu0 0.0
    %251 = vmatpush1.msra.mxu0 0.0
    %252 = vmatprep.subr.mxu0 0.0
    %253 = vmatpush1.msra.mxu0 0.0
    %254 = vmatprep.subr.mxu0 0.0
    %255 = vmatpush1.msra.mxu0 0.0
    %256 = vmatprep.subr.mxu0 0.0
    %257 = vmatpush1.msra.mxu0 0.0
    %258 = vmatprep.subr.mxu0 0.0
    %259 = vmatpush1.msra.mxu0 0.0
    %260 = vmatprep.subr.mxu0 0.0
    %261 = vmatpush1.msra.mxu0 0.0
    %262 = vmatprep.subr.mxu0 0.0
    %263 = vmatpush1.msra.mxu0 0.0
    %264 = vmatprep.subr.mxu0 0.0
    %265 = vmatpush1.msra.mxu0 0.0
    %266 = vmatprep.mubr.f32.mxu0 0.0
    %267 = vmatmul.mubr.f32.gmra.mrb[0].mxu0 %v193
    %v268 = vpop.f32.mrb[0].mxu0
    %v269 = vadd.f32 0.0, %v268
    %v270 = vpop.f32.mrb[0].mxu0
    %271 = vmatprep.mubr.f32.mxu0 0.0
    %272 = vmatmul.mubr.f32.gmra.mrb[0].mxu0 %v194
    %v273 = vpop.f32.mrb[0].mxu0
    %v274 = vadd.f32 0.0, %v273
    %v275 = vpop.f32.mrb[0].mxu0
    %276 = vmatprep.mubr.f32.mxu0 0.0
    %277 = vmatmul.mubr.f32.gmra.mrb[0].mxu0 %v195
    %v278 = vpop.f32.mrb[0].mxu0
    %v279 = vadd.f32 0.0, %v278
    %v280 = vpop.f32.mrb[0].mxu0
    %281 = vmatprep.mubr.f32.mxu0 0.0
    %282 = vmatmul.mubr.f32.gmra.mrb[0].mxu0 %v196
    %v283 = vpop.f32.mrb[0].mxu0
    %v284 = vadd.f32 0.0, %v283
    %v285 = vpop.f32.mrb[0].mxu0
    %286 = vmatprep.mubr.f32.mxu0 0.0
    %287 = vmatmul.mubr.f32.gmra.mrb[0].mxu0 %v197
    %v288 = vpop.f32.mrb[0].mxu0
    %v289 = vadd.f32 0.0, %v288
    %v290 = vpop.f32.mrb[0].mxu0
    %291 = vmatprep.mubr.f32.mxu0 0.0
    %292 = vmatmul.mubr.f32.gmra.mrb[0].mxu0 %v198
    %v293 = vpop.f32.mrb[0].mxu0
    %v294 = vadd.f32 0.0, %v293
    %v295 = vpop.f32.mrb[0].mxu0
    %296 = vmatprep.mubr.f32.mxu0 0.0
    %297 = vmatmul.mubr.f32.gmra.mrb[0].mxu0 %v199
    %v298 = vpop.f32.mrb[0].mxu0
    %v299 = vadd.f32 0.0, %v298
    %v300 = vpop.f32.mrb[0].mxu0
    %301 = vmatprep.mubr.f32.mxu0 0.0
    %302 = vmatmul.mubr.f32.gmra.mrb[0].mxu0 %v200
    %v303 = vpop.f32.mrb[0].mxu0
    %v304 = vadd.f32 0.0, %v303
    %v305 = vpop.f32.mrb[0].mxu0
    %306 = vmatprep.mubr.f32.mxu0 0.0
    %307 = vmatmul.mubr.f32.gmra.mrb[0].mxu0 %v201
    %v308 = vpop.f32.mrb[0].mxu0
    %v309 = vadd.f32 0.0, %v308
    %v310 = vpop.f32.mrb[0].mxu0
    %311 = vdwg.mxu0
    %s312 = scalar_lea.vmem %s7, 72
    %v313 = vld [vmem:[%s312] sm:$0xff]
    %v314 = vld [vmem:[%s312 + $0x8] sm:$0xff]
    %v315 = vld [vmem:[%s312 + $0x10] sm:$0xff]
    %v316 = vld [vmem:[%s312 + $0x18] sm:$0xff]
    %v317 = vld [vmem:[%s312 + $0x20] sm:$0xff]
    %v318 = vld [vmem:[%s312 + $0x28] sm:$0xff]
    %v319 = vld [vmem:[%s312 + $0x30] sm:$0xff]
    %v320 = vld [vmem:[%s312 + $0x38] sm:$0xff]
    %v321 = vld [vmem:[%s312 + $0x40] sm:$0xf]
    %322 = vmatprep.subr.mxu0 0.0
    %323 = vmatpush1.msra.mxu0 %v176
    %324 = vmatprep.subr.mxu0 0.0
    %325 = vmatpush1.msra.mxu0 %v177
    %326 = vmatprep.subr.mxu0 0.0
    %327 = vmatpush1.msra.mxu0 %v178
    %328 = vmatprep.subr.mxu0 0.0
    %329 = vmatpush1.msra.mxu0 %v179
    %330 = vmatprep.subr.mxu0 0.0
    %331 = vmatpush1.msra.mxu0 %v180
    %332 = vmatprep.subr.mxu0 0.0
    %333 = vmatpush1.msra.mxu0 %v181
    %334 = vmatprep.subr.mxu0 0.0
    %335 = vmatpush1.msra.mxu0 %v182
    %336 = vmatprep.subr.mxu0 0.0
    %337 = vmatpush1.msra.mxu0 %v183
    %338 = vmatprep.subr.mxu0 0.0
    %339 = vmatpush1.msra.mxu0 %v184
    %340 = vmatprep.subr.mxu0 0.0
    %341 = vmatpush1.msra.mxu0 %v185
    %342 = vmatprep.subr.mxu0 0.0
    %343 = vmatpush1.msra.mxu0 %v186
    %344 = vmatprep.subr.mxu0 0.0
    %345 = vmatpush1.msra.mxu0 %v187
    %346 = vmatprep.subr.mxu0 0.0
    %347 = vmatpush1.msra.mxu0 %v188
    %348 = vmatprep.subr.mxu0 0.0
    %349 = vmatpush1.msra.mxu0 %v189
    %350 = vmatprep.subr.mxu0 0.0
    %351 = vmatpush1.msra.mxu0 %v190
    %352 = vmatprep.subr.mxu0 0.0
    %353 = vmatpush1.msra.mxu0 %v191
    %354 = vmatprep.subr.mxu0 0.0
    %355 = vmatpush1.msra.mxu0 0.0
    %356 = vmatprep.subr.mxu0 0.0
    %357 = vmatpush1.msra.mxu0 0.0
    %358 = vmatprep.subr.mxu0 0.0
    %359 = vmatpush1.msra.mxu0 0.0
    %360 = vmatprep.subr.mxu0 0.0
    %361 = vmatpush1.msra.mxu0 0.0
    %362 = vmatprep.subr.mxu0 0.0
    %363 = vmatpush1.msra.mxu0 0.0
    %364 = vmatprep.subr.mxu0 0.0
    %365 = vmatpush1.msra.mxu0 0.0
    %366 = vmatprep.subr.mxu0 0.0
    %367 = vmatpush1.msra.mxu0 0.0
    %368 = vmatprep.subr.mxu0 0.0
    %369 = vmatpush1.msra.mxu0 0.0
    %370 = vmatprep.subr.mxu0 0.0
    %371 = vmatpush1.msra.mxu0 0.0
    %372 = vmatprep.subr.mxu0 0.0
    %373 = vmatpush1.msra.mxu0 0.0
    %374 = vmatprep.subr.mxu0 0.0
    %375 = vmatpush1.msra.mxu0 0.0
    %376 = vmatprep.subr.mxu0 0.0
    %377 = vmatpush1.msra.mxu0 0.0
    %378 = vmatprep.subr.mxu0 0.0
    %379 = vmatpush1.msra.mxu0 0.0
    %380 = vmatprep.subr.mxu0 0.0
    %381 = vmatpush1.msra.mxu0 0.0
    %382 = vmatprep.subr.mxu0 0.0
    %383 = vmatpush1.msra.mxu0 0.0
    %384 = vmatprep.subr.mxu0 0.0
    %385 = vmatpush1.msra.mxu0 0.0
    %386 = vmatprep.mubr.f32.mxu0 0.0
    %387 = vmatmul.mubr.f32.gmra.mrb[0].mxu0 %v313
    %v388 = vpop.f32.mrb[0].mxu0
    %v389 = vadd.f32 0.0, %v388
    %v390 = vpop.f32.mrb[0].mxu0
    %391 = vmatprep.mubr.f32.mxu0 0.0
    %392 = vmatmul.mubr.f32.gmra.mrb[0].mxu0 %v314
    %v393 = vpop.f32.mrb[0].mxu0
    %v394 = vadd.f32 0.0, %v393
    %v395 = vpop.f32.mrb[0].mxu0
    %396 = vmatprep.mubr.f32.mxu0 0.0
    %397 = vmatmul.mubr.f32.gmra.mrb[0].mxu0 %v315
    %v398 = vpop.f32.mrb[0].mxu0
    %v399 = vadd.f32 0.0, %v398
    %v400 = vpop.f32.mrb[0].mxu0
    %401 = vmatprep.mubr.f32.mxu0 0.0
    %402 = vmatmul.mubr.f32.gmra.mrb[0].mxu0 %v316
    %v403 = vpop.f32.mrb[0].mxu0
    %v404 = vadd.f32 0.0, %v403
    %v405 = vpop.f32.mrb[0].mxu0
    %406 = vmatprep.mubr.f32.mxu0 0.0
    %407 = vmatmul.mubr.f32.gmra.mrb[0].mxu0 %v317
    %v408 = vpop.f32.mrb[0].mxu0
    %v409 = vadd.f32 0.0, %v408
    %v410 = vpop.f32.mrb[0].mxu0
    %411 = vmatprep.mubr.f32.mxu0 0.0
    %412 = vmatmul.mubr.f32.gmra.mrb[0].mxu0 %v318
    %v413 = vpop.f32.mrb[0].mxu0
    %v414 = vadd.f32 0.0, %v413
    %v415 = vpop.f32.mrb[0].mxu0
    %416 = vmatprep.mubr.f32.mxu0 0.0
    %417 = vmatmul.mubr.f32.gmra.mrb[0].mxu0 %v319
    %v418 = vpop.f32.mrb[0].mxu0
    %v419 = vadd.f32 0.0, %v418
    %v420 = vpop.f32.mrb[0].mxu0
    %421 = vmatprep.mubr.f32.mxu0 0.0
    %422 = vmatmul.mubr.f32.gmra.mrb[0].mxu0 %v320
    %v423 = vpop.f32.mrb[0].mxu0
    %v424 = vadd.f32 0.0, %v423
    %v425 = vpop.f32.mrb[0].mxu0
    %426 = vmatprep.mubr.f32.mxu0 0.0
    %427 = vmatmul.mubr.f32.gmra.mrb[0].mxu0 %v321
    %v428 = vpop.f32.mrb[0].mxu0
    %v429 = vadd.f32 0.0, %v428
    %v430 = vpop.f32.mrb[0].mxu0
    %431 = vdwg.mxu0
    %s432 = scalar_lea.vmem %s7, 144
    %v433 = vld [vmem:[%s432] sm:$0xff]
    %v434 = vld [vmem:[%s432 + $0x8] sm:$0xff]
    %v435 = vld [vmem:[%s432 + $0x10] sm:$0xff]
    %v436 = vld [vmem:[%s432 + $0x18] sm:$0xff]
    %v437 = vld [vmem:[%s432 + $0x20] sm:$0xff]
    %v438 = vld [vmem:[%s432 + $0x28] sm:$0xff]
    %v439 = vld [vmem:[%s432 + $0x30] sm:$0xff]
    %v440 = vld [vmem:[%s432 + $0x38] sm:$0xff]
    %v441 = vld [vmem:[%s432 + $0x40] sm:$0xf]
    %442 = vmatprep.subr.mxu0 0.0
    %443 = vmatpush1.msra.mxu0 %v176
    %444 = vmatprep.subr.mxu0 0.0
    %445 = vmatpush1.msra.mxu0 %v177
    %446 = vmatprep.subr.mxu0 0.0
    %447 = vmatpush1.msra.mxu0 %v178
    %448 = vmatprep.subr.mxu0 0.0
    %449 = vmatpush1.msra.mxu0 %v179
    %450 = vmatprep.subr.mxu0 0.0
    %451 = vmatpush1.msra.mxu0 %v180
    %452 = vmatprep.subr.mxu0 0.0
    %453 = vmatpush1.msra.mxu0 %v181
    %454 = vmatprep.subr.mxu0 0.0
    %455 = vmatpush1.msra.mxu0 %v182
    %456 = vmatprep.subr.mxu0 0.0
    %457 = vmatpush1.msra.mxu0 %v183
    %458 = vmatprep.subr.mxu0 0.0
    %459 = vmatpush1.msra.mxu0 %v184
    %460 = vmatprep.subr.mxu0 0.0
    %461 = vmatpush1.msra.mxu0 %v185
    %462 = vmatprep.subr.mxu0 0.0
    %463 = vmatpush1.msra.mxu0 %v186
    %464 = vmatprep.subr.mxu0 0.0
    %465 = vmatpush1.msra.mxu0 %v187
    %466 = vmatprep.subr.mxu0 0.0
    %467 = vmatpush1.msra.mxu0 %v188
    %468 = vmatprep.subr.mxu0 0.0
    %469 = vmatpush1.msra.mxu0 %v189
    %470 = vmatprep.subr.mxu0 0.0
    %471 = vmatpush1.msra.mxu0 %v190
    %472 = vmatprep.subr.mxu0 0.0
    %473 = vmatpush1.msra.mxu0 %v191
    %474 = vmatprep.subr.mxu0 0.0
    %475 = vmatpush1.msra.mxu0 0.0
    %476 = vmatprep.subr.mxu0 0.0
    %477 = vmatpush1.msra.mxu0 0.0
    %478 = vmatprep.subr.mxu0 0.0
    %479 = vmatpush1.msra.mxu0 0.0
    %480 = vmatprep.subr.mxu0 0.0
    %481 = vmatpush1.msra.mxu0 0.0
    %482 = vmatprep.subr.mxu0 0.0
    %483 = vmatpush1.msra.mxu0 0.0
    %484 = vmatprep.subr.mxu0 0.0
    %485 = vmatpush1.msra.mxu0 0.0
    %486 = vmatprep.subr.mxu0 0.0
    %487 = vmatpush1.msra.mxu0 0.0
    %488 = vmatprep.subr.mxu0 0.0
    %489 = vmatpush1.msra.mxu0 0.0
    %490 = vmatprep.subr.mxu0 0.0
    %491 = vmatpush1.msra.mxu0 0.0
    %492 = vmatprep.subr.mxu0 0.0
    %493 = vmatpush1.msra.mxu0 0.0
    %494 = vmatprep.subr.mxu0 0.0
    %495 = vmatpush1.msra.mxu0 0.0
    %496 = vmatprep.subr.mxu0 0.0
    %497 = vmatpush1.msra.mxu0 0.0
    %498 = vmatprep.subr.mxu0 0.0
    %499 = vmatpush1.msra.mxu0 0.0
    %500 = vmatprep.subr.mxu0 0.0
    %501 = vmatpush1.msra.mxu0 0.0
    %502 = vmatprep.subr.mxu0 0.0
    %503 = vmatpush1.msra.mxu0 0.0
    %504 = vmatprep.subr.mxu0 0.0
    %505 = vmatpush1.msra.mxu0 0.0
    %506 = vmatprep.mubr.f32.mxu0 0.0
    %507 = vmatmul.mubr.f32.gmra.mrb[0].mxu0 %v433
    %v508 = vpop.f32.mrb[0].mxu0
    %v509 = vadd.f32 0.0, %v508
    %v510 = vpop.f32.mrb[0].mxu0
    %511 = vmatprep.mubr.f32.mxu0 0.0
    %512 = vmatmul.mubr.f32.gmra.mrb[0].mxu0 %v434
    %v513 = vpop.f32.mrb[0].mxu0
    %v514 = vadd.f32 0.0, %v513
    %v515 = vpop.f32.mrb[0].mxu0
    %516 = vmatprep.mubr.f32.mxu0 0.0
    %517 = vmatmul.mubr.f32.gmra.mrb[0].mxu0 %v435
    %v518 = vpop.f32.mrb[0].mxu0
    %v519 = vadd.f32 0.0, %v518
    %v520 = vpop.f32.mrb[0].mxu0
    %521 = vmatprep.mubr.f32.mxu0 0.0
    %522 = vmatmul.mubr.f32.gmra.mrb[0].mxu0 %v436
    %v523 = vpop.f32.mrb[0].mxu0
    %v524 = vadd.f32 0.0, %v523
    %v525 = vpop.f32.mrb[0].mxu0
    %526 = vmatprep.mubr.f32.mxu0 0.0
    %527 = vmatmul.mubr.f32.gmra.mrb[0].mxu0 %v437
    %v528 = vpop.f32.mrb[0].mxu0
    %v529 = vadd.f32 0.0, %v528
    %v530 = vpop.f32.mrb[0].mxu0
    %531 = vmatprep.mubr.f32.mxu0 0.0
    %532 = vmatmul.mubr.f32.gmra.mrb[0].mxu0 %v438
    %v533 = vpop.f32.mrb[0].mxu0
    %v534 = vadd.f32 0.0, %v533
    %v535 = vpop.f32.mrb[0].mxu0
    %536 = vmatprep.mubr.f32.mxu0 0.0
    %537 = vmatmul.mubr.f32.gmra.mrb[0].mxu0 %v439
    %v538 = vpop.f32.mrb[0].mxu0
    %v539 = vadd.f32 0.0, %v538
    %v540 = vpop.f32.mrb[0].mxu0
    %541 = vmatprep.mubr.f32.mxu0 0.0
    %542 = vmatmul.mubr.f32.gmra.mrb[0].mxu0 %v440
    %v543 = vpop.f32.mrb[0].mxu0
    %v544 = vadd.f32 0.0, %v543
    %v545 = vpop.f32.mrb[0].mxu0
    %546 = vmatprep.mubr.f32.mxu0 0.0
    %547 = vmatmul.mubr.f32.gmra.mrb[0].mxu0 %v441
    %v548 = vpop.f32.mrb[0].mxu0
    %v549 = vadd.f32 0.0, %v548
    %v550 = vpop.f32.mrb[0].mxu0
    %551 = vdwg.mxu0
    %561 = vrot.lane.b32.xlu0 %v389, 1
    %v562 = vpop.permute.xlu0 %561
    %563 = vrot.lane.b32.xlu0 %v394, 1
    %v564 = vpop.permute.xlu0 %563
    %565 = vrot.lane.b32.xlu0 %v399, 1
    %v566 = vpop.permute.xlu0 %565
    %567 = vrot.lane.b32.xlu0 %v404, 1
    %v568 = vpop.permute.xlu0 %567
    %569 = vrot.lane.b32.xlu0 %v409, 1
    %v570 = vpop.permute.xlu0 %569
    %571 = vrot.lane.b32.xlu0 %v414, 1
    %v572 = vpop.permute.xlu0 %571
    %573 = vrot.lane.b32.xlu0 %v419, 1
    %v574 = vpop.permute.xlu0 %573
    %575 = vrot.lane.b32.xlu0 %v424, 1
    %v576 = vpop.permute.xlu0 %575
    %577 = vrot.lane.b32.xlu0 %v429, 1
    %v578 = vpop.permute.xlu0 %577
    %597 = vrot.lane.b32.xlu0 %v509, 2
    %v598 = vpop.permute.xlu0 %597
    %599 = vrot.lane.b32.xlu0 %v514, 2
    %v600 = vpop.permute.xlu0 %599
    %601 = vrot.lane.b32.xlu0 %v519, 2
    %v602 = vpop.permute.xlu0 %601
    %603 = vrot.lane.b32.xlu0 %v524, 2
    %v604 = vpop.permute.xlu0 %603
    %605 = vrot.lane.b32.xlu0 %v529, 2
    %v606 = vpop.permute.xlu0 %605
    %607 = vrot.lane.b32.xlu0 %v534, 2
    %v608 = vpop.permute.xlu0 %607
    %609 = vrot.lane.b32.xlu0 %v539, 2
    %v610 = vpop.permute.xlu0 %609
    %611 = vrot.lane.b32.xlu0 %v544, 2
    %v612 = vpop.permute.xlu0 %611
    %613 = vrot.lane.b32.xlu0 %v549, 2
    %v614 = vpop.permute.xlu0 %613
    %vm624 = vcmask 7168
    %v625 = vsel %vm624, %v269, %v562
    %v626 = vsel %vm624, %v274, %v564
    %v627 = vsel %vm624, %v279, %v566
    %v628 = vsel %vm624, %v284, %v568
    %v629 = vsel %vm624, %v289, %v570
    %v630 = vsel %vm624, %v294, %v572
    %v631 = vsel %vm624, %v299, %v574
    %v632 = vsel %vm624, %v304, %v576
    %v633 = vsel %vm624, %v309, %v578
    %vm634 = vcmask 15360
    %v635 = vsel %vm634, %v625, %v598
    %v636 = vsel %vm634, %v626, %v600
    %v637 = vsel %vm634, %v627, %v602
    %v638 = vsel %vm634, %v628, %v604
    %v639 = vsel %vm634, %v629, %v606
    %v640 = vsel %vm634, %v630, %v608
    %v641 = vsel %vm634, %v631, %v610
    %v642 = vsel %vm634, %v632, %v612
    %v643 = vsel %vm634, %v633, %v614
    %v644 = vld [vmem:[%s5] sm:$0x7]
    %v645 = vlaneseq
    %v646 = vshrl.u32 %v645, 7
    %v647 = vsub.s32 0, %v646
    %v648 = vrot.slane %v192, %v647
    %vm649 = vcmask 23552
    %v651 = vsel %vm649, %v635, 0
    %v654 = vsel %vm649, %v636, 0
    %v657 = vsel %vm649, %v637, 0
    %v660 = vsel %vm649, %v638, 0
    %v663 = vsel %vm649, %v639, 0
    %v666 = vsel %vm649, %v640, 0
    %v669 = vsel %vm649, %v641, 0
    %v672 = vsel %vm649, %v642, 0
    %v675 = vsel %vm649, %v643, 0
    %vm677 = vcmask 1042432
    %v679 = vsel %vm677, %v644, 0
    %681 = vmatprep.subr.mxu0 0.0
    %682 = vmatpush1.msra.mxu0 %v679
    %683 = vmatprep.subr.mxu0 0.0
    %684 = vmatpush1.msra.mxu0 0.0
    %685 = vmatprep.subr.mxu0 0.0
    %686 = vmatpush1.msra.mxu0 0.0
    %687 = vmatprep.subr.mxu0 0.0
    %688 = vmatpush1.msra.mxu0 0.0
    %689 = vmatprep.subr.mxu0 0.0
    %690 = vmatpush1.msra.mxu0 0.0
    %691 = vmatprep.subr.mxu0 0.0
    %692 = vmatpush1.msra.mxu0 0.0
    %693 = vmatprep.subr.mxu0 0.0
    %694 = vmatpush1.msra.mxu0 0.0
    %695 = vmatprep.subr.mxu0 0.0
    %696 = vmatpush1.msra.mxu0 0.0
    %697 = vmatprep.subr.mxu0 0.0
    %698 = vmatpush1.msra.mxu0 0.0
    %699 = vmatprep.subr.mxu0 0.0
    %700 = vmatpush1.msra.mxu0 0.0
    %701 = vmatprep.subr.mxu0 0.0
    %702 = vmatpush1.msra.mxu0 0.0
    %703 = vmatprep.subr.mxu0 0.0
    %704 = vmatpush1.msra.mxu0 0.0
    %705 = vmatprep.subr.mxu0 0.0
    %706 = vmatpush1.msra.mxu0 0.0
    %707 = vmatprep.subr.mxu0 0.0
    %708 = vmatpush1.msra.mxu0 0.0
    %709 = vmatprep.subr.mxu0 0.0
    %710 = vmatpush1.msra.mxu0 0.0
    %711 = vmatprep.subr.mxu0 0.0
    %712 = vmatpush1.msra.mxu0 0.0
    %713 = vmatprep.subr.mxu0 0.0
    %714 = vmatpush1.msra.mxu0 0.0
    %715 = vmatprep.subr.mxu0 0.0
    %716 = vmatpush1.msra.mxu0 0.0
    %717 = vmatprep.subr.mxu0 0.0
    %718 = vmatpush1.msra.mxu0 0.0
    %719 = vmatprep.subr.mxu0 0.0
    %720 = vmatpush1.msra.mxu0 0.0
    %721 = vmatprep.subr.mxu0 0.0
    %722 = vmatpush1.msra.mxu0 0.0
    %723 = vmatprep.subr.mxu0 0.0
    %724 = vmatpush1.msra.mxu0 0.0
    %725 = vmatprep.subr.mxu0 0.0
    %726 = vmatpush1.msra.mxu0 0.0
    %727 = vmatprep.subr.mxu0 0.0
    %728 = vmatpush1.msra.mxu0 0.0
    %729 = vmatprep.subr.mxu0 0.0
    %730 = vmatpush1.msra.mxu0 0.0
    %731 = vmatprep.subr.mxu0 0.0
    %732 = vmatpush1.msra.mxu0 0.0
    %733 = vmatprep.subr.mxu0 0.0
    %734 = vmatpush1.msra.mxu0 0.0
    %735 = vmatprep.subr.mxu0 0.0
    %736 = vmatpush1.msra.mxu0 0.0
    %737 = vmatprep.subr.mxu0 0.0
    %738 = vmatpush1.msra.mxu0 0.0
    %739 = vmatprep.subr.mxu0 0.0
    %740 = vmatpush1.msra.mxu0 0.0
    %741 = vmatprep.subr.mxu0 0.0
    %742 = vmatpush1.msra.mxu0 0.0
    %743 = vmatprep.subr.mxu0 0.0
    %744 = vmatpush1.msra.mxu0 0.0
    %745 = vmatprep.mubr.f32.mxu0 0.0
    %746 = vmatmul.mubr.f32.gmra.mrb[0].mxu0 %v651
    %v747 = vpop.f32.mrb[0].mxu0
    %v748 = vadd.f32 %v648, %v747
    %v749 = vpop.f32.mrb[0].mxu0
    %750 = vmatprep.mubr.f32.mxu0 0.0
    %751 = vmatmul.mubr.f32.gmra.mrb[0].mxu0 %v654
    %v752 = vpop.f32.mrb[0].mxu0
    %v753 = vadd.f32 %v648, %v752
    %v754 = vpop.f32.mrb[0].mxu0
    %755 = vmatprep.mubr.f32.mxu0 0.0
    %756 = vmatmul.mubr.f32.gmra.mrb[0].mxu0 %v657
    %v757 = vpop.f32.mrb[0].mxu0
    %v758 = vadd.f32 %v648, %v757
    %v759 = vpop.f32.mrb[0].mxu0
    %760 = vmatprep.mubr.f32.mxu0 0.0
    %761 = vmatmul.mubr.f32.gmra.mrb[0].mxu0 %v660
    %v762 = vpop.f32.mrb[0].mxu0
    %v763 = vadd.f32 %v648, %v762
    %v764 = vpop.f32.mrb[0].mxu0
    %765 = vmatprep.mubr.f32.mxu0 0.0
    %766 = vmatmul.mubr.f32.gmra.mrb[0].mxu0 %v663
    %v767 = vpop.f32.mrb[0].mxu0
    %v768 = vadd.f32 %v648, %v767
    %v769 = vpop.f32.mrb[0].mxu0
    %770 = vmatprep.mubr.f32.mxu0 0.0
    %771 = vmatmul.mubr.f32.gmra.mrb[0].mxu0 %v666
    %v772 = vpop.f32.mrb[0].mxu0
    %v773 = vadd.f32 %v648, %v772
    %v774 = vpop.f32.mrb[0].mxu0
    %775 = vmatprep.mubr.f32.mxu0 0.0
    %776 = vmatmul.mubr.f32.gmra.mrb[0].mxu0 %v669
    %v777 = vpop.f32.mrb[0].mxu0
    %v778 = vadd.f32 %v648, %v777
    %v779 = vpop.f32.mrb[0].mxu0
    %780 = vmatprep.mubr.f32.mxu0 0.0
    %781 = vmatmul.mubr.f32.gmra.mrb[0].mxu0 %v672
    %v782 = vpop.f32.mrb[0].mxu0
    %v783 = vadd.f32 %v648, %v782
    %v784 = vpop.f32.mrb[0].mxu0
    %785 = vmatprep.mubr.f32.mxu0 0.0
    %786 = vmatmul.mubr.f32.gmra.mrb[0].mxu0 %v675
    %v787 = vpop.f32.mrb[0].mxu0
    %v788 = vadd.f32 %v648, %v787
    %v789 = vpop.f32.mrb[0].mxu0
    %790 = vdwg.mxu0
    %v791 = vmax.f32 %v748, 0.0
    %v792 = vmax.f32 %v753, 0.0
    %v793 = vmax.f32 %v758, 0.0
    %v794 = vmax.f32 %v763, 0.0
    %v795 = vmax.f32 %v768, 0.0
    %v796 = vmax.f32 %v773, 0.0
    %v797 = vmax.f32 %v778, 0.0
    %v798 = vmax.f32 %v783, 0.0
    %v799 = vmax.f32 %v788, 0.0
    %v800 = vld [vmem:[#allocation2 + $0x1] sm:$0x1]
    %v801 = vld [vmem:[%s11] sm:$0xff]
    %v802 = vld [vmem:[%s11 + $0x8] sm:$0xff]
    %v803 = vld [vmem:[%s11 + $0x10] sm:$0xff]
    %v804 = vld [vmem:[%s11 + $0x18] sm:$0xff]
    %v805 = vld [vmem:[%s11 + $0x20] sm:$0x3]
    %vm806 = vcmask 556032
    %v808 = vsel %vm806, %v801, 0
    %v811 = vsel %vm806, %v802, 0
    %v814 = vsel %vm806, %v803, 0
    %v817 = vsel %vm806, %v804, 0
    %v820 = vsel %vm806, %v805, 0
    %vm822 = vcmask 1043456
    %v824 = vsel %vm822, %v799, 0
    %826 = vmatprep.subr.mxu0 0.0
    %827 = vmatpush1.msra.mxu0 %v791
    %828 = vmatprep.subr.mxu0 0.0
    %829 = vmatpush1.msra.mxu0 %v792
    %830 = vmatprep.subr.mxu0 0.0
    %831 = vmatpush1.msra.mxu0 %v793
    %832 = vmatprep.subr.mxu0 0.0
    %833 = vmatpush1.msra.mxu0 %v794
    %834 = vmatprep.subr.mxu0 0.0
    %835 = vmatpush1.msra.mxu0 %v795
    %836 = vmatprep.subr.mxu0 0.0
    %837 = vmatpush1.msra.mxu0 %v796
    %838 = vmatprep.subr.mxu0 0.0
    %839 = vmatpush1.msra.mxu0 %v797
    %840 = vmatprep.subr.mxu0 0.0
    %841 = vmatpush1.msra.mxu0 %v798
    %842 = vmatprep.subr.mxu0 0.0
    %843 = vmatpush1.msra.mxu0 %v824
    %844 = vmatprep.subr.mxu0 0.0
    %845 = vmatpush1.msra.mxu0 0.0
    %846 = vmatprep.subr.mxu0 0.0
    %847 = vmatpush1.msra.mxu0 0.0
    %848 = vmatprep.subr.mxu0 0.0
    %849 = vmatpush1.msra.mxu0 0.0
    %850 = vmatprep.subr.mxu0 0.0
    %851 = vmatpush1.msra.mxu0 0.0
    %852 = vmatprep.subr.mxu0 0.0
    %853 = vmatpush1.msra.mxu0 0.0
    %854 = vmatprep.subr.mxu0 0.0
    %855 = vmatpush1.msra.mxu0 0.0
    %856 = vmatprep.subr.mxu0 0.0
    %857 = vmatpush1.msra.mxu0 0.0
    %858 = vmatprep.subr.mxu0 0.0
    %859 = vmatpush1.msra.mxu0 0.0
    %860 = vmatprep.subr.mxu0 0.0
    %861 = vmatpush1.msra.mxu0 0.0
    %862 = vmatprep.subr.mxu0 0.0
    %863 = vmatpush1.msra.mxu0 0.0
    %864 = vmatprep.subr.mxu0 0.0
    %865 = vmatpush1.msra.mxu0 0.0
    %866 = vmatprep.subr.mxu0 0.0
    %867 = vmatpush1.msra.mxu0 0.0
    %868 = vmatprep.subr.mxu0 0.0
    %869 = vmatpush1.msra.mxu0 0.0
    %870 = vmatprep.subr.mxu0 0.0
    %871 = vmatpush1.msra.mxu0 0.0
    %872 = vmatprep.subr.mxu0 0.0
    %873 = vmatpush1.msra.mxu0 0.0
    %874 = vmatprep.subr.mxu0 0.0
    %875 = vmatpush1.msra.mxu0 0.0
    %876 = vmatprep.subr.mxu0 0.0
    %877 = vmatpush1.msra.mxu0 0.0
    %878 = vmatprep.subr.mxu0 0.0
    %879 = vmatpush1.msra.mxu0 0.0
    %880 = vmatprep.subr.mxu0 0.0
    %881 = vmatpush1.msra.mxu0 0.0
    %882 = vmatprep.subr.mxu0 0.0
    %883 = vmatpush1.msra.mxu0 0.0
    %884 = vmatprep.subr.mxu0 0.0
    %885 = vmatpush1.msra.mxu0 0.0
    %886 = vmatprep.subr.mxu0 0.0
    %887 = vmatpush1.msra.mxu0 0.0
    %888 = vmatprep.subr.mxu0 0.0
    %889 = vmatpush1.msra.mxu0 0.0
    %890 = vmatprep.mubr.f32.mxu0 0.0
    %891 = vmatmul.mubr.f32.gmra.mrb[0].mxu0 %v808
    %v892 = vpop.f32.mrb[0].mxu0
    %v893 = vadd.f32 0.0, %v892
    %v894 = vpop.f32.mrb[0].mxu0
    %895 = vmatprep.mubr.f32.mxu0 0.0
    %896 = vmatmul.mubr.f32.gmra.mrb[0].mxu0 %v811
    %v897 = vpop.f32.mrb[0].mxu0
    %v898 = vadd.f32 0.0, %v897
    %v899 = vpop.f32.mrb[0].mxu0
    %900 = vmatprep.mubr.f32.mxu0 0.0
    %901 = vmatmul.mubr.f32.gmra.mrb[0].mxu0 %v814
    %v902 = vpop.f32.mrb[0].mxu0
    %v903 = vadd.f32 0.0, %v902
    %v904 = vpop.f32.mrb[0].mxu0
    %905 = vmatprep.mubr.f32.mxu0 0.0
    %906 = vmatmul.mubr.f32.gmra.mrb[0].mxu0 %v817
    %v907 = vpop.f32.mrb[0].mxu0
    %v908 = vadd.f32 0.0, %v907
    %v909 = vpop.f32.mrb[0].mxu0
    %910 = vmatprep.mubr.f32.mxu0 0.0
    %911 = vmatmul.mubr.f32.gmra.mrb[0].mxu0 %v820
    %v912 = vpop.f32.mrb[0].mxu0
    %v913 = vadd.f32 0.0, %v912
    %v914 = vpop.f32.mrb[0].mxu0
    %915 = vdwg.mxu0
    %s916 = scalar_lea.vmem %s11, 40
    %v917 = vld [vmem:[%s916] sm:$0xff]
    %v918 = vld [vmem:[%s916 + $0x8] sm:$0xff]
    %v919 = vld [vmem:[%s916 + $0x10] sm:$0xff]
    %v920 = vld [vmem:[%s916 + $0x18] sm:$0xff]
    %v921 = vld [vmem:[%s916 + $0x20] sm:$0x3]
    %v923 = vsel %vm806, %v917, 0
    %v926 = vsel %vm806, %v918, 0
    %v929 = vsel %vm806, %v919, 0
    %v932 = vsel %vm806, %v920, 0
    %v935 = vsel %vm806, %v921, 0
    %937 = vmatprep.subr.mxu0 0.0
    %938 = vmatpush1.msra.mxu0 %v791
    %939 = vmatprep.subr.mxu0 0.0
    %940 = vmatpush1.msra.mxu0 %v792
    %941 = vmatprep.subr.mxu0 0.0
    %942 = vmatpush1.msra.mxu0 %v793
    %943 = vmatprep.subr.mxu0 0.0
    %944 = vmatpush1.msra.mxu0 %v794
    %945 = vmatprep.subr.mxu0 0.0
    %946 = vmatpush1.msra.mxu0 %v795
    %947 = vmatprep.subr.mxu0 0.0
    %948 = vmatpush1.msra.mxu0 %v796
    %949 = vmatprep.subr.mxu0 0.0
    %950 = vmatpush1.msra.mxu0 %v797
    %951 = vmatprep.subr.mxu0 0.0
    %952 = vmatpush1.msra.mxu0 %v798
    %953 = vmatprep.subr.mxu0 0.0
    %954 = vmatpush1.msra.mxu0 %v824
    %955 = vmatprep.subr.mxu0 0.0
    %956 = vmatpush1.msra.mxu0 0.0
    %957 = vmatprep.subr.mxu0 0.0
    %958 = vmatpush1.msra.mxu0 0.0
    %959 = vmatprep.subr.mxu0 0.0
    %960 = vmatpush1.msra.mxu0 0.0
    %961 = vmatprep.subr.mxu0 0.0
    %962 = vmatpush1.msra.mxu0 0.0
    %963 = vmatprep.subr.mxu0 0.0
    %964 = vmatpush1.msra.mxu0 0.0
    %965 = vmatprep.subr.mxu0 0.0
    %966 = vmatpush1.msra.mxu0 0.0
    %967 = vmatprep.subr.mxu0 0.0
    %968 = vmatpush1.msra.mxu0 0.0
    %969 = vmatprep.subr.mxu0 0.0
    %970 = vmatpush1.msra.mxu0 0.0
    %971 = vmatprep.subr.mxu0 0.0
    %972 = vmatpush1.msra.mxu0 0.0
    %973 = vmatprep.subr.mxu0 0.0
    %974 = vmatpush1.msra.mxu0 0.0
    %975 = vmatprep.subr.mxu0 0.0
    %976 = vmatpush1.msra.mxu0 0.0
    %977 = vmatprep.subr.mxu0 0.0
    %978 = vmatpush1.msra.mxu0 0.0
    %979 = vmatprep.subr.mxu0 0.0
    %980 = vmatpush1.msra.mxu0 0.0
    %981 = vmatprep.subr.mxu0 0.0
    %982 = vmatpush1.msra.mxu0 0.0
    %983 = vmatprep.subr.mxu0 0.0
    %984 = vmatpush1.msra.mxu0 0.0
    %985 = vmatprep.subr.mxu0 0.0
    %986 = vmatpush1.msra.mxu0 0.0
    %987 = vmatprep.subr.mxu0 0.0
    %988 = vmatpush1.msra.mxu0 0.0
    %989 = vmatprep.subr.mxu0 0.0
    %990 = vmatpush1.msra.mxu0 0.0
    %991 = vmatprep.subr.mxu0 0.0
    %992 = vmatpush1.msra.mxu0 0.0
    %993 = vmatprep.subr.mxu0 0.0
    %994 = vmatpush1.msra.mxu0 0.0
    %995 = vmatprep.subr.mxu0 0.0
    %996 = vmatpush1.msra.mxu0 0.0
    %997 = vmatprep.subr.mxu0 0.0
    %998 = vmatpush1.msra.mxu0 0.0
    %999 = vmatprep.subr.mxu0 0.0
    %1000 = vmatpush1.msra.mxu0 0.0
    %1001 = vmatprep.mubr.f32.mxu0 0.0
    %1002 = vmatmul.mubr.f32.gmra.mrb[0].mxu0 %v923
    %v1003 = vpop.f32.mrb[0].mxu0
    %v1004 = vadd.f32 0.0, %v1003
    %v1005 = vpop.f32.mrb[0].mxu0
    %1006 = vmatprep.mubr.f32.mxu0 0.0
    %1007 = vmatmul.mubr.f32.gmra.mrb[0].mxu0 %v926
    %v1008 = vpop.f32.mrb[0].mxu0
    %v1009 = vadd.f32 0.0, %v1008
    %v1010 = vpop.f32.mrb[0].mxu0
    %1011 = vmatprep.mubr.f32.mxu0 0.0
    %1012 = vmatmul.mubr.f32.gmra.mrb[0].mxu0 %v929
    %v1013 = vpop.f32.mrb[0].mxu0
    %v1014 = vadd.f32 0.0, %v1013
    %v1015 = vpop.f32.mrb[0].mxu0
    %1016 = vmatprep.mubr.f32.mxu0 0.0
    %1017 = vmatmul.mubr.f32.gmra.mrb[0].mxu0 %v932
    %v1018 = vpop.f32.mrb[0].mxu0
    %v1019 = vadd.f32 0.0, %v1018
    %v1020 = vpop.f32.mrb[0].mxu0
    %1021 = vmatprep.mubr.f32.mxu0 0.0
    %1022 = vmatmul.mubr.f32.gmra.mrb[0].mxu0 %v935
    %v1023 = vpop.f32.mrb[0].mxu0
    %v1024 = vadd.f32 0.0, %v1023
    %v1025 = vpop.f32.mrb[0].mxu0
    %1026 = vdwg.mxu0
    %s1027 = scalar_lea.vmem %s11, 80
    %v1028 = vld [vmem:[%s1027] sm:$0xff]
    %v1029 = vld [vmem:[%s1027 + $0x8] sm:$0xff]
    %v1030 = vld [vmem:[%s1027 + $0x10] sm:$0xff]
    %v1031 = vld [vmem:[%s1027 + $0x18] sm:$0xff]
    %v1032 = vld [vmem:[%s1027 + $0x20] sm:$0x3]
    %v1034 = vsel %vm806, %v1028, 0
    %v1037 = vsel %vm806, %v1029, 0
    %v1040 = vsel %vm806, %v1030, 0
    %v1043 = vsel %vm806, %v1031, 0
    %v1046 = vsel %vm806, %v1032, 0
    %1048 = vmatprep.subr.mxu0 0.0
    %1049 = vmatpush1.msra.mxu0 %v791
    %1050 = vmatprep.subr.mxu0 0.0
    %1051 = vmatpush1.msra.mxu0 %v792
    %1052 = vmatprep.subr.mxu0 0.0
    %1053 = vmatpush1.msra.mxu0 %v793
    %1054 = vmatprep.subr.mxu0 0.0
    %1055 = vmatpush1.msra.mxu0 %v794
    %1056 = vmatprep.subr.mxu0 0.0
    %1057 = vmatpush1.msra.mxu0 %v795
    %1058 = vmatprep.subr.mxu0 0.0
    %1059 = vmatpush1.msra.mxu0 %v796
    %1060 = vmatprep.subr.mxu0 0.0
    %1061 = vmatpush1.msra.mxu0 %v797
    %1062 = vmatprep.subr.mxu0 0.0
    %1063 = vmatpush1.msra.mxu0 %v798
    %1064 = vmatprep.subr.mxu0 0.0
    %1065 = vmatpush1.msra.mxu0 %v824
    %1066 = vmatprep.subr.mxu0 0.0
    %1067 = vmatpush1.msra.mxu0 0.0
    %1068 = vmatprep.subr.mxu0 0.0
    %1069 = vmatpush1.msra.mxu0 0.0
    %1070 = vmatprep.subr.mxu0 0.0
    %1071 = vmatpush1.msra.mxu0 0.0
    %1072 = vmatprep.subr.mxu0 0.0
    %1073 = vmatpush1.msra.mxu0 0.0
    %1074 = vmatprep.subr.mxu0 0.0
    %1075 = vmatpush1.msra.mxu0 0.0
    %1076 = vmatprep.subr.mxu0 0.0
    %1077 = vmatpush1.msra.mxu0 0.0
    %1078 = vmatprep.subr.mxu0 0.0
    %1079 = vmatpush1.msra.mxu0 0.0
    %1080 = vmatprep.subr.mxu0 0.0
    %1081 = vmatpush1.msra.mxu0 0.0
    %1082 = vmatprep.subr.mxu0 0.0
    %1083 = vmatpush1.msra.mxu0 0.0
    %1084 = vmatprep.subr.mxu0 0.0
    %1085 = vmatpush1.msra.mxu0 0.0
    %1086 = vmatprep.subr.mxu0 0.0
    %1087 = vmatpush1.msra.mxu0 0.0
    %1088 = vmatprep.subr.mxu0 0.0
    %1089 = vmatpush1.msra.mxu0 0.0
    %1090 = vmatprep.subr.mxu0 0.0
    %1091 = vmatpush1.msra.mxu0 0.0
    %1092 = vmatprep.subr.mxu0 0.0
    %1093 = vmatpush1.msra.mxu0 0.0
    %1094 = vmatprep.subr.mxu0 0.0
    %1095 = vmatpush1.msra.mxu0 0.0
    %1096 = vmatprep.subr.mxu0 0.0
    %1097 = vmatpush1.msra.mxu0 0.0
    %1098 = vmatprep.subr.mxu0 0.0
    %1099 = vmatpush1.msra.mxu0 0.0
    %1100 = vmatprep.subr.mxu0 0.0
    %1101 = vmatpush1.msra.mxu0 0.0
    %1102 = vmatprep.subr.mxu0 0.0
    %1103 = vmatpush1.msra.mxu0 0.0
    %1104 = vmatprep.subr.mxu0 0.0
    %1105 = vmatpush1.msra.mxu0 0.0
    %1106 = vmatprep.subr.mxu0 0.0
    %1107 = vmatpush1.msra.mxu0 0.0
    %1108 = vmatprep.subr.mxu0 0.0
    %1109 = vmatpush1.msra.mxu0 0.0
    %1110 = vmatprep.subr.mxu0 0.0
    %1111 = vmatpush1.msra.mxu0 0.0
    %1112 = vmatprep.mubr.f32.mxu0 0.0
    %1113 = vmatmul.mubr.f32.gmra.mrb[0].mxu0 %v1034
    %v1114 = vpop.f32.mrb[0].mxu0
    %v1115 = vadd.f32 0.0, %v1114
    %v1116 = vpop.f32.mrb[0].mxu0
    %1117 = vmatprep.mubr.f32.mxu0 0.0
    %1118 = vmatmul.mubr.f32.gmra.mrb[0].mxu0 %v1037
    %v1119 = vpop.f32.mrb[0].mxu0
    %v1120 = vadd.f32 0.0, %v1119
    %v1121 = vpop.f32.mrb[0].mxu0
    %1122 = vmatprep.mubr.f32.mxu0 0.0
    %1123 = vmatmul.mubr.f32.gmra.mrb[0].mxu0 %v1040
    %v1124 = vpop.f32.mrb[0].mxu0
    %v1125 = vadd.f32 0.0, %v1124
    %v1126 = vpop.f32.mrb[0].mxu0
    %1127 = vmatprep.mubr.f32.mxu0 0.0
    %1128 = vmatmul.mubr.f32.gmra.mrb[0].mxu0 %v1043
    %v1129 = vpop.f32.mrb[0].mxu0
    %v1130 = vadd.f32 0.0, %v1129
    %v1131 = vpop.f32.mrb[0].mxu0
    %1132 = vmatprep.mubr.f32.mxu0 0.0
    %1133 = vmatmul.mubr.f32.gmra.mrb[0].mxu0 %v1046
    %v1134 = vpop.f32.mrb[0].mxu0
    %v1135 = vadd.f32 0.0, %v1134
    %v1136 = vpop.f32.mrb[0].mxu0
    %1137 = vdwg.mxu0
    %1143 = vrot.lane.b32.xlu0 %v1004, 16
    %v1144 = vpop.permute.xlu0 %1143
    %1145 = vrot.lane.b32.xlu0 %v1009, 16
    %v1146 = vpop.permute.xlu0 %1145
    %1147 = vrot.lane.b32.xlu0 %v1014, 16
    %v1148 = vpop.permute.xlu0 %1147
    %1149 = vrot.lane.b32.xlu0 %v1019, 16
    %v1150 = vpop.permute.xlu0 %1149
    %1151 = vrot.lane.b32.xlu0 %v1024, 16
    %v1152 = vpop.permute.xlu0 %1151
    %1163 = vrot.lane.b32.xlu0 %v1115, 32
    %v1164 = vpop.permute.xlu0 %1163
    %1165 = vrot.lane.b32.xlu0 %v1120, 32
    %v1166 = vpop.permute.xlu0 %1165
    %1167 = vrot.lane.b32.xlu0 %v1125, 32
    %v1168 = vpop.permute.xlu0 %1167
    %1169 = vrot.lane.b32.xlu0 %v1130, 32
    %v1170 = vpop.permute.xlu0 %1169
    %1171 = vrot.lane.b32.xlu0 %v1135, 32
    %v1172 = vpop.permute.xlu0 %1171
    %vm1178 = vcmask 130048
    %v1179 = vsel %vm1178, %v893, %v1144
    %v1180 = vsel %vm1178, %v898, %v1146
    %v1181 = vsel %vm1178, %v903, %v1148
    %v1182 = vsel %vm1178, %v908, %v1150
    %v1183 = vsel %vm1178, %v913, %v1152
    %vm1184 = vcmask 261120
    %v1185 = vsel %vm1184, %v1179, %v1164
    %v1186 = vsel %vm1184, %v1180, %v1166
    %v1187 = vsel %vm1184, %v1181, %v1168
    %v1188 = vsel %vm1184, %v1182, %v1170
    %v1189 = vsel %vm1184, %v1183, %v1172
    %v1190 = vld [vmem:[%s9] sm:$0xff]
    %v1191 = vld [vmem:[%s9 + $0x8] sm:$0xff]
    %v1192 = vld [vmem:[%s9 + $0x10] sm:$0xff]
    %v1193 = vld [vmem:[%s9 + $0x18] sm:$0xff]
    %v1194 = vld [vmem:[%s9 + $0x20] sm:$0xff]
    %v1195 = vld [vmem:[%s9 + $0x28] sm:$0xff]
    %v1196 = vlaneseq
    %v1197 = vshrl.u32 %v1196, 7
    %v1198 = vsub.s32 0, %v1197
    %v1199 = vrot.slane %v800, %v1198
    %vm1200 = vcmask 392192
    %v1202 = vsel %vm1200, %v1185, 0
    %v1205 = vsel %vm1200, %v1186, 0
    %v1208 = vsel %vm1200, %v1187, 0
    %v1211 = vsel %vm1200, %v1188, 0
    %v1214 = vsel %vm1200, %v1189, 0
    %1216 = vmatprep.subr.mxu0 0.0
    %1217 = vmatpush1.msra.mxu0 %v1190
    %1218 = vmatprep.subr.mxu0 0.0
    %1219 = vmatpush1.msra.mxu0 %v1191
    %1220 = vmatprep.subr.mxu0 0.0
    %1221 = vmatpush1.msra.mxu0 %v1192
    %1222 = vmatprep.subr.mxu0 0.0
    %1223 = vmatpush1.msra.mxu0 %v1193
    %1224 = vmatprep.subr.mxu0 0.0
    %1225 = vmatpush1.msra.mxu0 %v1194
    %1226 = vmatprep.subr.mxu0 0.0
    %1227 = vmatpush1.msra.mxu0 %v1195
    %1228 = vmatprep.subr.mxu0 0.0
    %1229 = vmatpush1.msra.mxu0 0.0
    %1230 = vmatprep.subr.mxu0 0.0
    %1231 = vmatpush1.msra.mxu0 0.0
    %1232 = vmatprep.subr.mxu0 0.0
    %1233 = vmatpush1.msra.mxu0 0.0
    %1234 = vmatprep.subr.mxu0 0.0
    %1235 = vmatpush1.msra.mxu0 0.0
    %1236 = vmatprep.subr.mxu0 0.0
    %1237 = vmatpush1.msra.mxu0 0.0
    %1238 = vmatprep.subr.mxu0 0.0
    %1239 = vmatpush1.msra.mxu0 0.0
    %1240 = vmatprep.subr.mxu0 0.0
    %1241 = vmatpush1.msra.mxu0 0.0
    %1242 = vmatprep.subr.mxu0 0.0
    %1243 = vmatpush1.msra.mxu0 0.0
    %1244 = vmatprep.subr.mxu0 0.0
    %1245 = vmatpush1.msra.mxu0 0.0
    %1246 = vmatprep.subr.mxu0 0.0
    %1247 = vmatpush1.msra.mxu0 0.0
    %1248 = vmatprep.subr.mxu0 0.0
    %1249 = vmatpush1.msra.mxu0 0.0
    %1250 = vmatprep.subr.mxu0 0.0
    %1251 = vmatpush1.msra.mxu0 0.0
    %1252 = vmatprep.subr.mxu0 0.0
    %1253 = vmatpush1.msra.mxu0 0.0
    %1254 = vmatprep.subr.mxu0 0.0
    %1255 = vmatpush1.msra.mxu0 0.0
    %1256 = vmatprep.subr.mxu0 0.0
    %1257 = vmatpush1.msra.mxu0 0.0
    %1258 = vmatprep.subr.mxu0 0.0
    %1259 = vmatpush1.msra.mxu0 0.0
    %1260 = vmatprep.subr.mxu0 0.0
    %1261 = vmatpush1.msra.mxu0 0.0
    %1262 = vmatprep.subr.mxu0 0.0
    %1263 = vmatpush1.msra.mxu0 0.0
    %1264 = vmatprep.subr.mxu0 0.0
    %1265 = vmatpush1.msra.mxu0 0.0
    %1266 = vmatprep.subr.mxu0 0.0
    %1267 = vmatpush1.msra.mxu0 0.0
    %1268 = vmatprep.subr.mxu0 0.0
    %1269 = vmatpush1.msra.mxu0 0.0
    %1270 = vmatprep.subr.mxu0 0.0
    %1271 = vmatpush1.msra.mxu0 0.0
    %1272 = vmatprep.subr.mxu0 0.0
    %1273 = vmatpush1.msra.mxu0 0.0
    %1274 = vmatprep.subr.mxu0 0.0
    %1275 = vmatpush1.msra.mxu0 0.0
    %1276 = vmatprep.subr.mxu0 0.0
    %1277 = vmatpush1.msra.mxu0 0.0
    %1278 = vmatprep.subr.mxu0 0.0
    %1279 = vmatpush1.msra.mxu0 0.0
    %1280 = vmatprep.mubr.f32.mxu0 0.0
    %1281 = vmatmul.mubr.f32.gmra.mrb[0].mxu0 %v1202
    %v1282 = vpop.f32.mrb[0].mxu0
    %v1283 = vadd.f32 %v1199, %v1282
    %v1284 = vpop.f32.mrb[0].mxu0
    %1285 = vmatprep.mubr.f32.mxu0 0.0
    %1286 = vmatmul.mubr.f32.gmra.mrb[0].mxu0 %v1205
    %v1287 = vpop.f32.mrb[0].mxu0
    %v1288 = vadd.f32 %v1199, %v1287
    %v1289 = vpop.f32.mrb[0].mxu0
    %1290 = vmatprep.mubr.f32.mxu0 0.0
    %1291 = vmatmul.mubr.f32.gmra.mrb[0].mxu0 %v1208
    %v1292 = vpop.f32.mrb[0].mxu0
    %v1293 = vadd.f32 %v1199, %v1292
    %v1294 = vpop.f32.mrb[0].mxu0
    %1295 = vmatprep.mubr.f32.mxu0 0.0
    %1296 = vmatmul.mubr.f32.gmra.mrb[0].mxu0 %v1211
    %v1297 = vpop.f32.mrb[0].mxu0
    %v1298 = vadd.f32 %v1199, %v1297
    %v1299 = vpop.f32.mrb[0].mxu0
    %1300 = vmatprep.mubr.f32.mxu0 0.0
    %1301 = vmatmul.mubr.f32.gmra.mrb[0].mxu0 %v1214
    %v1302 = vpop.f32.mrb[0].mxu0
    %v1303 = vadd.f32 %v1199, %v1302
    %v1304 = vpop.f32.mrb[0].mxu0
    %1305 = vdwg.mxu0
    %v1306 = vmax.f32 %v1283, 0.0
    %v1307 = vmax.f32 %v1288, 0.0
    %v1308 = vmax.f32 %v1293, 0.0
    %v1309 = vmax.f32 %v1298, 0.0
    %v1310 = vmax.f32 %v1303, 0.0
    %v1311 = vld [vmem:[#allocation2 + $0x2] sm:$0x1]
    %v1312 = vld [vmem:[%s15] sm:$0xff]
    %v1313 = vld [vmem:[%s15 + $0x8] sm:$0xff]
    %v1314 = vld [vmem:[%s15 + $0x10] sm:$0xff]
    %v1315 = vld [vmem:[%s15 + $0x18] sm:$0xff]
    %v1316 = vld [vmem:[%s15 + $0x20] sm:$0x3]
    %vm1317 = vcmask 277504
    %v1319 = vsel %vm1317, %v1312, 0
    %v1322 = vsel %vm1317, %v1313, 0
    %v1325 = vsel %vm1317, %v1314, 0
    %v1328 = vsel %vm1317, %v1315, 0
    %v1331 = vsel %vm1317, %v1316, 0
    %vm1333 = vcmask 1041408
    %v1335 = vsel %vm1333, %v1310, 0
    %1337 = vmatprep.subr.mxu0 0.0
    %1338 = vmatpush1.msra.mxu0 %v1306
    %1339 = vmatprep.subr.mxu0 0.0
    %1340 = vmatpush1.msra.mxu0 %v1307
    %1341 = vmatprep.subr.mxu0 0.0
    %1342 = vmatpush1.msra.mxu0 %v1308
    %1343 = vmatprep.subr.mxu0 0.0
    %1344 = vmatpush1.msra.mxu0 %v1309
    %1345 = vmatprep.subr.mxu0 0.0
    %1346 = vmatpush1.msra.mxu0 %v1335
    %1347 = vmatprep.subr.mxu0 0.0
    %1348 = vmatpush1.msra.mxu0 0.0
    %1349 = vmatprep.subr.mxu0 0.0
    %1350 = vmatpush1.msra.mxu0 0.0
    %1351 = vmatprep.subr.mxu0 0.0
    %1352 = vmatpush1.msra.mxu0 0.0
    %1353 = vmatprep.subr.mxu0 0.0
    %1354 = vmatpush1.msra.mxu0 0.0
    %1355 = vmatprep.subr.mxu0 0.0
    %1356 = vmatpush1.msra.mxu0 0.0
    %1357 = vmatprep.subr.mxu0 0.0
    %1358 = vmatpush1.msra.mxu0 0.0
    %1359 = vmatprep.subr.mxu0 0.0
    %1360 = vmatpush1.msra.mxu0 0.0
    %1361 = vmatprep.subr.mxu0 0.0
    %1362 = vmatpush1.msra.mxu0 0.0
    %1363 = vmatprep.subr.mxu0 0.0
    %1364 = vmatpush1.msra.mxu0 0.0
    %1365 = vmatprep.subr.mxu0 0.0
    %1366 = vmatpush1.msra.mxu0 0.0
    %1367 = vmatprep.subr.mxu0 0.0
    %1368 = vmatpush1.msra.mxu0 0.0
    %1369 = vmatprep.subr.mxu0 0.0
    %1370 = vmatpush1.msra.mxu0 0.0
    %1371 = vmatprep.subr.mxu0 0.0
    %1372 = vmatpush1.msra.mxu0 0.0
    %1373 = vmatprep.subr.mxu0 0.0
    %1374 = vmatpush1.msra.mxu0 0.0
    %1375 = vmatprep.subr.mxu0 0.0
    %1376 = vmatpush1.msra.mxu0 0.0
    %1377 = vmatprep.subr.mxu0 0.0
    %1378 = vmatpush1.msra.mxu0 0.0
    %1379 = vmatprep.subr.mxu0 0.0
    %1380 = vmatpush1.msra.mxu0 0.0
    %1381 = vmatprep.subr.mxu0 0.0
    %1382 = vmatpush1.msra.mxu0 0.0
    %1383 = vmatprep.subr.mxu0 0.0
    %1384 = vmatpush1.msra.mxu0 0.0
    %1385 = vmatprep.subr.mxu0 0.0
    %1386 = vmatpush1.msra.mxu0 0.0
    %1387 = vmatprep.subr.mxu0 0.0
    %1388 = vmatpush1.msra.mxu0 0.0
    %1389 = vmatprep.subr.mxu0 0.0
    %1390 = vmatpush1.msra.mxu0 0.0
    %1391 = vmatprep.subr.mxu0 0.0
    %1392 = vmatpush1.msra.mxu0 0.0
    %1393 = vmatprep.subr.mxu0 0.0
    %1394 = vmatpush1.msra.mxu0 0.0
    %1395 = vmatprep.subr.mxu0 0.0
    %1396 = vmatpush1.msra.mxu0 0.0
    %1397 = vmatprep.subr.mxu0 0.0
    %1398 = vmatpush1.msra.mxu0 0.0
    %1399 = vmatprep.subr.mxu0 0.0
    %1400 = vmatpush1.msra.mxu0 0.0
    %1401 = vmatprep.mubr.f32.mxu0 0.0
    %1402 = vmatmul.mubr.f32.gmra.mrb[0].mxu0 %v1319
    %v1403 = vpop.f32.mrb[0].mxu0
    %v1404 = vadd.f32 0.0, %v1403
    %v1405 = vpop.f32.mrb[0].mxu0
    %1406 = vmatprep.mubr.f32.mxu0 0.0
    %1407 = vmatmul.mubr.f32.gmra.mrb[0].mxu0 %v1322
    %v1408 = vpop.f32.mrb[0].mxu0
    %v1409 = vadd.f32 0.0, %v1408
    %v1410 = vpop.f32.mrb[0].mxu0
    %1411 = vmatprep.mubr.f32.mxu0 0.0
    %1412 = vmatmul.mubr.f32.gmra.mrb[0].mxu0 %v1325
    %v1413 = vpop.f32.mrb[0].mxu0
    %v1414 = vadd.f32 0.0, %v1413
    %v1415 = vpop.f32.mrb[0].mxu0
    %1416 = vmatprep.mubr.f32.mxu0 0.0
    %1417 = vmatmul.mubr.f32.gmra.mrb[0].mxu0 %v1328
    %v1418 = vpop.f32.mrb[0].mxu0
    %v1419 = vadd.f32 0.0, %v1418
    %v1420 = vpop.f32.mrb[0].mxu0
    %1421 = vmatprep.mubr.f32.mxu0 0.0
    %1422 = vmatmul.mubr.f32.gmra.mrb[0].mxu0 %v1331
    %v1423 = vpop.f32.mrb[0].mxu0
    %v1424 = vadd.f32 0.0, %v1423
    %v1425 = vpop.f32.mrb[0].mxu0
    %1426 = vdwg.mxu0
    %s1427 = scalar_lea.vmem %s15, 40
    %v1428 = vld [vmem:[%s1427] sm:$0xff]
    %v1429 = vld [vmem:[%s1427 + $0x8] sm:$0xff]
    %v1430 = vld [vmem:[%s1427 + $0x10] sm:$0xff]
    %v1431 = vld [vmem:[%s1427 + $0x18] sm:$0xff]
    %v1432 = vld [vmem:[%s1427 + $0x20] sm:$0x3]
    %v1434 = vsel %vm1317, %v1428, 0
    %v1437 = vsel %vm1317, %v1429, 0
    %v1440 = vsel %vm1317, %v1430, 0
    %v1443 = vsel %vm1317, %v1431, 0
    %v1446 = vsel %vm1317, %v1432, 0
    %1448 = vmatprep.subr.mxu0 0.0
    %1449 = vmatpush1.msra.mxu0 %v1306
    %1450 = vmatprep.subr.mxu0 0.0
    %1451 = vmatpush1.msra.mxu0 %v1307
    %1452 = vmatprep.subr.mxu0 0.0
    %1453 = vmatpush1.msra.mxu0 %v1308
    %1454 = vmatprep.subr.mxu0 0.0
    %1455 = vmatpush1.msra.mxu0 %v1309
    %1456 = vmatprep.subr.mxu0 0.0
    %1457 = vmatpush1.msra.mxu0 %v1335
    %1458 = vmatprep.subr.mxu0 0.0
    %1459 = vmatpush1.msra.mxu0 0.0
    %1460 = vmatprep.subr.mxu0 0.0
    %1461 = vmatpush1.msra.mxu0 0.0
    %1462 = vmatprep.subr.mxu0 0.0
    %1463 = vmatpush1.msra.mxu0 0.0
    %1464 = vmatprep.subr.mxu0 0.0
    %1465 = vmatpush1.msra.mxu0 0.0
    %1466 = vmatprep.subr.mxu0 0.0
    %1467 = vmatpush1.msra.mxu0 0.0
    %1468 = vmatprep.subr.mxu0 0.0
    %1469 = vmatpush1.msra.mxu0 0.0
    %1470 = vmatprep.subr.mxu0 0.0
    %1471 = vmatpush1.msra.mxu0 0.0
    %1472 = vmatprep.subr.mxu0 0.0
    %1473 = vmatpush1.msra.mxu0 0.0
    %1474 = vmatprep.subr.mxu0 0.0
    %1475 = vmatpush1.msra.mxu0 0.0
    %1476 = vmatprep.subr.mxu0 0.0
    %1477 = vmatpush1.msra.mxu0 0.0
    %1478 = vmatprep.subr.mxu0 0.0
    %1479 = vmatpush1.msra.mxu0 0.0
    %1480 = vmatprep.subr.mxu0 0.0
    %1481 = vmatpush1.msra.mxu0 0.0
    %1482 = vmatprep.subr.mxu0 0.0
    %1483 = vmatpush1.msra.mxu0 0.0
    %1484 = vmatprep.subr.mxu0 0.0
    %1485 = vmatpush1.msra.mxu0 0.0
    %1486 = vmatprep.subr.mxu0 0.0
    %1487 = vmatpush1.msra.mxu0 0.0
    %1488 = vmatprep.subr.mxu0 0.0
    %1489 = vmatpush1.msra.mxu0 0.0
    %1490 = vmatprep.subr.mxu0 0.0
    %1491 = vmatpush1.msra.mxu0 0.0
    %1492 = vmatprep.subr.mxu0 0.0
    %1493 = vmatpush1.msra.mxu0 0.0
    %1494 = vmatprep.subr.mxu0 0.0
    %1495 = vmatpush1.msra.mxu0 0.0
    %1496 = vmatprep.subr.mxu0 0.0
    %1497 = vmatpush1.msra.mxu0 0.0
    %1498 = vmatprep.subr.mxu0 0.0
    %1499 = vmatpush1.msra.mxu0 0.0
    %1500 = vmatprep.subr.mxu0 0.0
    %1501 = vmatpush1.msra.mxu0 0.0
    %1502 = vmatprep.subr.mxu0 0.0
    %1503 = vmatpush1.msra.mxu0 0.0
    %1504 = vmatprep.subr.mxu0 0.0
    %1505 = vmatpush1.msra.mxu0 0.0
    %1506 = vmatprep.subr.mxu0 0.0
    %1507 = vmatpush1.msra.mxu0 0.0
    %1508 = vmatprep.subr.mxu0 0.0
    %1509 = vmatpush1.msra.mxu0 0.0
    %1510 = vmatprep.subr.mxu0 0.0
    %1511 = vmatpush1.msra.mxu0 0.0
    %1512 = vmatprep.mubr.f32.mxu0 0.0
    %1513 = vmatmul.mubr.f32.gmra.mrb[0].mxu0 %v1434
    %v1514 = vpop.f32.mrb[0].mxu0
    %v1515 = vadd.f32 0.0, %v1514
    %v1516 = vpop.f32.mrb[0].mxu0
    %1517 = vmatprep.mubr.f32.mxu0 0.0
    %1518 = vmatmul.mubr.f32.gmra.mrb[0].mxu0 %v1437
    %v1519 = vpop.f32.mrb[0].mxu0
    %v1520 = vadd.f32 0.0, %v1519
    %v1521 = vpop.f32.mrb[0].mxu0
    %1522 = vmatprep.mubr.f32.mxu0 0.0
    %1523 = vmatmul.mubr.f32.gmra.mrb[0].mxu0 %v1440
    %v1524 = vpop.f32.mrb[0].mxu0
    %v1525 = vadd.f32 0.0, %v1524
    %v1526 = vpop.f32.mrb[0].mxu0
    %1527 = vmatprep.mubr.f32.mxu0 0.0
    %1528 = vmatmul.mubr.f32.gmra.mrb[0].mxu0 %v1443
    %v1529 = vpop.f32.mrb[0].mxu0
    %v1530 = vadd.f32 0.0, %v1529
    %v1531 = vpop.f32.mrb[0].mxu0
    %1532 = vmatprep.mubr.f32.mxu0 0.0
    %1533 = vmatmul.mubr.f32.gmra.mrb[0].mxu0 %v1446
    %v1534 = vpop.f32.mrb[0].mxu0
    %v1535 = vadd.f32 0.0, %v1534
    %v1536 = vpop.f32.mrb[0].mxu0
    %1537 = vdwg.mxu0
    %s1538 = scalar_lea.vmem %s15, 80
    %v1539 = vld [vmem:[%s1538] sm:$0xff]
    %v1540 = vld [vmem:[%s1538 + $0x8] sm:$0xff]
    %v1541 = vld [vmem:[%s1538 + $0x10] sm:$0xff]
    %v1542 = vld [vmem:[%s1538 + $0x18] sm:$0xff]
    %v1543 = vld [vmem:[%s1538 + $0x20] sm:$0x3]
    %v1545 = vsel %vm1317, %v1539, 0
    %v1548 = vsel %vm1317, %v1540, 0
    %v1551 = vsel %vm1317, %v1541, 0
    %v1554 = vsel %vm1317, %v1542, 0
    %v1557 = vsel %vm1317, %v1543, 0
    %1559 = vmatprep.subr.mxu0 0.0
    %1560 = vmatpush1.msra.mxu0 %v1306
    %1561 = vmatprep.subr.mxu0 0.0
    %1562 = vmatpush1.msra.mxu0 %v1307
    %1563 = vmatprep.subr.mxu0 0.0
    %1564 = vmatpush1.msra.mxu0 %v1308
    %1565 = vmatprep.subr.mxu0 0.0
    %1566 = vmatpush1.msra.mxu0 %v1309
    %1567 = vmatprep.subr.mxu0 0.0
    %1568 = vmatpush1.msra.mxu0 %v1335
    %1569 = vmatprep.subr.mxu0 0.0
    %1570 = vmatpush1.msra.mxu0 0.0
    %1571 = vmatprep.subr.mxu0 0.0
    %1572 = vmatpush1.msra.mxu0 0.0
    %1573 = vmatprep.subr.mxu0 0.0
    %1574 = vmatpush1.msra.mxu0 0.0
    %1575 = vmatprep.subr.mxu0 0.0
    %1576 = vmatpush1.msra.mxu0 0.0
    %1577 = vmatprep.subr.mxu0 0.0
    %1578 = vmatpush1.msra.mxu0 0.0
    %1579 = vmatprep.subr.mxu0 0.0
    %1580 = vmatpush1.msra.mxu0 0.0
    %1581 = vmatprep.subr.mxu0 0.0
    %1582 = vmatpush1.msra.mxu0 0.0
    %1583 = vmatprep.subr.mxu0 0.0
    %1584 = vmatpush1.msra.mxu0 0.0
    %1585 = vmatprep.subr.mxu0 0.0
    %1586 = vmatpush1.msra.mxu0 0.0
    %1587 = vmatprep.subr.mxu0 0.0
    %1588 = vmatpush1.msra.mxu0 0.0
    %1589 = vmatprep.subr.mxu0 0.0
    %1590 = vmatpush1.msra.mxu0 0.0
    %1591 = vmatprep.subr.mxu0 0.0
    %1592 = vmatpush1.msra.mxu0 0.0
    %1593 = vmatprep.subr.mxu0 0.0
    %1594 = vmatpush1.msra.mxu0 0.0
    %1595 = vmatprep.subr.mxu0 0.0
    %1596 = vmatpush1.msra.mxu0 0.0
    %1597 = vmatprep.subr.mxu0 0.0
    %1598 = vmatpush1.msra.mxu0 0.0
    %1599 = vmatprep.subr.mxu0 0.0
    %1600 = vmatpush1.msra.mxu0 0.0
    %1601 = vmatprep.subr.mxu0 0.0
    %1602 = vmatpush1.msra.mxu0 0.0
    %1603 = vmatprep.subr.mxu0 0.0
    %1604 = vmatpush1.msra.mxu0 0.0
    %1605 = vmatprep.subr.mxu0 0.0
    %1606 = vmatpush1.msra.mxu0 0.0
    %1607 = vmatprep.subr.mxu0 0.0
    %1608 = vmatpush1.msra.mxu0 0.0
    %1609 = vmatprep.subr.mxu0 0.0
    %1610 = vmatpush1.msra.mxu0 0.0
    %1611 = vmatprep.subr.mxu0 0.0
    %1612 = vmatpush1.msra.mxu0 0.0
    %1613 = vmatprep.subr.mxu0 0.0
    %1614 = vmatpush1.msra.mxu0 0.0
    %1615 = vmatprep.subr.mxu0 0.0
    %1616 = vmatpush1.msra.mxu0 0.0
    %1617 = vmatprep.subr.mxu0 0.0
    %1618 = vmatpush1.msra.mxu0 0.0
    %1619 = vmatprep.subr.mxu0 0.0
    %1620 = vmatpush1.msra.mxu0 0.0
    %1621 = vmatprep.subr.mxu0 0.0
    %1622 = vmatpush1.msra.mxu0 0.0
    %1623 = vmatprep.mubr.f32.mxu0 0.0
    %1624 = vmatmul.mubr.f32.gmra.mrb[0].mxu0 %v1545
    %v1625 = vpop.f32.mrb[0].mxu0
    %v1626 = vadd.f32 0.0, %v1625
    %v1627 = vpop.f32.mrb[0].mxu0
    %1628 = vmatprep.mubr.f32.mxu0 0.0
    %1629 = vmatmul.mubr.f32.gmra.mrb[0].mxu0 %v1548
    %v1630 = vpop.f32.mrb[0].mxu0
    %v1631 = vadd.f32 0.0, %v1630
    %v1632 = vpop.f32.mrb[0].mxu0
    %1633 = vmatprep.mubr.f32.mxu0 0.0
    %1634 = vmatmul.mubr.f32.gmra.mrb[0].mxu0 %v1551
    %v1635 = vpop.f32.mrb[0].mxu0
    %v1636 = vadd.f32 0.0, %v1635
    %v1637 = vpop.f32.mrb[0].mxu0
    %1638 = vmatprep.mubr.f32.mxu0 0.0
    %1639 = vmatmul.mubr.f32.gmra.mrb[0].mxu0 %v1554
    %v1640 = vpop.f32.mrb[0].mxu0
    %v1641 = vadd.f32 0.0, %v1640
    %v1642 = vpop.f32.mrb[0].mxu0
    %1643 = vmatprep.mubr.f32.mxu0 0.0
    %1644 = vmatmul.mubr.f32.gmra.mrb[0].mxu0 %v1557
    %v1645 = vpop.f32.mrb[0].mxu0
    %v1646 = vadd.f32 0.0, %v1645
    %v1647 = vpop.f32.mrb[0].mxu0
    %1648 = vdwg.mxu0
    %1654 = vrot.lane.b32.xlu0 %v1515, 16
    %v1655 = vpop.permute.xlu0 %1654
    %1656 = vrot.lane.b32.xlu0 %v1520, 16
    %v1657 = vpop.permute.xlu0 %1656
    %1658 = vrot.lane.b32.xlu0 %v1525, 16
    %v1659 = vpop.permute.xlu0 %1658
    %1660 = vrot.lane.b32.xlu0 %v1530, 16
    %v1661 = vpop.permute.xlu0 %1660
    %1662 = vrot.lane.b32.xlu0 %v1535, 16
    %v1663 = vpop.permute.xlu0 %1662
    %1674 = vrot.lane.b32.xlu0 %v1626, 32
    %v1675 = vpop.permute.xlu0 %1674
    %1676 = vrot.lane.b32.xlu0 %v1631, 32
    %v1677 = vpop.permute.xlu0 %1676
    %1678 = vrot.lane.b32.xlu0 %v1636, 32
    %v1679 = vpop.permute.xlu0 %1678
    %1680 = vrot.lane.b32.xlu0 %v1641, 32
    %v1681 = vpop.permute.xlu0 %1680
    %1682 = vrot.lane.b32.xlu0 %v1646, 32
    %v1683 = vpop.permute.xlu0 %1682
    %v1689 = vsel %vm1178, %v1404, %v1655
    %v1690 = vsel %vm1178, %v1409, %v1657
    %v1691 = vsel %vm1178, %v1414, %v1659
    %v1692 = vsel %vm1178, %v1419, %v1661
    %v1693 = vsel %vm1178, %v1424, %v1663
    %v1694 = vsel %vm1184, %v1689, %v1675
    %v1695 = vsel %vm1184, %v1690, %v1677
    %v1696 = vsel %vm1184, %v1691, %v1679
    %v1697 = vsel %vm1184, %v1692, %v1681
    %v1698 = vsel %vm1184, %v1693, %v1683
    %v1699 = vld [vmem:[%s13] sm:$0xff]
    %v1700 = vld [vmem:[%s13 + $0x8] sm:$0xff]
    %v1701 = vld [vmem:[%s13 + $0x10] sm:$0xff]
    %v1702 = vld [vmem:[%s13 + $0x18] sm:$0xff]
    %v1703 = vld [vmem:[%s13 + $0x20] sm:$0xff]
    %v1704 = vld [vmem:[%s13 + $0x28] sm:$0xff]
    %v1705 = vlaneseq
    %v1706 = vshrl.u32 %v1705, 7
    %v1707 = vsub.s32 0, %v1706
    %v1708 = vrot.slane %v1311, %v1707
    %v1710 = vsel %vm1200, %v1694, 0
    %v1713 = vsel %vm1200, %v1695, 0
    %v1716 = vsel %vm1200, %v1696, 0
    %v1719 = vsel %vm1200, %v1697, 0
    %v1722 = vsel %vm1200, %v1698, 0
    %1724 = vmatprep.subr.mxu0 0.0
    %1725 = vmatpush1.msra.mxu0 %v1699
    %1726 = vmatprep.subr.mxu0 0.0
    %1727 = vmatpush1.msra.mxu0 %v1700
    %1728 = vmatprep.subr.mxu0 0.0
    %1729 = vmatpush1.msra.mxu0 %v1701
    %1730 = vmatprep.subr.mxu0 0.0
    %1731 = vmatpush1.msra.mxu0 %v1702
    %1732 = vmatprep.subr.mxu0 0.0
    %1733 = vmatpush1.msra.mxu0 %v1703
    %1734 = vmatprep.subr.mxu0 0.0
    %1735 = vmatpush1.msra.mxu0 %v1704
    %1736 = vmatprep.subr.mxu0 0.0
    %1737 = vmatpush1.msra.mxu0 0.0
    %1738 = vmatprep.subr.mxu0 0.0
    %1739 = vmatpush1.msra.mxu0 0.0
    %1740 = vmatprep.subr.mxu0 0.0
    %1741 = vmatpush1.msra.mxu0 0.0
    %1742 = vmatprep.subr.mxu0 0.0
    %1743 = vmatpush1.msra.mxu0 0.0
    %1744 = vmatprep.subr.mxu0 0.0
    %1745 = vmatpush1.msra.mxu0 0.0
    %1746 = vmatprep.subr.mxu0 0.0
    %1747 = vmatpush1.msra.mxu0 0.0
    %1748 = vmatprep.subr.mxu0 0.0
    %1749 = vmatpush1.msra.mxu0 0.0
    %1750 = vmatprep.subr.mxu0 0.0
    %1751 = vmatpush1.msra.mxu0 0.0
    %1752 = vmatprep.subr.mxu0 0.0
    %1753 = vmatpush1.msra.mxu0 0.0
    %1754 = vmatprep.subr.mxu0 0.0
    %1755 = vmatpush1.msra.mxu0 0.0
    %1756 = vmatprep.subr.mxu0 0.0
    %1757 = vmatpush1.msra.mxu0 0.0
    %1758 = vmatprep.subr.mxu0 0.0
    %1759 = vmatpush1.msra.mxu0 0.0
    %1760 = vmatprep.subr.mxu0 0.0
    %1761 = vmatpush1.msra.mxu0 0.0
    %1762 = vmatprep.subr.mxu0 0.0
    %1763 = vmatpush1.msra.mxu0 0.0
    %1764 = vmatprep.subr.mxu0 0.0
    %1765 = vmatpush1.msra.mxu0 0.0
    %1766 = vmatprep.subr.mxu0 0.0
    %1767 = vmatpush1.msra.mxu0 0.0
    %1768 = vmatprep.subr.mxu0 0.0
    %1769 = vmatpush1.msra.mxu0 0.0
    %1770 = vmatprep.subr.mxu0 0.0
    %1771 = vmatpush1.msra.mxu0 0.0
    %1772 = vmatprep.subr.mxu0 0.0
    %1773 = vmatpush1.msra.mxu0 0.0
    %1774 = vmatprep.subr.mxu0 0.0
    %1775 = vmatpush1.msra.mxu0 0.0
    %1776 = vmatprep.subr.mxu0 0.0
    %1777 = vmatpush1.msra.mxu0 0.0
    %1778 = vmatprep.subr.mxu0 0.0
    %1779 = vmatpush1.msra.mxu0 0.0
    %1780 = vmatprep.subr.mxu0 0.0
    %1781 = vmatpush1.msra.mxu0 0.0
    %1782 = vmatprep.subr.mxu0 0.0
    %1783 = vmatpush1.msra.mxu0 0.0
    %1784 = vmatprep.subr.mxu0 0.0
    %1785 = vmatpush1.msra.mxu0 0.0
    %1786 = vmatprep.subr.mxu0 0.0
    %1787 = vmatpush1.msra.mxu0 0.0
    %1788 = vmatprep.mubr.f32.mxu0 0.0
    %1789 = vmatmul.mubr.f32.gmra.mrb[0].mxu0 %v1710
    %v1790 = vpop.f32.mrb[0].mxu0
    %v1791 = vadd.f32 %v1708, %v1790
    %v1792 = vpop.f32.mrb[0].mxu0
    %1793 = vmatprep.mubr.f32.mxu0 0.0
    %1794 = vmatmul.mubr.f32.gmra.mrb[0].mxu0 %v1713
    %v1795 = vpop.f32.mrb[0].mxu0
    %v1796 = vadd.f32 %v1708, %v1795
    %v1797 = vpop.f32.mrb[0].mxu0
    %1798 = vmatprep.mubr.f32.mxu0 0.0
    %1799 = vmatmul.mubr.f32.gmra.mrb[0].mxu0 %v1716
    %v1800 = vpop.f32.mrb[0].mxu0
    %v1801 = vadd.f32 %v1708, %v1800
    %v1802 = vpop.f32.mrb[0].mxu0
    %1803 = vmatprep.mubr.f32.mxu0 0.0
    %1804 = vmatmul.mubr.f32.gmra.mrb[0].mxu0 %v1719
    %v1805 = vpop.f32.mrb[0].mxu0
    %v1806 = vadd.f32 %v1708, %v1805
    %v1807 = vpop.f32.mrb[0].mxu0
    %1808 = vmatprep.mubr.f32.mxu0 0.0
    %1809 = vmatmul.mubr.f32.gmra.mrb[0].mxu0 %v1722
    %v1810 = vpop.f32.mrb[0].mxu0
    %v1811 = vadd.f32 %v1708, %v1810
    %v1812 = vpop.f32.mrb[0].mxu0
    %1813 = vdwg.mxu0
    %v1814 = vld [vmem:[#allocation2 + $0x3] sm:$0x1]
    %v1815 = vld [vmem:[#allocation2 + $0x4] sm:$0x1]
    %v1816 = vand.u32 2147483647, %v1791
    %v1817 = vand.u32 2147483647, %v1796
    %v1818 = vand.u32 2147483647, %v1801
    %v1819 = vand.u32 2147483647, %v1806
    %v1820 = vand.u32 2147483647, %v1811
    %v1821 = vld [vmem:[%s21] sm:$0x3]
    %v1823 = vsel %vm1317, %v1821, 0
    %v1826 = vsel %vm1333, %v1820, 0
    %1828 = vmatprep.subr.mxu0 0.0
    %1829 = vmatpush1.msra.mxu0 %v1816
    %1830 = vmatprep.subr.mxu0 0.0
    %1831 = vmatpush1.msra.mxu0 %v1817
    %1832 = vmatprep.subr.mxu0 0.0
    %1833 = vmatpush1.msra.mxu0 %v1818
    %1834 = vmatprep.subr.mxu0 0.0
    %1835 = vmatpush1.msra.mxu0 %v1819
    %1836 = vmatprep.subr.mxu0 0.0
    %1837 = vmatpush1.msra.mxu0 %v1826
    %1838 = vmatprep.subr.mxu0 0.0
    %1839 = vmatpush1.msra.mxu0 0.0
    %1840 = vmatprep.subr.mxu0 0.0
    %1841 = vmatpush1.msra.mxu0 0.0
    %1842 = vmatprep.subr.mxu0 0.0
    %1843 = vmatpush1.msra.mxu0 0.0
    %1844 = vmatprep.subr.mxu0 0.0
    %1845 = vmatpush1.msra.mxu0 0.0
    %1846 = vmatprep.subr.mxu0 0.0
    %1847 = vmatpush1.msra.mxu0 0.0
    %1848 = vmatprep.subr.mxu0 0.0
    %1849 = vmatpush1.msra.mxu0 0.0
    %1850 = vmatprep.subr.mxu0 0.0
    %1851 = vmatpush1.msra.mxu0 0.0
    %1852 = vmatprep.subr.mxu0 0.0
    %1853 = vmatpush1.msra.mxu0 0.0
    %1854 = vmatprep.subr.mxu0 0.0
    %1855 = vmatpush1.msra.mxu0 0.0
    %1856 = vmatprep.subr.mxu0 0.0
    %1857 = vmatpush1.msra.mxu0 0.0
    %1858 = vmatprep.subr.mxu0 0.0
    %1859 = vmatpush1.msra.mxu0 0.0
    %1860 = vmatprep.subr.mxu0 0.0
    %1861 = vmatpush1.msra.mxu0 0.0
    %1862 = vmatprep.subr.mxu0 0.0
    %1863 = vmatpush1.msra.mxu0 0.0
    %1864 = vmatprep.subr.mxu0 0.0
    %1865 = vmatpush1.msra.mxu0 0.0
    %1866 = vmatprep.subr.mxu0 0.0
    %1867 = vmatpush1.msra.mxu0 0.0
    %1868 = vmatprep.subr.mxu0 0.0
    %1869 = vmatpush1.msra.mxu0 0.0
    %1870 = vmatprep.subr.mxu0 0.0
    %1871 = vmatpush1.msra.mxu0 0.0
    %1872 = vmatprep.subr.mxu0 0.0
    %1873 = vmatpush1.msra.mxu0 0.0
    %1874 = vmatprep.subr.mxu0 0.0
    %1875 = vmatpush1.msra.mxu0 0.0
    %1876 = vmatprep.subr.mxu0 0.0
    %1877 = vmatpush1.msra.mxu0 0.0
    %1878 = vmatprep.subr.mxu0 0.0
    %1879 = vmatpush1.msra.mxu0 0.0
    %1880 = vmatprep.subr.mxu0 0.0
    %1881 = vmatpush1.msra.mxu0 0.0
    %1882 = vmatprep.subr.mxu0 0.0
    %1883 = vmatpush1.msra.mxu0 0.0
    %1884 = vmatprep.subr.mxu0 0.0
    %1885 = vmatpush1.msra.mxu0 0.0
    %1886 = vmatprep.subr.mxu0 0.0
    %1887 = vmatpush1.msra.mxu0 0.0
    %1888 = vmatprep.subr.mxu0 0.0
    %1889 = vmatpush1.msra.mxu0 0.0
    %1890 = vmatprep.subr.mxu0 0.0
    %1891 = vmatpush1.msra.mxu0 0.0
    %1892 = vmatprep.mubr.f32.mxu0 0.0
    %1893 = vmatmul.mubr.f32.gmra.mrb[0].mxu0 %v1823
    %v1894 = vpop.f32.mrb[0].mxu0
    %v1895 = vadd.f32 0.0, %v1894
    %v1896 = vpop.f32.mrb[0].mxu0
    %1897 = vdwg.mxu0
    %v1898 = vld [vmem:[#allocation5] sm:$0xff]
    %v1899 = vld [vmem:[#allocation5 + $0x8] sm:$0xff]
    %v1900 = vlaneseq
    %v1901 = vshrl.u32 %v1900, 7
    %v1902 = vsub.s32 0, %v1901
    %v1903 = vrot.slane %v1814, %v1902
    %v1905 = vsel %vm1178, %v1895, 0
    %1907 = vmatprep.subr.mxu0 0.0
    %1908 = vmatpush1.msra.mxu0 %v1898
    %1909 = vmatprep.subr.mxu0 0.0
    %1910 = vmatpush1.msra.mxu0 %v1899
    %1911 = vmatprep.subr.mxu0 0.0
    %1912 = vmatpush1.msra.mxu0 0.0
    %1913 = vmatprep.subr.mxu0 0.0
    %1914 = vmatpush1.msra.mxu0 0.0
    %1915 = vmatprep.subr.mxu0 0.0
    %1916 = vmatpush1.msra.mxu0 0.0
    %1917 = vmatprep.subr.mxu0 0.0
    %1918 = vmatpush1.msra.mxu0 0.0
    %1919 = vmatprep.subr.mxu0 0.0
    %1920 = vmatpush1.msra.mxu0 0.0
    %1921 = vmatprep.subr.mxu0 0.0
    %1922 = vmatpush1.msra.mxu0 0.0
    %1923 = vmatprep.subr.mxu0 0.0
    %1924 = vmatpush1.msra.mxu0 0.0
    %1925 = vmatprep.subr.mxu0 0.0
    %1926 = vmatpush1.msra.mxu0 0.0
    %1927 = vmatprep.subr.mxu0 0.0
    %1928 = vmatpush1.msra.mxu0 0.0
    %1929 = vmatprep.subr.mxu0 0.0
    %1930 = vmatpush1.msra.mxu0 0.0
    %1931 = vmatprep.subr.mxu0 0.0
    %1932 = vmatpush1.msra.mxu0 0.0
    %1933 = vmatprep.subr.mxu0 0.0
    %1934 = vmatpush1.msra.mxu0 0.0
    %1935 = vmatprep.subr.mxu0 0.0
    %1936 = vmatpush1.msra.mxu0 0.0
    %1937 = vmatprep.subr.mxu0 0.0
    %1938 = vmatpush1.msra.mxu0 0.0
    %1939 = vmatprep.subr.mxu0 0.0
    %1940 = vmatpush1.msra.mxu0 0.0
    %1941 = vmatprep.subr.mxu0 0.0
    %1942 = vmatpush1.msra.mxu0 0.0
    %1943 = vmatprep.subr.mxu0 0.0
    %1944 = vmatpush1.msra.mxu0 0.0
    %1945 = vmatprep.subr.mxu0 0.0
    %1946 = vmatpush1.msra.mxu0 0.0
    %1947 = vmatprep.subr.mxu0 0.0
    %1948 = vmatpush1.msra.mxu0 0.0
    %1949 = vmatprep.subr.mxu0 0.0
    %1950 = vmatpush1.msra.mxu0 0.0
    %1951 = vmatprep.subr.mxu0 0.0
    %1952 = vmatpush1.msra.mxu0 0.0
    %1953 = vmatprep.subr.mxu0 0.0
    %1954 = vmatpush1.msra.mxu0 0.0
    %1955 = vmatprep.subr.mxu0 0.0
    %1956 = vmatpush1.msra.mxu0 0.0
    %1957 = vmatprep.subr.mxu0 0.0
    %1958 = vmatpush1.msra.mxu0 0.0
    %1959 = vmatprep.subr.mxu0 0.0
    %1960 = vmatpush1.msra.mxu0 0.0
    %1961 = vmatprep.subr.mxu0 0.0
    %1962 = vmatpush1.msra.mxu0 0.0
    %1963 = vmatprep.subr.mxu0 0.0
    %1964 = vmatpush1.msra.mxu0 0.0
    %1965 = vmatprep.subr.mxu0 0.0
    %1966 = vmatpush1.msra.mxu0 0.0
    %1967 = vmatprep.subr.mxu0 0.0
    %1968 = vmatpush1.msra.mxu0 0.0
    %1969 = vmatprep.subr.mxu0 0.0
    %1970 = vmatpush1.msra.mxu0 0.0
    %1971 = vmatprep.mubr.f32.mxu0 0.0
    %1972 = vmatmul.mubr.f32.gmra.mrb[0].mxu0 %v1905
    %v1973 = vpop.f32.mrb[0].mxu0
    %v1974 = vadd.f32 %v1903, %v1973
    %v1975 = vpop.f32.mrb[0].mxu0
    %1976 = vdwg.mxu0
    %v1977 = vmax.f32 %v1974, 0.0
    %v1978 = vld [vmem:[#allocation7] sm:$0xff]
    %v1979 = vld [vmem:[#allocation7 + $0x8] sm:$0xff]
    %v1980 = vlaneseq
    %v1981 = vshrl.u32 %v1980, 7
    %v1982 = vsub.s32 0, %v1981
    %v1983 = vrot.slane %v1815, %v1982
    %v1985 = vsel %vm1178, %v1977, 0
    %1987 = vmatprep.subr.mxu0 0.0
    %1988 = vmatpush1.msra.mxu0 %v1978
    %1989 = vmatprep.subr.mxu0 0.0
    %1990 = vmatpush1.msra.mxu0 %v1979
    %1991 = vmatprep.subr.mxu0 0.0
    %1992 = vmatpush1.msra.mxu0 0.0
    %1993 = vmatprep.subr.mxu0 0.0
    %1994 = vmatpush1.msra.mxu0 0.0
    %1995 = vmatprep.subr.mxu0 0.0
    %1996 = vmatpush1.msra.mxu0 0.0
    %1997 = vmatprep.subr.mxu0 0.0
    %1998 = vmatpush1.msra.mxu0 0.0
    %1999 = vmatprep.subr.mxu0 0.0
    %2000 = vmatpush1.msra.mxu0 0.0
    %2001 = vmatprep.subr.mxu0 0.0
    %2002 = vmatpush1.msra.mxu0 0.0
    %2003 = vmatprep.subr.mxu0 0.0
    %2004 = vmatpush1.msra.mxu0 0.0
    %2005 = vmatprep.subr.mxu0 0.0
    %2006 = vmatpush1.msra.mxu0 0.0
    %2007 = vmatprep.subr.mxu0 0.0
    %2008 = vmatpush1.msra.mxu0 0.0
    %2009 = vmatprep.subr.mxu0 0.0
    %2010 = vmatpush1.msra.mxu0 0.0
    %2011 = vmatprep.subr.mxu0 0.0
    %2012 = vmatpush1.msra.mxu0 0.0
    %2013 = vmatprep.subr.mxu0 0.0
    %2014 = vmatpush1.msra.mxu0 0.0
    %2015 = vmatprep.subr.mxu0 0.0
    %2016 = vmatpush1.msra.mxu0 0.0
    %2017 = vmatprep.subr.mxu0 0.0
    %2018 = vmatpush1.msra.mxu0 0.0
    %2019 = vmatprep.subr.mxu0 0.0
    %2020 = vmatpush1.msra.mxu0 0.0
    %2021 = vmatprep.subr.mxu0 0.0
    %2022 = vmatpush1.msra.mxu0 0.0
    %2023 = vmatprep.subr.mxu0 0.0
    %2024 = vmatpush1.msra.mxu0 0.0
    %2025 = vmatprep.subr.mxu0 0.0
    %2026 = vmatpush1.msra.mxu0 0.0
    %2027 = vmatprep.subr.mxu0 0.0
    %2028 = vmatpush1.msra.mxu0 0.0
    %2029 = vmatprep.subr.mxu0 0.0
    %2030 = vmatpush1.msra.mxu0 0.0
    %2031 = vmatprep.subr.mxu0 0.0
    %2032 = vmatpush1.msra.mxu0 0.0
    %2033 = vmatprep.subr.mxu0 0.0
    %2034 = vmatpush1.msra.mxu0 0.0
    %2035 = vmatprep.subr.mxu0 0.0
    %2036 = vmatpush1.msra.mxu0 0.0
    %2037 = vmatprep.subr.mxu0 0.0
    %2038 = vmatpush1.msra.mxu0 0.0
    %2039 = vmatprep.subr.mxu0 0.0
    %2040 = vmatpush1.msra.mxu0 0.0
    %2041 = vmatprep.subr.mxu0 0.0
    %2042 = vmatpush1.msra.mxu0 0.0
    %2043 = vmatprep.subr.mxu0 0.0
    %2044 = vmatpush1.msra.mxu0 0.0
    %2045 = vmatprep.subr.mxu0 0.0
    %2046 = vmatpush1.msra.mxu0 0.0
    %2047 = vmatprep.subr.mxu0 0.0
    %2048 = vmatpush1.msra.mxu0 0.0
    %2049 = vmatprep.subr.mxu0 0.0
    %2050 = vmatpush1.msra.mxu0 0.0
    %2051 = vmatprep.mubr.f32.mxu0 0.0
    %2052 = vmatmul.mubr.f32.gmra.mrb[0].mxu0 %v1985
    %v2053 = vpop.f32.mrb[0].mxu0
    %v2054 = vadd.f32 %v1983, %v2053
    %v2055 = vpop.f32.mrb[0].mxu0
    %2056 = vdwg.mxu0
    %v2057 = vsub.f32 0.0, %v2054
    %v2058 = vmul.f32 %v2057, 1.442695
    %v2059 = vpow.pop %v2058
    %v2060 = vadd.f32 %v2059, 1.0
    %v2061 = vrcp.pop %v2060
    %v2062 = vld [vmem:[%s23] sm:$0xff]
    %v2063 = vld [vmem:[%s23 + $0x8] sm:$0xff]
    %v2064 = vld [vmem:[%s23 + $0x10] sm:$0xff]
    %v2065 = vld [vmem:[%s23 + $0x18] sm:$0xff]
    %v2066 = vld [vmem:[%s23 + $0x20] sm:$0x3]
    %v2067 = vmul.f32 %v1895, %v2061
    %v2069 = vsel %vm634, %v2062, 0
    %v2072 = vsel %vm634, %v2063, 0
    %v2075 = vsel %vm634, %v2064, 0
    %v2078 = vsel %vm634, %v2065, 0
    %v2081 = vsel %vm634, %v2066, 0
    %v2084 = vsel %vm1333, %v2067, 0
    %2086 = vmatprep.subr.mxu0 0.0
    %2087 = vmatpush1.msra.mxu0 %v2084
    %2088 = vmatprep.subr.mxu0 0.0
    %2089 = vmatpush1.msra.mxu0 0.0
    %2090 = vmatprep.subr.mxu0 0.0
    %2091 = vmatpush1.msra.mxu0 0.0
    %2092 = vmatprep.subr.mxu0 0.0
    %2093 = vmatpush1.msra.mxu0 0.0
    %2094 = vmatprep.subr.mxu0 0.0
    %2095 = vmatpush1.msra.mxu0 0.0
    %2096 = vmatprep.subr.mxu0 0.0
    %2097 = vmatpush1.msra.mxu0 0.0
    %2098 = vmatprep.subr.mxu0 0.0
    %2099 = vmatpush1.msra.mxu0 0.0
    %2100 = vmatprep.subr.mxu0 0.0
    %2101 = vmatpush1.msra.mxu0 0.0
    %2102 = vmatprep.subr.mxu0 0.0
    %2103 = vmatpush1.msra.mxu0 0.0
    %2104 = vmatprep.subr.mxu0 0.0
    %2105 = vmatpush1.msra.mxu0 0.0
    %2106 = vmatprep.subr.mxu0 0.0
    %2107 = vmatpush1.msra.mxu0 0.0
    %2108 = vmatprep.subr.mxu0 0.0
    %2109 = vmatpush1.msra.mxu0 0.0
    %2110 = vmatprep.subr.mxu0 0.0
    %2111 = vmatpush1.msra.mxu0 0.0
    %2112 = vmatprep.subr.mxu0 0.0
    %2113 = vmatpush1.msra.mxu0 0.0
    %2114 = vmatprep.subr.mxu0 0.0
    %2115 = vmatpush1.msra.mxu0 0.0
    %2116 = vmatprep.subr.mxu0 0.0
    %2117 = vmatpush1.msra.mxu0 0.0
    %2118 = vmatprep.subr.mxu0 0.0
    %2119 = vmatpush1.msra.mxu0 0.0
    %2120 = vmatprep.subr.mxu0 0.0
    %2121 = vmatpush1.msra.mxu0 0.0
    %2122 = vmatprep.subr.mxu0 0.0
    %2123 = vmatpush1.msra.mxu0 0.0
    %2124 = vmatprep.subr.mxu0 0.0
    %2125 = vmatpush1.msra.mxu0 0.0
    %2126 = vmatprep.subr.mxu0 0.0
    %2127 = vmatpush1.msra.mxu0 0.0
    %2128 = vmatprep.subr.mxu0 0.0
    %2129 = vmatpush1.msra.mxu0 0.0
    %2130 = vmatprep.subr.mxu0 0.0
    %2131 = vmatpush1.msra.mxu0 0.0
    %2132 = vmatprep.subr.mxu0 0.0
    %2133 = vmatpush1.msra.mxu0 0.0
    %2134 = vmatprep.subr.mxu0 0.0
    %2135 = vmatpush1.msra.mxu0 0.0
    %2136 = vmatprep.subr.mxu0 0.0
    %2137 = vmatpush1.msra.mxu0 0.0
    %2138 = vmatprep.subr.mxu0 0.0
    %2139 = vmatpush1.msra.mxu0 0.0
    %2140 = vmatprep.subr.mxu0 0.0
    %2141 = vmatpush1.msra.mxu0 0.0
    %2142 = vmatprep.subr.mxu0 0.0
    %2143 = vmatpush1.msra.mxu0 0.0
    %2144 = vmatprep.subr.mxu0 0.0
    %2145 = vmatpush1.msra.mxu0 0.0
    %2146 = vmatprep.subr.mxu0 0.0
    %2147 = vmatpush1.msra.mxu0 0.0
    %2148 = vmatprep.subr.mxu0 0.0
    %2149 = vmatpush1.msra.mxu0 0.0
    %2150 = vmatprep.mubr.f32.mxu0 0.0
    %2151 = vmatmul.mubr.f32.gmra.mrb[0].mxu0 %v2069
    %v2152 = vpop.f32.mrb[0].mxu0
    %v2153 = vadd.f32 0.0, %v2152
    %v2154 = vpop.f32.mrb[0].mxu0
    %2155 = vmatprep.mubr.f32.mxu0 0.0
    %2156 = vmatmul.mubr.f32.gmra.mrb[0].mxu0 %v2072
    %v2157 = vpop.f32.mrb[0].mxu0
    %v2158 = vadd.f32 0.0, %v2157
    %v2159 = vpop.f32.mrb[0].mxu0
    %2160 = vmatprep.mubr.f32.mxu0 0.0
    %2161 = vmatmul.mubr.f32.gmra.mrb[0].mxu0 %v2075
    %v2162 = vpop.f32.mrb[0].mxu0
    %v2163 = vadd.f32 0.0, %v2162
    %v2164 = vpop.f32.mrb[0].mxu0
    %2165 = vmatprep.mubr.f32.mxu0 0.0
    %2166 = vmatmul.mubr.f32.gmra.mrb[0].mxu0 %v2078
    %v2167 = vpop.f32.mrb[0].mxu0
    %v2168 = vadd.f32 0.0, %v2167
    %v2169 = vpop.f32.mrb[0].mxu0
    %2170 = vmatprep.mubr.f32.mxu0 0.0
    %2171 = vmatmul.mubr.f32.gmra.mrb[0].mxu0 %v2081
    %v2172 = vpop.f32.mrb[0].mxu0
    %v2173 = vadd.f32 0.0, %v2172
    %v2174 = vpop.f32.mrb[0].mxu0
    %2175 = vdwg.mxu0
    %v2176 = vsub.f32 0.0, %v2153
    %v2177 = vsub.f32 0.0, %v2158
    %v2178 = vsub.f32 0.0, %v2163
    %v2179 = vsub.f32 0.0, %v2168
    %v2180 = vsub.f32 0.0, %v2173
    %v2181 = vmax.f32 %v2176, %v1791
    %v2182 = vmax.f32 %v2177, %v1796
    %v2183 = vmax.f32 %v2178, %v1801
    %v2184 = vmax.f32 %v2179, %v1806
    %v2185 = vmax.f32 %v2180, %v1811
    %v2186 = vmin.f32 %v2153, %v2181
    %v2187 = vmin.f32 %v2158, %v2182
    %v2188 = vmin.f32 %v2163, %v2183
    %v2189 = vmin.f32 %v2168, %v2184
    %v2190 = vmin.f32 %v2173, %v2185
    %v2191 = vsub.f32 %v1791, %v2186
    %v2192 = vsub.f32 %v1796, %v2187
    %v2193 = vsub.f32 %v1801, %v2188
    %v2194 = vsub.f32 %v1806, %v2189
    %v2195 = vsub.f32 %v1811, %v2190
    %v2196 = vld [vmem:[%s25] sm:$0xff]
    %v2197 = vld [vmem:[%s25 + $0x8] sm:$0xff]
    %v2198 = vld [vmem:[#allocation2 + $0x5] sm:$0x1]
    %v2199 = vlaneseq
    %v2200 = vshrl.u32 %v2199, 7
    %v2201 = vsub.s32 0, %v2200
    %v2202 = vrot.slane %v2198, %v2201
    %v2203 = vsel %vm1178, %v1004, 0
    %v2205 = vsel %vm1178, %v1009, 0
    %v2207 = vsel %vm1178, %v1014, 0
    %v2209 = vsel %vm1178, %v1019, 0
    %v2211 = vsel %vm1178, %v1024, 0
    %2213 = vmatprep.subr.mxu0 0.0
    %2214 = vmatpush1.msra.mxu0 %v2196
    %2215 = vmatprep.subr.mxu0 0.0
    %2216 = vmatpush1.msra.mxu0 %v2197
    %2217 = vmatprep.subr.mxu0 0.0
    %2218 = vmatpush1.msra.mxu0 0.0
    %2219 = vmatprep.subr.mxu0 0.0
    %2220 = vmatpush1.msra.mxu0 0.0
    %2221 = vmatprep.subr.mxu0 0.0
    %2222 = vmatpush1.msra.mxu0 0.0
    %2223 = vmatprep.subr.mxu0 0.0
    %2224 = vmatpush1.msra.mxu0 0.0
    %2225 = vmatprep.subr.mxu0 0.0
    %2226 = vmatpush1.msra.mxu0 0.0
    %2227 = vmatprep.subr.mxu0 0.0
    %2228 = vmatpush1.msra.mxu0 0.0
    %2229 = vmatprep.subr.mxu0 0.0
    %2230 = vmatpush1.msra.mxu0 0.0
    %2231 = vmatprep.subr.mxu0 0.0
    %2232 = vmatpush1.msra.mxu0 0.0
    %2233 = vmatprep.subr.mxu0 0.0
    %2234 = vmatpush1.msra.mxu0 0.0
    %2235 = vmatprep.subr.mxu0 0.0
    %2236 = vmatpush1.msra.mxu0 0.0
    %2237 = vmatprep.subr.mxu0 0.0
    %2238 = vmatpush1.msra.mxu0 0.0
    %2239 = vmatprep.subr.mxu0 0.0
    %2240 = vmatpush1.msra.mxu0 0.0
    %2241 = vmatprep.subr.mxu0 0.0
    %2242 = vmatpush1.msra.mxu0 0.0
    %2243 = vmatprep.subr.mxu0 0.0
    %2244 = vmatpush1.msra.mxu0 0.0
    %2245 = vmatprep.subr.mxu0 0.0
    %2246 = vmatpush1.msra.mxu0 0.0
    %2247 = vmatprep.subr.mxu0 0.0
    %2248 = vmatpush1.msra.mxu0 0.0
    %2249 = vmatprep.subr.mxu0 0.0
    %2250 = vmatpush1.msra.mxu0 0.0
    %2251 = vmatprep.subr.mxu0 0.0
    %2252 = vmatpush1.msra.mxu0 0.0
    %2253 = vmatprep.subr.mxu0 0.0
    %2254 = vmatpush1.msra.mxu0 0.0
    %2255 = vmatprep.subr.mxu0 0.0
    %2256 = vmatpush1.msra.mxu0 0.0
    %2257 = vmatprep.subr.mxu0 0.0
    %2258 = vmatpush1.msra.mxu0 0.0
    %2259 = vmatprep.subr.mxu0 0.0
    %2260 = vmatpush1.msra.mxu0 0.0
    %2261 = vmatprep.subr.mxu0 0.0
    %2262 = vmatpush1.msra.mxu0 0.0
    %2263 = vmatprep.subr.mxu0 0.0
    %2264 = vmatpush1.msra.mxu0 0.0
    %2265 = vmatprep.subr.mxu0 0.0
    %2266 = vmatpush1.msra.mxu0 0.0
    %2267 = vmatprep.subr.mxu0 0.0
    %2268 = vmatpush1.msra.mxu0 0.0
    %2269 = vmatprep.subr.mxu0 0.0
    %2270 = vmatpush1.msra.mxu0 0.0
    %2271 = vmatprep.subr.mxu0 0.0
    %2272 = vmatpush1.msra.mxu0 0.0
    %2273 = vmatprep.subr.mxu0 0.0
    %2274 = vmatpush1.msra.mxu0 0.0
    %2275 = vmatprep.subr.mxu0 0.0
    %2276 = vmatpush1.msra.mxu0 0.0
    %2277 = vmatprep.mubr.f32.mxu0 0.0
    %2278 = vmatmul.mubr.f32.gmra.mrb[0].mxu0 %v2203
    %v2279 = vpop.f32.mrb[0].mxu0
    %v2280 = vadd.f32 %v2202, %v2279
    %v2281 = vpop.f32.mrb[0].mxu0
    %2282 = vmatprep.mubr.f32.mxu0 0.0
    %2283 = vmatmul.mubr.f32.gmra.mrb[0].mxu0 %v2205
    %v2284 = vpop.f32.mrb[0].mxu0
    %v2285 = vadd.f32 %v2202, %v2284
    %v2286 = vpop.f32.mrb[0].mxu0
    %2287 = vmatprep.mubr.f32.mxu0 0.0
    %2288 = vmatmul.mubr.f32.gmra.mrb[0].mxu0 %v2207
    %v2289 = vpop.f32.mrb[0].mxu0
    %v2290 = vadd.f32 %v2202, %v2289
    %v2291 = vpop.f32.mrb[0].mxu0
    %2292 = vmatprep.mubr.f32.mxu0 0.0
    %2293 = vmatmul.mubr.f32.gmra.mrb[0].mxu0 %v2209
    %v2294 = vpop.f32.mrb[0].mxu0
    %v2295 = vadd.f32 %v2202, %v2294
    %v2296 = vpop.f32.mrb[0].mxu0
    %2297 = vmatprep.mubr.f32.mxu0 0.0
    %2298 = vmatmul.mubr.f32.gmra.mrb[0].mxu0 %v2211
    %v2299 = vpop.f32.mrb[0].mxu0
    %v2300 = vadd.f32 %v2202, %v2299
    %v2301 = vpop.f32.mrb[0].mxu0
    %2302 = vdwg.mxu0
    %v2303 = vadd.f32 %v2191, %v2280
    %v2304 = vadd.f32 %v2192, %v2285
    %v2305 = vadd.f32 %v2193, %v2290
    %v2306 = vadd.f32 %v2194, %v2295
    %v2307 = vadd.f32 %v2195, %v2300
    %v2308 = vmax.f32 %v2303, 0.0
    %v2309 = vmax.f32 %v2304, 0.0
    %v2310 = vmax.f32 %v2305, 0.0
    %v2311 = vmax.f32 %v2306, 0.0
    %v2312 = vmax.f32 %v2307, 0.0
    %v2313 = vld [vmem:[#allocation2 + $0x6] sm:$0x1]
    %v2314 = vld [vmem:[%s29] sm:$0xff]
    %v2315 = vld [vmem:[%s29 + $0x8] sm:$0xff]
    %v2316 = vld [vmem:[%s29 + $0x10] sm:$0x3]
    %v2318 = vsel %vm1317, %v2314, 0
    %v2321 = vsel %vm1317, %v2315, 0
    %v2324 = vsel %vm1317, %v2316, 0
    %v2327 = vsel %vm1333, %v2312, 0
    %2329 = vmatprep.subr.mxu0 0.0
    %2330 = vmatpush1.msra.mxu0 %v2308
    %2331 = vmatprep.subr.mxu0 0.0
    %2332 = vmatpush1.msra.mxu0 %v2309
    %2333 = vmatprep.subr.mxu0 0.0
    %2334 = vmatpush1.msra.mxu0 %v2310
    %2335 = vmatprep.subr.mxu0 0.0
    %2336 = vmatpush1.msra.mxu0 %v2311
    %2337 = vmatprep.subr.mxu0 0.0
    %2338 = vmatpush1.msra.mxu0 %v2327
    %2339 = vmatprep.subr.mxu0 0.0
    %2340 = vmatpush1.msra.mxu0 0.0
    %2341 = vmatprep.subr.mxu0 0.0
    %2342 = vmatpush1.msra.mxu0 0.0
    %2343 = vmatprep.subr.mxu0 0.0
    %2344 = vmatpush1.msra.mxu0 0.0
    %2345 = vmatprep.subr.mxu0 0.0
    %2346 = vmatpush1.msra.mxu0 0.0
    %2347 = vmatprep.subr.mxu0 0.0
    %2348 = vmatpush1.msra.mxu0 0.0
    %2349 = vmatprep.subr.mxu0 0.0
    %2350 = vmatpush1.msra.mxu0 0.0
    %2351 = vmatprep.subr.mxu0 0.0
    %2352 = vmatpush1.msra.mxu0 0.0
    %2353 = vmatprep.subr.mxu0 0.0
    %2354 = vmatpush1.msra.mxu0 0.0
    %2355 = vmatprep.subr.mxu0 0.0
    %2356 = vmatpush1.msra.mxu0 0.0
    %2357 = vmatprep.subr.mxu0 0.0
    %2358 = vmatpush1.msra.mxu0 0.0
    %2359 = vmatprep.subr.mxu0 0.0
    %2360 = vmatpush1.msra.mxu0 0.0
    %2361 = vmatprep.subr.mxu0 0.0
    %2362 = vmatpush1.msra.mxu0 0.0
    %2363 = vmatprep.subr.mxu0 0.0
    %2364 = vmatpush1.msra.mxu0 0.0
    %2365 = vmatprep.subr.mxu0 0.0
    %2366 = vmatpush1.msra.mxu0 0.0
    %2367 = vmatprep.subr.mxu0 0.0
    %2368 = vmatpush1.msra.mxu0 0.0
    %2369 = vmatprep.subr.mxu0 0.0
    %2370 = vmatpush1.msra.mxu0 0.0
    %2371 = vmatprep.subr.mxu0 0.0
    %2372 = vmatpush1.msra.mxu0 0.0
    %2373 = vmatprep.subr.mxu0 0.0
    %2374 = vmatpush1.msra.mxu0 0.0
    %2375 = vmatprep.subr.mxu0 0.0
    %2376 = vmatpush1.msra.mxu0 0.0
    %2377 = vmatprep.subr.mxu0 0.0
    %2378 = vmatpush1.msra.mxu0 0.0
    %2379 = vmatprep.subr.mxu0 0.0
    %2380 = vmatpush1.msra.mxu0 0.0
    %2381 = vmatprep.subr.mxu0 0.0
    %2382 = vmatpush1.msra.mxu0 0.0
    %2383 = vmatprep.subr.mxu0 0.0
    %2384 = vmatpush1.msra.mxu0 0.0
    %2385 = vmatprep.subr.mxu0 0.0
    %2386 = vmatpush1.msra.mxu0 0.0
    %2387 = vmatprep.subr.mxu0 0.0
    %2388 = vmatpush1.msra.mxu0 0.0
    %2389 = vmatprep.subr.mxu0 0.0
    %2390 = vmatpush1.msra.mxu0 0.0
    %2391 = vmatprep.subr.mxu0 0.0
    %2392 = vmatpush1.msra.mxu0 0.0
    %2393 = vmatprep.mubr.f32.mxu0 0.0
    %2394 = vmatmul.mubr.f32.gmra.mrb[0].mxu0 %v2318
    %v2395 = vpop.f32.mrb[0].mxu0
    %v2396 = vadd.f32 0.0, %v2395
    %v2397 = vpop.f32.mrb[0].mxu0
    %2398 = vmatprep.mubr.f32.mxu0 0.0
    %2399 = vmatmul.mubr.f32.gmra.mrb[0].mxu0 %v2321
    %v2400 = vpop.f32.mrb[0].mxu0
    %v2401 = vadd.f32 0.0, %v2400
    %v2402 = vpop.f32.mrb[0].mxu0
    %2403 = vmatprep.mubr.f32.mxu0 0.0
    %2404 = vmatmul.mubr.f32.gmra.mrb[0].mxu0 %v2324
    %v2405 = vpop.f32.mrb[0].mxu0
    %v2406 = vadd.f32 0.0, %v2405
    %v2407 = vpop.f32.mrb[0].mxu0
    %2408 = vdwg.mxu0
    %s2409 = scalar_lea.vmem %s29, 24
    %v2410 = vld [vmem:[%s2409] sm:$0xff]
    %v2411 = vld [vmem:[%s2409 + $0x8] sm:$0xff]
    %v2412 = vld [vmem:[%s2409 + $0x10] sm:$0x3]
    %v2414 = vsel %vm1317, %v2410, 0
    %v2417 = vsel %vm1317, %v2411, 0
    %v2420 = vsel %vm1317, %v2412, 0
    %2422 = vmatprep.subr.mxu0 0.0
    %2423 = vmatpush1.msra.mxu0 %v2308
    %2424 = vmatprep.subr.mxu0 0.0
    %2425 = vmatpush1.msra.mxu0 %v2309
    %2426 = vmatprep.subr.mxu0 0.0
    %2427 = vmatpush1.msra.mxu0 %v2310
    %2428 = vmatprep.subr.mxu0 0.0
    %2429 = vmatpush1.msra.mxu0 %v2311
    %2430 = vmatprep.subr.mxu0 0.0
    %2431 = vmatpush1.msra.mxu0 %v2327
    %2432 = vmatprep.subr.mxu0 0.0
    %2433 = vmatpush1.msra.mxu0 0.0
    %2434 = vmatprep.subr.mxu0 0.0
    %2435 = vmatpush1.msra.mxu0 0.0
    %2436 = vmatprep.subr.mxu0 0.0
    %2437 = vmatpush1.msra.mxu0 0.0
    %2438 = vmatprep.subr.mxu0 0.0
    %2439 = vmatpush1.msra.mxu0 0.0
    %2440 = vmatprep.subr.mxu0 0.0
    %2441 = vmatpush1.msra.mxu0 0.0
    %2442 = vmatprep.subr.mxu0 0.0
    %2443 = vmatpush1.msra.mxu0 0.0
    %2444 = vmatprep.subr.mxu0 0.0
    %2445 = vmatpush1.msra.mxu0 0.0
    %2446 = vmatprep.subr.mxu0 0.0
    %2447 = vmatpush1.msra.mxu0 0.0
    %2448 = vmatprep.subr.mxu0 0.0
    %2449 = vmatpush1.msra.mxu0 0.0
    %2450 = vmatprep.subr.mxu0 0.0
    %2451 = vmatpush1.msra.mxu0 0.0
    %2452 = vmatprep.subr.mxu0 0.0
    %2453 = vmatpush1.msra.mxu0 0.0
    %2454 = vmatprep.subr.mxu0 0.0
    %2455 = vmatpush1.msra.mxu0 0.0
    %2456 = vmatprep.subr.mxu0 0.0
    %2457 = vmatpush1.msra.mxu0 0.0
    %2458 = vmatprep.subr.mxu0 0.0
    %2459 = vmatpush1.msra.mxu0 0.0
    %2460 = vmatprep.subr.mxu0 0.0
    %2461 = vmatpush1.msra.mxu0 0.0
    %2462 = vmatprep.subr.mxu0 0.0
    %2463 = vmatpush1.msra.mxu0 0.0
    %2464 = vmatprep.subr.mxu0 0.0
    %2465 = vmatpush1.msra.mxu0 0.0
    %2466 = vmatprep.subr.mxu0 0.0
    %2467 = vmatpush1.msra.mxu0 0.0
    %2468 = vmatprep.subr.mxu0 0.0
    %2469 = vmatpush1.msra.mxu0 0.0
    %2470 = vmatprep.subr.mxu0 0.0
    %2471 = vmatpush1.msra.mxu0 0.0
    %2472 = vmatprep.subr.mxu0 0.0
    %2473 = vmatpush1.msra.mxu0 0.0
    %2474 = vmatprep.subr.mxu0 0.0
    %2475 = vmatpush1.msra.mxu0 0.0
    %2476 = vmatprep.subr.mxu0 0.0
    %2477 = vmatpush1.msra.mxu0 0.0
    %2478 = vmatprep.subr.mxu0 0.0
    %2479 = vmatpush1.msra.mxu0 0.0
    %2480 = vmatprep.subr.mxu0 0.0
    %2481 = vmatpush1.msra.mxu0 0.0
    %2482 = vmatprep.subr.mxu0 0.0
    %2483 = vmatpush1.msra.mxu0 0.0
    %2484 = vmatprep.subr.mxu0 0.0
    %2485 = vmatpush1.msra.mxu0 0.0
    %2486 = vmatprep.mubr.f32.mxu0 0.0
    %2487 = vmatmul.mubr.f32.gmra.mrb[0].mxu0 %v2414
    %v2488 = vpop.f32.mrb[0].mxu0
    %v2489 = vadd.f32 0.0, %v2488
    %v2490 = vpop.f32.mrb[0].mxu0
    %2491 = vmatprep.mubr.f32.mxu0 0.0
    %2492 = vmatmul.mubr.f32.gmra.mrb[0].mxu0 %v2417
    %v2493 = vpop.f32.mrb[0].mxu0
    %v2494 = vadd.f32 0.0, %v2493
    %v2495 = vpop.f32.mrb[0].mxu0
    %2496 = vmatprep.mubr.f32.mxu0 0.0
    %2497 = vmatmul.mubr.f32.gmra.mrb[0].mxu0 %v2420
    %v2498 = vpop.f32.mrb[0].mxu0
    %v2499 = vadd.f32 0.0, %v2498
    %v2500 = vpop.f32.mrb[0].mxu0
    %2501 = vdwg.mxu0
    %s2502 = scalar_lea.vmem %s29, 48
    %v2503 = vld [vmem:[%s2502] sm:$0xff]
    %v2504 = vld [vmem:[%s2502 + $0x8] sm:$0xff]
    %v2505 = vld [vmem:[%s2502 + $0x10] sm:$0x3]
    %v2507 = vsel %vm1317, %v2503, 0
    %v2510 = vsel %vm1317, %v2504, 0
    %v2513 = vsel %vm1317, %v2505, 0
    %2515 = vmatprep.subr.mxu0 0.0
    %2516 = vmatpush1.msra.mxu0 %v2308
    %2517 = vmatprep.subr.mxu0 0.0
    %2518 = vmatpush1.msra.mxu0 %v2309
    %2519 = vmatprep.subr.mxu0 0.0
    %2520 = vmatpush1.msra.mxu0 %v2310
    %2521 = vmatprep.subr.mxu0 0.0
    %2522 = vmatpush1.msra.mxu0 %v2311
    %2523 = vmatprep.subr.mxu0 0.0
    %2524 = vmatpush1.msra.mxu0 %v2327
    %2525 = vmatprep.subr.mxu0 0.0
    %2526 = vmatpush1.msra.mxu0 0.0
    %2527 = vmatprep.subr.mxu0 0.0
    %2528 = vmatpush1.msra.mxu0 0.0
    %2529 = vmatprep.subr.mxu0 0.0
    %2530 = vmatpush1.msra.mxu0 0.0
    %2531 = vmatprep.subr.mxu0 0.0
    %2532 = vmatpush1.msra.mxu0 0.0
    %2533 = vmatprep.subr.mxu0 0.0
    %2534 = vmatpush1.msra.mxu0 0.0
    %2535 = vmatprep.subr.mxu0 0.0
    %2536 = vmatpush1.msra.mxu0 0.0
    %2537 = vmatprep.subr.mxu0 0.0
    %2538 = vmatpush1.msra.mxu0 0.0
    %2539 = vmatprep.subr.mxu0 0.0
    %2540 = vmatpush1.msra.mxu0 0.0
    %2541 = vmatprep.subr.mxu0 0.0
    %2542 = vmatpush1.msra.mxu0 0.0
    %2543 = vmatprep.subr.mxu0 0.0
    %2544 = vmatpush1.msra.mxu0 0.0
    %2545 = vmatprep.subr.mxu0 0.0
    %2546 = vmatpush1.msra.mxu0 0.0
    %2547 = vmatprep.subr.mxu0 0.0
    %2548 = vmatpush1.msra.mxu0 0.0
    %2549 = vmatprep.subr.mxu0 0.0
    %2550 = vmatpush1.msra.mxu0 0.0
    %2551 = vmatprep.subr.mxu0 0.0
    %2552 = vmatpush1.msra.mxu0 0.0
    %2553 = vmatprep.subr.mxu0 0.0
    %2554 = vmatpush1.msra.mxu0 0.0
    %2555 = vmatprep.subr.mxu0 0.0
    %2556 = vmatpush1.msra.mxu0 0.0
    %2557 = vmatprep.subr.mxu0 0.0
    %2558 = vmatpush1.msra.mxu0 0.0
    %2559 = vmatprep.subr.mxu0 0.0
    %2560 = vmatpush1.msra.mxu0 0.0
    %2561 = vmatprep.subr.mxu0 0.0
    %2562 = vmatpush1.msra.mxu0 0.0
    %2563 = vmatprep.subr.mxu0 0.0
    %2564 = vmatpush1.msra.mxu0 0.0
    %2565 = vmatprep.subr.mxu0 0.0
    %2566 = vmatpush1.msra.mxu0 0.0
    %2567 = vmatprep.subr.mxu0 0.0
    %2568 = vmatpush1.msra.mxu0 0.0
    %2569 = vmatprep.subr.mxu0 0.0
    %2570 = vmatpush1.msra.mxu0 0.0
    %2571 = vmatprep.subr.mxu0 0.0
    %2572 = vmatpush1.msra.mxu0 0.0
    %2573 = vmatprep.subr.mxu0 0.0
    %2574 = vmatpush1.msra.mxu0 0.0
    %2575 = vmatprep.subr.mxu0 0.0
    %2576 = vmatpush1.msra.mxu0 0.0
    %2577 = vmatprep.subr.mxu0 0.0
    %2578 = vmatpush1.msra.mxu0 0.0
    %2579 = vmatprep.mubr.f32.mxu0 0.0
    %2580 = vmatmul.mubr.f32.gmra.mrb[0].mxu0 %v2507
    %v2581 = vpop.f32.mrb[0].mxu0
    %v2582 = vadd.f32 0.0, %v2581
    %v2583 = vpop.f32.mrb[0].mxu0
    %2584 = vmatprep.mubr.f32.mxu0 0.0
    %2585 = vmatmul.mubr.f32.gmra.mrb[0].mxu0 %v2510
    %v2586 = vpop.f32.mrb[0].mxu0
    %v2587 = vadd.f32 0.0, %v2586
    %v2588 = vpop.f32.mrb[0].mxu0
    %2589 = vmatprep.mubr.f32.mxu0 0.0
    %2590 = vmatmul.mubr.f32.gmra.mrb[0].mxu0 %v2513
    %v2591 = vpop.f32.mrb[0].mxu0
    %v2592 = vadd.f32 0.0, %v2591
    %v2593 = vpop.f32.mrb[0].mxu0
    %2594 = vdwg.mxu0
    %2598 = vrot.lane.b32.xlu0 %v2489, 16
    %v2599 = vpop.permute.xlu0 %2598
    %2600 = vrot.lane.b32.xlu0 %v2494, 16
    %v2601 = vpop.permute.xlu0 %2600
    %2602 = vrot.lane.b32.xlu0 %v2499, 16
    %v2603 = vpop.permute.xlu0 %2602
    %2610 = vrot.lane.b32.xlu0 %v2582, 32
    %v2611 = vpop.permute.xlu0 %2610
    %2612 = vrot.lane.b32.xlu0 %v2587, 32
    %v2613 = vpop.permute.xlu0 %2612
    %2614 = vrot.lane.b32.xlu0 %v2592, 32
    %v2615 = vpop.permute.xlu0 %2614
    %v2619 = vsel %vm1178, %v2396, %v2599
    %v2620 = vsel %vm1178, %v2401, %v2601
    %v2621 = vsel %vm1178, %v2406, %v2603
    %v2622 = vsel %vm1184, %v2619, %v2611
    %v2623 = vsel %vm1184, %v2620, %v2613
    %v2624 = vsel %vm1184, %v2621, %v2615
    %v2625 = vld [vmem:[%s27] sm:$0xff]
    %v2626 = vld [vmem:[%s27 + $0x8] sm:$0xff]
    %v2627 = vld [vmem:[%s27 + $0x10] sm:$0xff]
    %v2628 = vld [vmem:[%s27 + $0x18] sm:$0xff]
    %v2629 = vld [vmem:[%s27 + $0x20] sm:$0xff]
    %v2630 = vld [vmem:[%s27 + $0x28] sm:$0xff]
    %v2631 = vlaneseq
    %v2632 = vshrl.u32 %v2631, 7
    %v2633 = vsub.s32 0, %v2632
    %v2634 = vrot.slane %v2313, %v2633
    %v2636 = vsel %vm1200, %v2622, 0
    %v2639 = vsel %vm1200, %v2623, 0
    %v2642 = vsel %vm1200, %v2624, 0
    %2644 = vmatprep.subr.mxu0 0.0
    %2645 = vmatpush1.msra.mxu0 %v2625
    %2646 = vmatprep.subr.mxu0 0.0
    %2647 = vmatpush1.msra.mxu0 %v2626
    %2648 = vmatprep.subr.mxu0 0.0
    %2649 = vmatpush1.msra.mxu0 %v2627
    %2650 = vmatprep.subr.mxu0 0.0
    %2651 = vmatpush1.msra.mxu0 %v2628
    %2652 = vmatprep.subr.mxu0 0.0
    %2653 = vmatpush1.msra.mxu0 %v2629
    %2654 = vmatprep.subr.mxu0 0.0
    %2655 = vmatpush1.msra.mxu0 %v2630
    %2656 = vmatprep.subr.mxu0 0.0
    %2657 = vmatpush1.msra.mxu0 0.0
    %2658 = vmatprep.subr.mxu0 0.0
    %2659 = vmatpush1.msra.mxu0 0.0
    %2660 = vmatprep.subr.mxu0 0.0
    %2661 = vmatpush1.msra.mxu0 0.0
    %2662 = vmatprep.subr.mxu0 0.0
    %2663 = vmatpush1.msra.mxu0 0.0
    %2664 = vmatprep.subr.mxu0 0.0
    %2665 = vmatpush1.msra.mxu0 0.0
    %2666 = vmatprep.subr.mxu0 0.0
    %2667 = vmatpush1.msra.mxu0 0.0
    %2668 = vmatprep.subr.mxu0 0.0
    %2669 = vmatpush1.msra.mxu0 0.0
    %2670 = vmatprep.subr.mxu0 0.0
    %2671 = vmatpush1.msra.mxu0 0.0
    %2672 = vmatprep.subr.mxu0 0.0
    %2673 = vmatpush1.msra.mxu0 0.0
    %2674 = vmatprep.subr.mxu0 0.0
    %2675 = vmatpush1.msra.mxu0 0.0
    %2676 = vmatprep.subr.mxu0 0.0
    %2677 = vmatpush1.msra.mxu0 0.0
    %2678 = vmatprep.subr.mxu0 0.0
    %2679 = vmatpush1.msra.mxu0 0.0
    %2680 = vmatprep.subr.mxu0 0.0
    %2681 = vmatpush1.msra.mxu0 0.0
    %2682 = vmatprep.subr.mxu0 0.0
    %2683 = vmatpush1.msra.mxu0 0.0
    %2684 = vmatprep.subr.mxu0 0.0
    %2685 = vmatpush1.msra.mxu0 0.0
    %2686 = vmatprep.subr.mxu0 0.0
    %2687 = vmatpush1.msra.mxu0 0.0
    %2688 = vmatprep.subr.mxu0 0.0
    %2689 = vmatpush1.msra.mxu0 0.0
    %2690 = vmatprep.subr.mxu0 0.0
    %2691 = vmatpush1.msra.mxu0 0.0
    %2692 = vmatprep.subr.mxu0 0.0
    %2693 = vmatpush1.msra.mxu0 0.0
    %2694 = vmatprep.subr.mxu0 0.0
    %2695 = vmatpush1.msra.mxu0 0.0
    %2696 = vmatprep.subr.mxu0 0.0
    %2697 = vmatpush1.msra.mxu0 0.0
    %2698 = vmatprep.subr.mxu0 0.0
    %2699 = vmatpush1.msra.mxu0 0.0
    %2700 = vmatprep.subr.mxu0 0.0
    %2701 = vmatpush1.msra.mxu0 0.0
    %2702 = vmatprep.subr.mxu0 0.0
    %2703 = vmatpush1.msra.mxu0 0.0
    %2704 = vmatprep.subr.mxu0 0.0
    %2705 = vmatpush1.msra.mxu0 0.0
    %2706 = vmatprep.subr.mxu0 0.0
    %2707 = vmatpush1.msra.mxu0 0.0
    %2708 = vmatprep.mubr.f32.mxu0 0.0
    %2709 = vmatmul.mubr.f32.gmra.mrb[0].mxu0 %v2636
    %v2710 = vpop.f32.mrb[0].mxu0
    %v2711 = vadd.f32 %v2634, %v2710
    %v2712 = vpop.f32.mrb[0].mxu0
    %2713 = vmatprep.mubr.f32.mxu0 0.0
    %2714 = vmatmul.mubr.f32.gmra.mrb[0].mxu0 %v2639
    %v2715 = vpop.f32.mrb[0].mxu0
    %v2716 = vadd.f32 %v2634, %v2715
    %v2717 = vpop.f32.mrb[0].mxu0
    %2718 = vmatprep.mubr.f32.mxu0 0.0
    %2719 = vmatmul.mubr.f32.gmra.mrb[0].mxu0 %v2642
    %v2720 = vpop.f32.mrb[0].mxu0
    %v2721 = vadd.f32 %v2634, %v2720
    %v2722 = vpop.f32.mrb[0].mxu0
    %2723 = vdwg.mxu0
    %v2724 = vmax.f32 %v2711, 0.0
    %v2725 = vmax.f32 %v2716, 0.0
    %v2726 = vmax.f32 %v2721, 0.0
    %v2727 = vld [vmem:[#allocation2 + $0x7] sm:$0x1]
    %v2728 = vld [vmem:[%s33] sm:$0xff]
    %v2729 = vld [vmem:[%s33 + $0x8] sm:$0xff]
    %v2730 = vld [vmem:[%s33 + $0x10] sm:$0x3]
    %vm2731 = vcmask 146432
    %v2733 = vsel %vm2731, %v2728, 0
    %v2736 = vsel %vm2731, %v2729, 0
    %v2739 = vsel %vm2731, %v2730, 0
    %v2742 = vsel %vm1333, %v2726, 0
    %2744 = vmatprep.subr.mxu0 0.0
    %2745 = vmatpush1.msra.mxu0 %v2724
    %2746 = vmatprep.subr.mxu0 0.0
    %2747 = vmatpush1.msra.mxu0 %v2725
    %2748 = vmatprep.subr.mxu0 0.0
    %2749 = vmatpush1.msra.mxu0 %v2742
    %2750 = vmatprep.subr.mxu0 0.0
    %2751 = vmatpush1.msra.mxu0 0.0
    %2752 = vmatprep.subr.mxu0 0.0
    %2753 = vmatpush1.msra.mxu0 0.0
    %2754 = vmatprep.subr.mxu0 0.0
    %2755 = vmatpush1.msra.mxu0 0.0
    %2756 = vmatprep.subr.mxu0 0.0
    %2757 = vmatpush1.msra.mxu0 0.0
    %2758 = vmatprep.subr.mxu0 0.0
    %2759 = vmatpush1.msra.mxu0 0.0
    %2760 = vmatprep.subr.mxu0 0.0
    %2761 = vmatpush1.msra.mxu0 0.0
    %2762 = vmatprep.subr.mxu0 0.0
    %2763 = vmatpush1.msra.mxu0 0.0
    %2764 = vmatprep.subr.mxu0 0.0
    %2765 = vmatpush1.msra.mxu0 0.0
    %2766 = vmatprep.subr.mxu0 0.0
    %2767 = vmatpush1.msra.mxu0 0.0
    %2768 = vmatprep.subr.mxu0 0.0
    %2769 = vmatpush1.msra.mxu0 0.0
    %2770 = vmatprep.subr.mxu0 0.0
    %2771 = vmatpush1.msra.mxu0 0.0
    %2772 = vmatprep.subr.mxu0 0.0
    %2773 = vmatpush1.msra.mxu0 0.0
    %2774 = vmatprep.subr.mxu0 0.0
    %2775 = vmatpush1.msra.mxu0 0.0
    %2776 = vmatprep.subr.mxu0 0.0
    %2777 = vmatpush1.msra.mxu0 0.0
    %2778 = vmatprep.subr.mxu0 0.0
    %2779 = vmatpush1.msra.mxu0 0.0
    %2780 = vmatprep.subr.mxu0 0.0
    %2781 = vmatpush1.msra.mxu0 0.0
    %2782 = vmatprep.subr.mxu0 0.0
    %2783 = vmatpush1.msra.mxu0 0.0
    %2784 = vmatprep.subr.mxu0 0.0
    %2785 = vmatpush1.msra.mxu0 0.0
    %2786 = vmatprep.subr.mxu0 0.0
    %2787 = vmatpush1.msra.mxu0 0.0
    %2788 = vmatprep.subr.mxu0 0.0
    %2789 = vmatpush1.msra.mxu0 0.0
    %2790 = vmatprep.subr.mxu0 0.0
    %2791 = vmatpush1.msra.mxu0 0.0
    %2792 = vmatprep.subr.mxu0 0.0
    %2793 = vmatpush1.msra.mxu0 0.0
    %2794 = vmatprep.subr.mxu0 0.0
    %2795 = vmatpush1.msra.mxu0 0.0
    %2796 = vmatprep.subr.mxu0 0.0
    %2797 = vmatpush1.msra.mxu0 0.0
    %2798 = vmatprep.subr.mxu0 0.0
    %2799 = vmatpush1.msra.mxu0 0.0
    %2800 = vmatprep.subr.mxu0 0.0
    %2801 = vmatpush1.msra.mxu0 0.0
    %2802 = vmatprep.subr.mxu0 0.0
    %2803 = vmatpush1.msra.mxu0 0.0
    %2804 = vmatprep.subr.mxu0 0.0
    %2805 = vmatpush1.msra.mxu0 0.0
    %2806 = vmatprep.subr.mxu0 0.0
    %2807 = vmatpush1.msra.mxu0 0.0
    %2808 = vmatprep.mubr.f32.mxu0 0.0
    %2809 = vmatmul.mubr.f32.gmra.mrb[0].mxu0 %v2733
    %v2810 = vpop.f32.mrb[0].mxu0
    %v2811 = vadd.f32 0.0, %v2810
    %v2812 = vpop.f32.mrb[0].mxu0
    %2813 = vmatprep.mubr.f32.mxu0 0.0
    %2814 = vmatmul.mubr.f32.gmra.mrb[0].mxu0 %v2736
    %v2815 = vpop.f32.mrb[0].mxu0
    %v2816 = vadd.f32 0.0, %v2815
    %v2817 = vpop.f32.mrb[0].mxu0
    %2818 = vmatprep.mubr.f32.mxu0 0.0
    %2819 = vmatmul.mubr.f32.gmra.mrb[0].mxu0 %v2739
    %v2820 = vpop.f32.mrb[0].mxu0
    %v2821 = vadd.f32 0.0, %v2820
    %v2822 = vpop.f32.mrb[0].mxu0
    %2823 = vdwg.mxu0
    %s2824 = scalar_lea.vmem %s33, 24
    %v2825 = vld [vmem:[%s2824] sm:$0xff]
    %v2826 = vld [vmem:[%s2824 + $0x8] sm:$0xff]
    %v2827 = vld [vmem:[%s2824 + $0x10] sm:$0x3]
    %v2829 = vsel %vm2731, %v2825, 0
    %v2832 = vsel %vm2731, %v2826, 0
    %v2835 = vsel %vm2731, %v2827, 0
    %2837 = vmatprep.subr.mxu0 0.0
    %2838 = vmatpush1.msra.mxu0 %v2724
    %2839 = vmatprep.subr.mxu0 0.0
    %2840 = vmatpush1.msra.mxu0 %v2725
    %2841 = vmatprep.subr.mxu0 0.0
    %2842 = vmatpush1.msra.mxu0 %v2742
    %2843 = vmatprep.subr.mxu0 0.0
    %2844 = vmatpush1.msra.mxu0 0.0
    %2845 = vmatprep.subr.mxu0 0.0
    %2846 = vmatpush1.msra.mxu0 0.0
    %2847 = vmatprep.subr.mxu0 0.0
    %2848 = vmatpush1.msra.mxu0 0.0
    %2849 = vmatprep.subr.mxu0 0.0
    %2850 = vmatpush1.msra.mxu0 0.0
    %2851 = vmatprep.subr.mxu0 0.0
    %2852 = vmatpush1.msra.mxu0 0.0
    %2853 = vmatprep.subr.mxu0 0.0
    %2854 = vmatpush1.msra.mxu0 0.0
    %2855 = vmatprep.subr.mxu0 0.0
    %2856 = vmatpush1.msra.mxu0 0.0
    %2857 = vmatprep.subr.mxu0 0.0
    %2858 = vmatpush1.msra.mxu0 0.0
    %2859 = vmatprep.subr.mxu0 0.0
    %2860 = vmatpush1.msra.mxu0 0.0
    %2861 = vmatprep.subr.mxu0 0.0
    %2862 = vmatpush1.msra.mxu0 0.0
    %2863 = vmatprep.subr.mxu0 0.0
    %2864 = vmatpush1.msra.mxu0 0.0
    %2865 = vmatprep.subr.mxu0 0.0
    %2866 = vmatpush1.msra.mxu0 0.0
    %2867 = vmatprep.subr.mxu0 0.0
    %2868 = vmatpush1.msra.mxu0 0.0
    %2869 = vmatprep.subr.mxu0 0.0
    %2870 = vmatpush1.msra.mxu0 0.0
    %2871 = vmatprep.subr.mxu0 0.0
    %2872 = vmatpush1.msra.mxu0 0.0
    %2873 = vmatprep.subr.mxu0 0.0
    %2874 = vmatpush1.msra.mxu0 0.0
    %2875 = vmatprep.subr.mxu0 0.0
    %2876 = vmatpush1.msra.mxu0 0.0
    %2877 = vmatprep.subr.mxu0 0.0
    %2878 = vmatpush1.msra.mxu0 0.0
    %2879 = vmatprep.subr.mxu0 0.0
    %2880 = vmatpush1.msra.mxu0 0.0
    %2881 = vmatprep.subr.mxu0 0.0
    %2882 = vmatpush1.msra.mxu0 0.0
    %2883 = vmatprep.subr.mxu0 0.0
    %2884 = vmatpush1.msra.mxu0 0.0
    %2885 = vmatprep.subr.mxu0 0.0
    %2886 = vmatpush1.msra.mxu0 0.0
    %2887 = vmatprep.subr.mxu0 0.0
    %2888 = vmatpush1.msra.mxu0 0.0
    %2889 = vmatprep.subr.mxu0 0.0
    %2890 = vmatpush1.msra.mxu0 0.0
    %2891 = vmatprep.subr.mxu0 0.0
    %2892 = vmatpush1.msra.mxu0 0.0
    %2893 = vmatprep.subr.mxu0 0.0
    %2894 = vmatpush1.msra.mxu0 0.0
    %2895 = vmatprep.subr.mxu0 0.0
    %2896 = vmatpush1.msra.mxu0 0.0
    %2897 = vmatprep.subr.mxu0 0.0
    %2898 = vmatpush1.msra.mxu0 0.0
    %2899 = vmatprep.subr.mxu0 0.0
    %2900 = vmatpush1.msra.mxu0 0.0
    %2901 = vmatprep.mubr.f32.mxu0 0.0
    %2902 = vmatmul.mubr.f32.gmra.mrb[0].mxu0 %v2829
    %v2903 = vpop.f32.mrb[0].mxu0
    %v2904 = vadd.f32 0.0, %v2903
    %v2905 = vpop.f32.mrb[0].mxu0
    %2906 = vmatprep.mubr.f32.mxu0 0.0
    %2907 = vmatmul.mubr.f32.gmra.mrb[0].mxu0 %v2832
    %v2908 = vpop.f32.mrb[0].mxu0
    %v2909 = vadd.f32 0.0, %v2908
    %v2910 = vpop.f32.mrb[0].mxu0
    %2911 = vmatprep.mubr.f32.mxu0 0.0
    %2912 = vmatmul.mubr.f32.gmra.mrb[0].mxu0 %v2835
    %v2913 = vpop.f32.mrb[0].mxu0
    %v2914 = vadd.f32 0.0, %v2913
    %v2915 = vpop.f32.mrb[0].mxu0
    %2916 = vdwg.mxu0
    %s2917 = scalar_lea.vmem %s33, 48
    %v2918 = vld [vmem:[%s2917] sm:$0xff]
    %v2919 = vld [vmem:[%s2917 + $0x8] sm:$0xff]
    %v2920 = vld [vmem:[%s2917 + $0x10] sm:$0x3]
    %v2922 = vsel %vm2731, %v2918, 0
    %v2925 = vsel %vm2731, %v2919, 0
    %v2928 = vsel %vm2731, %v2920, 0
    %2930 = vmatprep.subr.mxu0 0.0
    %2931 = vmatpush1.msra.mxu0 %v2724
    %2932 = vmatprep.subr.mxu0 0.0
    %2933 = vmatpush1.msra.mxu0 %v2725
    %2934 = vmatprep.subr.mxu0 0.0
    %2935 = vmatpush1.msra.mxu0 %v2742
    %2936 = vmatprep.subr.mxu0 0.0
    %2937 = vmatpush1.msra.mxu0 0.0
    %2938 = vmatprep.subr.mxu0 0.0
    %2939 = vmatpush1.msra.mxu0 0.0
    %2940 = vmatprep.subr.mxu0 0.0
    %2941 = vmatpush1.msra.mxu0 0.0
    %2942 = vmatprep.subr.mxu0 0.0
    %2943 = vmatpush1.msra.mxu0 0.0
    %2944 = vmatprep.subr.mxu0 0.0
    %2945 = vmatpush1.msra.mxu0 0.0
    %2946 = vmatprep.subr.mxu0 0.0
    %2947 = vmatpush1.msra.mxu0 0.0
    %2948 = vmatprep.subr.mxu0 0.0
    %2949 = vmatpush1.msra.mxu0 0.0
    %2950 = vmatprep.subr.mxu0 0.0
    %2951 = vmatpush1.msra.mxu0 0.0
    %2952 = vmatprep.subr.mxu0 0.0
    %2953 = vmatpush1.msra.mxu0 0.0
    %2954 = vmatprep.subr.mxu0 0.0
    %2955 = vmatpush1.msra.mxu0 0.0
    %2956 = vmatprep.subr.mxu0 0.0
    %2957 = vmatpush1.msra.mxu0 0.0
    %2958 = vmatprep.subr.mxu0 0.0
    %2959 = vmatpush1.msra.mxu0 0.0
    %2960 = vmatprep.subr.mxu0 0.0
    %2961 = vmatpush1.msra.mxu0 0.0
    %2962 = vmatprep.subr.mxu0 0.0
    %2963 = vmatpush1.msra.mxu0 0.0
    %2964 = vmatprep.subr.mxu0 0.0
    %2965 = vmatpush1.msra.mxu0 0.0
    %2966 = vmatprep.subr.mxu0 0.0
    %2967 = vmatpush1.msra.mxu0 0.0
    %2968 = vmatprep.subr.mxu0 0.0
    %2969 = vmatpush1.msra.mxu0 0.0
    %2970 = vmatprep.subr.mxu0 0.0
    %2971 = vmatpush1.msra.mxu0 0.0
    %2972 = vmatprep.subr.mxu0 0.0
    %2973 = vmatpush1.msra.mxu0 0.0
    %2974 = vmatprep.subr.mxu0 0.0
    %2975 = vmatpush1.msra.mxu0 0.0
    %2976 = vmatprep.subr.mxu0 0.0
    %2977 = vmatpush1.msra.mxu0 0.0
    %2978 = vmatprep.subr.mxu0 0.0
    %2979 = vmatpush1.msra.mxu0 0.0
    %2980 = vmatprep.subr.mxu0 0.0
    %2981 = vmatpush1.msra.mxu0 0.0
    %2982 = vmatprep.subr.mxu0 0.0
    %2983 = vmatpush1.msra.mxu0 0.0
    %2984 = vmatprep.subr.mxu0 0.0
    %2985 = vmatpush1.msra.mxu0 0.0
    %2986 = vmatprep.subr.mxu0 0.0
    %2987 = vmatpush1.msra.mxu0 0.0
    %2988 = vmatprep.subr.mxu0 0.0
    %2989 = vmatpush1.msra.mxu0 0.0
    %2990 = vmatprep.subr.mxu0 0.0
    %2991 = vmatpush1.msra.mxu0 0.0
    %2992 = vmatprep.subr.mxu0 0.0
    %2993 = vmatpush1.msra.mxu0 0.0
    %2994 = vmatprep.mubr.f32.mxu0 0.0
    %2995 = vmatmul.mubr.f32.gmra.mrb[0].mxu0 %v2922
    %v2996 = vpop.f32.mrb[0].mxu0
    %v2997 = vadd.f32 0.0, %v2996
    %v2998 = vpop.f32.mrb[0].mxu0
    %2999 = vmatprep.mubr.f32.mxu0 0.0
    %3000 = vmatmul.mubr.f32.gmra.mrb[0].mxu0 %v2925
    %v3001 = vpop.f32.mrb[0].mxu0
    %v3002 = vadd.f32 0.0, %v3001
    %v3003 = vpop.f32.mrb[0].mxu0
    %3004 = vmatprep.mubr.f32.mxu0 0.0
    %3005 = vmatmul.mubr.f32.gmra.mrb[0].mxu0 %v2928
    %v3006 = vpop.f32.mrb[0].mxu0
    %v3007 = vadd.f32 0.0, %v3006
    %v3008 = vpop.f32.mrb[0].mxu0
    %3009 = vdwg.mxu0
    %3013 = vrot.lane.b32.xlu0 %v2904, 32
    %v3014 = vpop.permute.xlu0 %3013
    %3015 = vrot.lane.b32.xlu0 %v2909, 32
    %v3016 = vpop.permute.xlu0 %3015
    %3017 = vrot.lane.b32.xlu0 %v2914, 32
    %v3018 = vpop.permute.xlu0 %3017
    %3025 = vrot.lane.b32.xlu0 %v2997, 64
    %v3026 = vpop.permute.xlu0 %3025
    %3027 = vrot.lane.b32.xlu0 %v3002, 64
    %v3028 = vpop.permute.xlu0 %3027
    %3029 = vrot.lane.b32.xlu0 %v3007, 64
    %v3030 = vpop.permute.xlu0 %3029
    %v3034 = vsel %vm1184, %v2811, %v3014
    %v3035 = vsel %vm1184, %v2816, %v3016
    %v3036 = vsel %vm1184, %v2821, %v3018
    %vm3037 = vcmask 523264
    %v3038 = vsel %vm3037, %v3034, %v3026
    %v3039 = vsel %vm3037, %v3035, %v3028
    %v3040 = vsel %vm3037, %v3036, %v3030
    %v3041 = vld [vmem:[%s31] sm:$0xff]
    %v3042 = vld [vmem:[%s31 + $0x8] sm:$0xff]
    %v3043 = vld [vmem:[%s31 + $0x10] sm:$0xff]
    %v3044 = vld [vmem:[%s31 + $0x18] sm:$0xff]
    %v3045 = vld [vmem:[%s31 + $0x20] sm:$0xff]
    %v3046 = vld [vmem:[%s31 + $0x28] sm:$0xff]
    %v3047 = vld [vmem:[%s31 + $0x30] sm:$0xff]
    %v3048 = vld [vmem:[%s31 + $0x38] sm:$0xff]
    %v3049 = vld [vmem:[%s31 + $0x40] sm:$0xff]
    %v3050 = vld [vmem:[%s31 + $0x48] sm:$0xff]
    %v3051 = vld [vmem:[%s31 + $0x50] sm:$0xff]
    %v3052 = vld [vmem:[%s31 + $0x58] sm:$0xff]
    %v3053 = vlaneseq
    %v3054 = vshrl.u32 %v3053, 7
    %v3055 = vsub.s32 0, %v3054
    %v3056 = vrot.slane %v2727, %v3055
    %vm3057 = vcmask 785408
    %v3059 = vsel %vm3057, %v3038, 0
    %v3062 = vsel %vm3057, %v3039, 0
    %v3065 = vsel %vm3057, %v3040, 0
    %3067 = vmatprep.subr.mxu0 0.0
    %3068 = vmatpush1.msra.mxu0 %v3041
    %3069 = vmatprep.subr.mxu0 0.0
    %3070 = vmatpush1.msra.mxu0 %v3042
    %3071 = vmatprep.subr.mxu0 0.0
    %3072 = vmatpush1.msra.mxu0 %v3043
    %3073 = vmatprep.subr.mxu0 0.0
    %3074 = vmatpush1.msra.mxu0 %v3044
    %3075 = vmatprep.subr.mxu0 0.0
    %3076 = vmatpush1.msra.mxu0 %v3045
    %3077 = vmatprep.subr.mxu0 0.0
    %3078 = vmatpush1.msra.mxu0 %v3046
    %3079 = vmatprep.subr.mxu0 0.0
    %3080 = vmatpush1.msra.mxu0 %v3047
    %3081 = vmatprep.subr.mxu0 0.0
    %3082 = vmatpush1.msra.mxu0 %v3048
    %3083 = vmatprep.subr.mxu0 0.0
    %3084 = vmatpush1.msra.mxu0 %v3049
    %3085 = vmatprep.subr.mxu0 0.0
    %3086 = vmatpush1.msra.mxu0 %v3050
    %3087 = vmatprep.subr.mxu0 0.0
    %3088 = vmatpush1.msra.mxu0 %v3051
    %3089 = vmatprep.subr.mxu0 0.0
    %3090 = vmatpush1.msra.mxu0 %v3052
    %3091 = vmatprep.subr.mxu0 0.0
    %3092 = vmatpush1.msra.mxu0 0.0
    %3093 = vmatprep.subr.mxu0 0.0
    %3094 = vmatpush1.msra.mxu0 0.0
    %3095 = vmatprep.subr.mxu0 0.0
    %3096 = vmatpush1.msra.mxu0 0.0
    %3097 = vmatprep.subr.mxu0 0.0
    %3098 = vmatpush1.msra.mxu0 0.0
    %3099 = vmatprep.subr.mxu0 0.0
    %3100 = vmatpush1.msra.mxu0 0.0
    %3101 = vmatprep.subr.mxu0 0.0
    %3102 = vmatpush1.msra.mxu0 0.0
    %3103 = vmatprep.subr.mxu0 0.0
    %3104 = vmatpush1.msra.mxu0 0.0
    %3105 = vmatprep.subr.mxu0 0.0
    %3106 = vmatpush1.msra.mxu0 0.0
    %3107 = vmatprep.subr.mxu0 0.0
    %3108 = vmatpush1.msra.mxu0 0.0
    %3109 = vmatprep.subr.mxu0 0.0
    %3110 = vmatpush1.msra.mxu0 0.0
    %3111 = vmatprep.subr.mxu0 0.0
    %3112 = vmatpush1.msra.mxu0 0.0
    %3113 = vmatprep.subr.mxu0 0.0
    %3114 = vmatpush1.msra.mxu0 0.0
    %3115 = vmatprep.subr.mxu0 0.0
    %3116 = vmatpush1.msra.mxu0 0.0
    %3117 = vmatprep.subr.mxu0 0.0
    %3118 = vmatpush1.msra.mxu0 0.0
    %3119 = vmatprep.subr.mxu0 0.0
    %3120 = vmatpush1.msra.mxu0 0.0
    %3121 = vmatprep.subr.mxu0 0.0
    %3122 = vmatpush1.msra.mxu0 0.0
    %3123 = vmatprep.subr.mxu0 0.0
    %3124 = vmatpush1.msra.mxu0 0.0
    %3125 = vmatprep.subr.mxu0 0.0
    %3126 = vmatpush1.msra.mxu0 0.0
    %3127 = vmatprep.subr.mxu0 0.0
    %3128 = vmatpush1.msra.mxu0 0.0
    %3129 = vmatprep.subr.mxu0 0.0
    %3130 = vmatpush1.msra.mxu0 0.0
    %3131 = vmatprep.mubr.f32.mxu0 0.0
    %3132 = vmatmul.mubr.f32.gmra.mrb[0].mxu0 %v3059
    %v3133 = vpop.f32.mrb[0].mxu0
    %v3134 = vadd.f32 %v3056, %v3133
    %v3135 = vpop.f32.mrb[0].mxu0
    %3136 = vmatprep.mubr.f32.mxu0 0.0
    %3137 = vmatmul.mubr.f32.gmra.mrb[0].mxu0 %v3062
    %v3138 = vpop.f32.mrb[0].mxu0
    %v3139 = vadd.f32 %v3056, %v3138
    %v3140 = vpop.f32.mrb[0].mxu0
    %3141 = vmatprep.mubr.f32.mxu0 0.0
    %3142 = vmatmul.mubr.f32.gmra.mrb[0].mxu0 %v3065
    %v3143 = vpop.f32.mrb[0].mxu0
    %v3144 = vadd.f32 %v3056, %v3143
    %v3145 = vpop.f32.mrb[0].mxu0
    %3146 = vdwg.mxu0
    %v3147 = vld [vmem:[#allocation2 + $0x8] sm:$0x1]
    %v3148 = vld [vmem:[#allocation2 + $0x9] sm:$0x1]
    %v3149 = vand.u32 2147483647, %v3134
    %v3150 = vand.u32 2147483647, %v3139
    %v3151 = vand.u32 2147483647, %v3144
    %v3152 = vld [vmem:[%s39] sm:$0x3]
    %v3154 = vsel %vm2731, %v3152, 0
    %v3157 = vsel %vm1333, %v3151, 0
    %3159 = vmatprep.subr.mxu0 0.0
    %3160 = vmatpush1.msra.mxu0 %v3149
    %3161 = vmatprep.subr.mxu0 0.0
    %3162 = vmatpush1.msra.mxu0 %v3150
    %3163 = vmatprep.subr.mxu0 0.0
    %3164 = vmatpush1.msra.mxu0 %v3157
    %3165 = vmatprep.subr.mxu0 0.0
    %3166 = vmatpush1.msra.mxu0 0.0
    %3167 = vmatprep.subr.mxu0 0.0
    %3168 = vmatpush1.msra.mxu0 0.0
    %3169 = vmatprep.subr.mxu0 0.0
    %3170 = vmatpush1.msra.mxu0 0.0
    %3171 = vmatprep.subr.mxu0 0.0
    %3172 = vmatpush1.msra.mxu0 0.0
    %3173 = vmatprep.subr.mxu0 0.0
    %3174 = vmatpush1.msra.mxu0 0.0
    %3175 = vmatprep.subr.mxu0 0.0
    %3176 = vmatpush1.msra.mxu0 0.0
    %3177 = vmatprep.subr.mxu0 0.0
    %3178 = vmatpush1.msra.mxu0 0.0
    %3179 = vmatprep.subr.mxu0 0.0
    %3180 = vmatpush1.msra.mxu0 0.0
    %3181 = vmatprep.subr.mxu0 0.0
    %3182 = vmatpush1.msra.mxu0 0.0
    %3183 = vmatprep.subr.mxu0 0.0
    %3184 = vmatpush1.msra.mxu0 0.0
    %3185 = vmatprep.subr.mxu0 0.0
    %3186 = vmatpush1.msra.mxu0 0.0
    %3187 = vmatprep.subr.mxu0 0.0
    %3188 = vmatpush1.msra.mxu0 0.0
    %3189 = vmatprep.subr.mxu0 0.0
    %3190 = vmatpush1.msra.mxu0 0.0
    %3191 = vmatprep.subr.mxu0 0.0
    %3192 = vmatpush1.msra.mxu0 0.0
    %3193 = vmatprep.subr.mxu0 0.0
    %3194 = vmatpush1.msra.mxu0 0.0
    %3195 = vmatprep.subr.mxu0 0.0
    %3196 = vmatpush1.msra.mxu0 0.0
    %3197 = vmatprep.subr.mxu0 0.0
    %3198 = vmatpush1.msra.mxu0 0.0
    %3199 = vmatprep.subr.mxu0 0.0
    %3200 = vmatpush1.msra.mxu0 0.0
    %3201 = vmatprep.subr.mxu0 0.0
    %3202 = vmatpush1.msra.mxu0 0.0
    %3203 = vmatprep.subr.mxu0 0.0
    %3204 = vmatpush1.msra.mxu0 0.0
    %3205 = vmatprep.subr.mxu0 0.0
    %3206 = vmatpush1.msra.mxu0 0.0
    %3207 = vmatprep.subr.mxu0 0.0
    %3208 = vmatpush1.msra.mxu0 0.0
    %3209 = vmatprep.subr.mxu0 0.0
    %3210 = vmatpush1.msra.mxu0 0.0
    %3211 = vmatprep.subr.mxu0 0.0
    %3212 = vmatpush1.msra.mxu0 0.0
    %3213 = vmatprep.subr.mxu0 0.0
    %3214 = vmatpush1.msra.mxu0 0.0
    %3215 = vmatprep.subr.mxu0 0.0
    %3216 = vmatpush1.msra.mxu0 0.0
    %3217 = vmatprep.subr.mxu0 0.0
    %3218 = vmatpush1.msra.mxu0 0.0
    %3219 = vmatprep.subr.mxu0 0.0
    %3220 = vmatpush1.msra.mxu0 0.0
    %3221 = vmatprep.subr.mxu0 0.0
    %3222 = vmatpush1.msra.mxu0 0.0
    %3223 = vmatprep.mubr.f32.mxu0 0.0
    %3224 = vmatmul.mubr.f32.gmra.mrb[0].mxu0 %v3154
    %v3225 = vpop.f32.mrb[0].mxu0
    %v3226 = vadd.f32 0.0, %v3225
    %v3227 = vpop.f32.mrb[0].mxu0
    %3228 = vdwg.mxu0
    %v3229 = vld [vmem:[%s35] sm:$0xff]
    %v3230 = vld [vmem:[%s35 + $0x8] sm:$0xff]
    %v3231 = vld [vmem:[%s35 + $0x10] sm:$0xff]
    %v3232 = vld [vmem:[%s35 + $0x18] sm:$0xff]
    %v3233 = vlaneseq
    %v3234 = vshrl.u32 %v3233, 7
    %v3235 = vsub.s32 0, %v3234
    %v3236 = vrot.slane %v3147, %v3235
    %v3238 = vsel %vm1184, %v3226, 0
    %3240 = vmatprep.subr.mxu0 0.0
    %3241 = vmatpush1.msra.mxu0 %v3229
    %3242 = vmatprep.subr.mxu0 0.0
    %3243 = vmatpush1.msra.mxu0 %v3230
    %3244 = vmatprep.subr.mxu0 0.0
    %3245 = vmatpush1.msra.mxu0 %v3231
    %3246 = vmatprep.subr.mxu0 0.0
    %3247 = vmatpush1.msra.mxu0 %v3232
    %3248 = vmatprep.subr.mxu0 0.0
    %3249 = vmatpush1.msra.mxu0 0.0
    %3250 = vmatprep.subr.mxu0 0.0
    %3251 = vmatpush1.msra.mxu0 0.0
    %3252 = vmatprep.subr.mxu0 0.0
    %3253 = vmatpush1.msra.mxu0 0.0
    %3254 = vmatprep.subr.mxu0 0.0
    %3255 = vmatpush1.msra.mxu0 0.0
    %3256 = vmatprep.subr.mxu0 0.0
    %3257 = vmatpush1.msra.mxu0 0.0
    %3258 = vmatprep.subr.mxu0 0.0
    %3259 = vmatpush1.msra.mxu0 0.0
    %3260 = vmatprep.subr.mxu0 0.0
    %3261 = vmatpush1.msra.mxu0 0.0
    %3262 = vmatprep.subr.mxu0 0.0
    %3263 = vmatpush1.msra.mxu0 0.0
    %3264 = vmatprep.subr.mxu0 0.0
    %3265 = vmatpush1.msra.mxu0 0.0
    %3266 = vmatprep.subr.mxu0 0.0
    %3267 = vmatpush1.msra.mxu0 0.0
    %3268 = vmatprep.subr.mxu0 0.0
    %3269 = vmatpush1.msra.mxu0 0.0
    %3270 = vmatprep.subr.mxu0 0.0
    %3271 = vmatpush1.msra.mxu0 0.0
    %3272 = vmatprep.subr.mxu0 0.0
    %3273 = vmatpush1.msra.mxu0 0.0
    %3274 = vmatprep.subr.mxu0 0.0
    %3275 = vmatpush1.msra.mxu0 0.0
    %3276 = vmatprep.subr.mxu0 0.0
    %3277 = vmatpush1.msra.mxu0 0.0
    %3278 = vmatprep.subr.mxu0 0.0
    %3279 = vmatpush1.msra.mxu0 0.0
    %3280 = vmatprep.subr.mxu0 0.0
    %3281 = vmatpush1.msra.mxu0 0.0
    %3282 = vmatprep.subr.mxu0 0.0
    %3283 = vmatpush1.msra.mxu0 0.0
    %3284 = vmatprep.subr.mxu0 0.0
    %3285 = vmatpush1.msra.mxu0 0.0
    %3286 = vmatprep.subr.mxu0 0.0
    %3287 = vmatpush1.msra.mxu0 0.0
    %3288 = vmatprep.subr.mxu0 0.0
    %3289 = vmatpush1.msra.mxu0 0.0
    %3290 = vmatprep.subr.mxu0 0.0
    %3291 = vmatpush1.msra.mxu0 0.0
    %3292 = vmatprep.subr.mxu0 0.0
    %3293 = vmatpush1.msra.mxu0 0.0
    %3294 = vmatprep.subr.mxu0 0.0
    %3295 = vmatpush1.msra.mxu0 0.0
    %3296 = vmatprep.subr.mxu0 0.0
    %3297 = vmatpush1.msra.mxu0 0.0
    %3298 = vmatprep.subr.mxu0 0.0
    %3299 = vmatpush1.msra.mxu0 0.0
    %3300 = vmatprep.subr.mxu0 0.0
    %3301 = vmatpush1.msra.mxu0 0.0
    %3302 = vmatprep.subr.mxu0 0.0
    %3303 = vmatpush1.msra.mxu0 0.0
    %3304 = vmatprep.mubr.f32.mxu0 0.0
    %3305 = vmatmul.mubr.f32.gmra.mrb[0].mxu0 %v3238
    %v3306 = vpop.f32.mrb[0].mxu0
    %v3307 = vadd.f32 %v3236, %v3306
    %v3308 = vpop.f32.mrb[0].mxu0
    %3309 = vdwg.mxu0
    %v3310 = vmax.f32 %v3307, 0.0
    %v3311 = vld [vmem:[%s37] sm:$0xff]
    %v3312 = vld [vmem:[%s37 + $0x8] sm:$0xff]
    %v3313 = vld [vmem:[%s37 + $0x10] sm:$0xff]
    %v3314 = vld [vmem:[%s37 + $0x18] sm:$0xff]
    %v3315 = vlaneseq
    %v3316 = vshrl.u32 %v3315, 7
    %v3317 = vsub.s32 0, %v3316
    %v3318 = vrot.slane %v3148, %v3317
    %v3320 = vsel %vm1184, %v3310, 0
    %3322 = vmatprep.subr.mxu0 0.0
    %3323 = vmatpush1.msra.mxu0 %v3311
    %3324 = vmatprep.subr.mxu0 0.0
    %3325 = vmatpush1.msra.mxu0 %v3312
    %3326 = vmatprep.subr.mxu0 0.0
    %3327 = vmatpush1.msra.mxu0 %v3313
    %3328 = vmatprep.subr.mxu0 0.0
    %3329 = vmatpush1.msra.mxu0 %v3314
    %3330 = vmatprep.subr.mxu0 0.0
    %3331 = vmatpush1.msra.mxu0 0.0
    %3332 = vmatprep.subr.mxu0 0.0
    %3333 = vmatpush1.msra.mxu0 0.0
    %3334 = vmatprep.subr.mxu0 0.0
    %3335 = vmatpush1.msra.mxu0 0.0
    %3336 = vmatprep.subr.mxu0 0.0
    %3337 = vmatpush1.msra.mxu0 0.0
    %3338 = vmatprep.subr.mxu0 0.0
    %3339 = vmatpush1.msra.mxu0 0.0
    %3340 = vmatprep.subr.mxu0 0.0
    %3341 = vmatpush1.msra.mxu0 0.0
    %3342 = vmatprep.subr.mxu0 0.0
    %3343 = vmatpush1.msra.mxu0 0.0
    %3344 = vmatprep.subr.mxu0 0.0
    %3345 = vmatpush1.msra.mxu0 0.0
    %3346 = vmatprep.subr.mxu0 0.0
    %3347 = vmatpush1.msra.mxu0 0.0
    %3348 = vmatprep.subr.mxu0 0.0
    %3349 = vmatpush1.msra.mxu0 0.0
    %3350 = vmatprep.subr.mxu0 0.0
    %3351 = vmatpush1.msra.mxu0 0.0
    %3352 = vmatprep.subr.mxu0 0.0
    %3353 = vmatpush1.msra.mxu0 0.0
    %3354 = vmatprep.subr.mxu0 0.0
    %3355 = vmatpush1.msra.mxu0 0.0
    %3356 = vmatprep.subr.mxu0 0.0
    %3357 = vmatpush1.msra.mxu0 0.0
    %3358 = vmatprep.subr.mxu0 0.0
    %3359 = vmatpush1.msra.mxu0 0.0
    %3360 = vmatprep.subr.mxu0 0.0
    %3361 = vmatpush1.msra.mxu0 0.0
    %3362 = vmatprep.subr.mxu0 0.0
    %3363 = vmatpush1.msra.mxu0 0.0
    %3364 = vmatprep.subr.mxu0 0.0
    %3365 = vmatpush1.msra.mxu0 0.0
    %3366 = vmatprep.subr.mxu0 0.0
    %3367 = vmatpush1.msra.mxu0 0.0
    %3368 = vmatprep.subr.mxu0 0.0
    %3369 = vmatpush1.msra.mxu0 0.0
    %3370 = vmatprep.subr.mxu0 0.0
    %3371 = vmatpush1.msra.mxu0 0.0
    %3372 = vmatprep.subr.mxu0 0.0
    %3373 = vmatpush1.msra.mxu0 0.0
    %3374 = vmatprep.subr.mxu0 0.0
    %3375 = vmatpush1.msra.mxu0 0.0
    %3376 = vmatprep.subr.mxu0 0.0
    %3377 = vmatpush1.msra.mxu0 0.0
    %3378 = vmatprep.subr.mxu0 0.0
    %3379 = vmatpush1.msra.mxu0 0.0
    %3380 = vmatprep.subr.mxu0 0.0
    %3381 = vmatpush1.msra.mxu0 0.0
    %3382 = vmatprep.subr.mxu0 0.0
    %3383 = vmatpush1.msra.mxu0 0.0
    %3384 = vmatprep.subr.mxu0 0.0
    %3385 = vmatpush1.msra.mxu0 0.0
    %3386 = vmatprep.mubr.f32.mxu0 0.0
    %3387 = vmatmul.mubr.f32.gmra.mrb[0].mxu0 %v3320
    %v3388 = vpop.f32.mrb[0].mxu0
    %v3389 = vadd.f32 %v3318, %v3388
    %v3390 = vpop.f32.mrb[0].mxu0
    %3391 = vdwg.mxu0
    %v3392 = vsub.f32 0.0, %v3389
    %v3393 = vmul.f32 %v3392, 1.442695
    %v3394 = vpow.pop %v3393
    %v3395 = vadd.f32 %v3394, 1.0
    %v3396 = vrcp.pop %v3395
    %v3397 = vld [vmem:[%s41] sm:$0xff]
    %v3398 = vld [vmem:[%s41 + $0x8] sm:$0xff]
    %v3399 = vld [vmem:[%s41 + $0x10] sm:$0x3]
    %v3400 = vmul.f32 %v3226, %v3396
    %v3402 = vsel %vm634, %v3397, 0
    %v3405 = vsel %vm634, %v3398, 0
    %v3408 = vsel %vm634, %v3399, 0
    %v3411 = vsel %vm1333, %v3400, 0
    %3413 = vmatprep.subr.mxu0 0.0
    %3414 = vmatpush1.msra.mxu0 %v3411
    %3415 = vmatprep.subr.mxu0 0.0
    %3416 = vmatpush1.msra.mxu0 0.0
    %3417 = vmatprep.subr.mxu0 0.0
    %3418 = vmatpush1.msra.mxu0 0.0
    %3419 = vmatprep.subr.mxu0 0.0
    %3420 = vmatpush1.msra.mxu0 0.0
    %3421 = vmatprep.subr.mxu0 0.0
    %3422 = vmatpush1.msra.mxu0 0.0
    %3423 = vmatprep.subr.mxu0 0.0
    %3424 = vmatpush1.msra.mxu0 0.0
    %3425 = vmatprep.subr.mxu0 0.0
    %3426 = vmatpush1.msra.mxu0 0.0
    %3427 = vmatprep.subr.mxu0 0.0
    %3428 = vmatpush1.msra.mxu0 0.0
    %3429 = vmatprep.subr.mxu0 0.0
    %3430 = vmatpush1.msra.mxu0 0.0
    %3431 = vmatprep.subr.mxu0 0.0
    %3432 = vmatpush1.msra.mxu0 0.0
    %3433 = vmatprep.subr.mxu0 0.0
    %3434 = vmatpush1.msra.mxu0 0.0
    %3435 = vmatprep.subr.mxu0 0.0
    %3436 = vmatpush1.msra.mxu0 0.0
    %3437 = vmatprep.subr.mxu0 0.0
    %3438 = vmatpush1.msra.mxu0 0.0
    %3439 = vmatprep.subr.mxu0 0.0
    %3440 = vmatpush1.msra.mxu0 0.0
    %3441 = vmatprep.subr.mxu0 0.0
    %3442 = vmatpush1.msra.mxu0 0.0
    %3443 = vmatprep.subr.mxu0 0.0
    %3444 = vmatpush1.msra.mxu0 0.0
    %3445 = vmatprep.subr.mxu0 0.0
    %3446 = vmatpush1.msra.mxu0 0.0
    %3447 = vmatprep.subr.mxu0 0.0
    %3448 = vmatpush1.msra.mxu0 0.0
    %3449 = vmatprep.subr.mxu0 0.0
    %3450 = vmatpush1.msra.mxu0 0.0
    %3451 = vmatprep.subr.mxu0 0.0
    %3452 = vmatpush1.msra.mxu0 0.0
    %3453 = vmatprep.subr.mxu0 0.0
    %3454 = vmatpush1.msra.mxu0 0.0
    %3455 = vmatprep.subr.mxu0 0.0
    %3456 = vmatpush1.msra.mxu0 0.0
    %3457 = vmatprep.subr.mxu0 0.0
    %3458 = vmatpush1.msra.mxu0 0.0
    %3459 = vmatprep.subr.mxu0 0.0
    %3460 = vmatpush1.msra.mxu0 0.0
    %3461 = vmatprep.subr.mxu0 0.0
    %3462 = vmatpush1.msra.mxu0 0.0
    %3463 = vmatprep.subr.mxu0 0.0
    %3464 = vmatpush1.msra.mxu0 0.0
    %3465 = vmatprep.subr.mxu0 0.0
    %3466 = vmatpush1.msra.mxu0 0.0
    %3467 = vmatprep.subr.mxu0 0.0
    %3468 = vmatpush1.msra.mxu0 0.0
    %3469 = vmatprep.subr.mxu0 0.0
    %3470 = vmatpush1.msra.mxu0 0.0
    %3471 = vmatprep.subr.mxu0 0.0
    %3472 = vmatpush1.msra.mxu0 0.0
    %3473 = vmatprep.subr.mxu0 0.0
    %3474 = vmatpush1.msra.mxu0 0.0
    %3475 = vmatprep.subr.mxu0 0.0
    %3476 = vmatpush1.msra.mxu0 0.0
    %3477 = vmatprep.mubr.f32.mxu0 0.0
    %3478 = vmatmul.mubr.f32.gmra.mrb[0].mxu0 %v3402
    %v3479 = vpop.f32.mrb[0].mxu0
    %v3480 = vadd.f32 0.0, %v3479
    %v3481 = vpop.f32.mrb[0].mxu0
    %3482 = vmatprep.mubr.f32.mxu0 0.0
    %3483 = vmatmul.mubr.f32.gmra.mrb[0].mxu0 %v3405
    %v3484 = vpop.f32.mrb[0].mxu0
    %v3485 = vadd.f32 0.0, %v3484
    %v3486 = vpop.f32.mrb[0].mxu0
    %3487 = vmatprep.mubr.f32.mxu0 0.0
    %3488 = vmatmul.mubr.f32.gmra.mrb[0].mxu0 %v3408
    %v3489 = vpop.f32.mrb[0].mxu0
    %v3490 = vadd.f32 0.0, %v3489
    %v3491 = vpop.f32.mrb[0].mxu0
    %3492 = vdwg.mxu0
    %v3493 = vsub.f32 0.0, %v3480
    %v3494 = vsub.f32 0.0, %v3485
    %v3495 = vsub.f32 0.0, %v3490
    %v3496 = vmax.f32 %v3493, %v3134
    %v3497 = vmax.f32 %v3494, %v3139
    %v3498 = vmax.f32 %v3495, %v3144
    %v3499 = vmin.f32 %v3480, %v3496
    %v3500 = vmin.f32 %v3485, %v3497
    %v3501 = vmin.f32 %v3490, %v3498
    %v3502 = vsub.f32 %v3134, %v3499
    %v3503 = vsub.f32 %v3139, %v3500
    %v3504 = vsub.f32 %v3144, %v3501
    %v3505 = vld [vmem:[%s43] sm:$0xff]
    %v3506 = vld [vmem:[%s43 + $0x8] sm:$0xff]
    %v3507 = vld [vmem:[#allocation2 + $0xa] sm:$0x1]
    %v3508 = vlaneseq
    %v3509 = vshrl.u32 %v3508, 7
    %v3510 = vsub.s32 0, %v3509
    %v3511 = vrot.slane %v3507, %v3510
    %v3512 = vsel %vm1178, %v2489, 0
    %v3514 = vsel %vm1178, %v2494, 0
    %v3516 = vsel %vm1178, %v2499, 0
    %3518 = vmatprep.subr.mxu0 0.0
    %3519 = vmatpush1.msra.mxu0 %v3505
    %3520 = vmatprep.subr.mxu0 0.0
    %3521 = vmatpush1.msra.mxu0 %v3506
    %3522 = vmatprep.subr.mxu0 0.0
    %3523 = vmatpush1.msra.mxu0 0.0
    %3524 = vmatprep.subr.mxu0 0.0
    %3525 = vmatpush1.msra.mxu0 0.0
    %3526 = vmatprep.subr.mxu0 0.0
    %3527 = vmatpush1.msra.mxu0 0.0
    %3528 = vmatprep.subr.mxu0 0.0
    %3529 = vmatpush1.msra.mxu0 0.0
    %3530 = vmatprep.subr.mxu0 0.0
    %3531 = vmatpush1.msra.mxu0 0.0
    %3532 = vmatprep.subr.mxu0 0.0
    %3533 = vmatpush1.msra.mxu0 0.0
    %3534 = vmatprep.subr.mxu0 0.0
    %3535 = vmatpush1.msra.mxu0 0.0
    %3536 = vmatprep.subr.mxu0 0.0
    %3537 = vmatpush1.msra.mxu0 0.0
    %3538 = vmatprep.subr.mxu0 0.0
    %3539 = vmatpush1.msra.mxu0 0.0
    %3540 = vmatprep.subr.mxu0 0.0
    %3541 = vmatpush1.msra.mxu0 0.0
    %3542 = vmatprep.subr.mxu0 0.0
    %3543 = vmatpush1.msra.mxu0 0.0
    %3544 = vmatprep.subr.mxu0 0.0
    %3545 = vmatpush1.msra.mxu0 0.0
    %3546 = vmatprep.subr.mxu0 0.0
    %3547 = vmatpush1.msra.mxu0 0.0
    %3548 = vmatprep.subr.mxu0 0.0
    %3549 = vmatpush1.msra.mxu0 0.0
    %3550 = vmatprep.subr.mxu0 0.0
    %3551 = vmatpush1.msra.mxu0 0.0
    %3552 = vmatprep.subr.mxu0 0.0
    %3553 = vmatpush1.msra.mxu0 0.0
    %3554 = vmatprep.subr.mxu0 0.0
    %3555 = vmatpush1.msra.mxu0 0.0
    %3556 = vmatprep.subr.mxu0 0.0
    %3557 = vmatpush1.msra.mxu0 0.0
    %3558 = vmatprep.subr.mxu0 0.0
    %3559 = vmatpush1.msra.mxu0 0.0
    %3560 = vmatprep.subr.mxu0 0.0
    %3561 = vmatpush1.msra.mxu0 0.0
    %3562 = vmatprep.subr.mxu0 0.0
    %3563 = vmatpush1.msra.mxu0 0.0
    %3564 = vmatprep.subr.mxu0 0.0
    %3565 = vmatpush1.msra.mxu0 0.0
    %3566 = vmatprep.subr.mxu0 0.0
    %3567 = vmatpush1.msra.mxu0 0.0
    %3568 = vmatprep.subr.mxu0 0.0
    %3569 = vmatpush1.msra.mxu0 0.0
    %3570 = vmatprep.subr.mxu0 0.0
    %3571 = vmatpush1.msra.mxu0 0.0
    %3572 = vmatprep.subr.mxu0 0.0
    %3573 = vmatpush1.msra.mxu0 0.0
    %3574 = vmatprep.subr.mxu0 0.0
    %3575 = vmatpush1.msra.mxu0 0.0
    %3576 = vmatprep.subr.mxu0 0.0
    %3577 = vmatpush1.msra.mxu0 0.0
    %3578 = vmatprep.subr.mxu0 0.0
    %3579 = vmatpush1.msra.mxu0 0.0
    %3580 = vmatprep.subr.mxu0 0.0
    %3581 = vmatpush1.msra.mxu0 0.0
    %3582 = vmatprep.mubr.f32.mxu0 0.0
    %3583 = vmatmul.mubr.f32.gmra.mrb[0].mxu0 %v3512
    %v3584 = vpop.f32.mrb[0].mxu0
    %v3585 = vadd.f32 %v3511, %v3584
    %v3586 = vpop.f32.mrb[0].mxu0
    %3587 = vmatprep.mubr.f32.mxu0 0.0
    %3588 = vmatmul.mubr.f32.gmra.mrb[0].mxu0 %v3514
    %v3589 = vpop.f32.mrb[0].mxu0
    %v3590 = vadd.f32 %v3511, %v3589
    %v3591 = vpop.f32.mrb[0].mxu0
    %3592 = vmatprep.mubr.f32.mxu0 0.0
    %3593 = vmatmul.mubr.f32.gmra.mrb[0].mxu0 %v3516
    %v3594 = vpop.f32.mrb[0].mxu0
    %v3595 = vadd.f32 %v3511, %v3594
    %v3596 = vpop.f32.mrb[0].mxu0
    %3597 = vdwg.mxu0
    %v3598 = vadd.f32 %v3502, %v3585
    %v3599 = vadd.f32 %v3503, %v3590
    %v3600 = vadd.f32 %v3504, %v3595
    %v3601 = vmax.f32 %v3598, 0.0
    %v3602 = vmax.f32 %v3599, 0.0
    %v3603 = vmax.f32 %v3600, 0.0
    %v3604 = vld [vmem:[#allocation2 + $0xb] sm:$0x1]
    %v3605 = vld [vmem:[%s47] sm:$0xff]
    %v3606 = vld [vmem:[%s47 + $0x8] sm:$0x3]
    %v3608 = vsel %vm2731, %v3605, 0
    %v3611 = vsel %vm2731, %v3606, 0
    %v3614 = vsel %vm1333, %v3603, 0
    %3616 = vmatprep.subr.mxu0 0.0
    %3617 = vmatpush1.msra.mxu0 %v3601
    %3618 = vmatprep.subr.mxu0 0.0
    %3619 = vmatpush1.msra.mxu0 %v3602
    %3620 = vmatprep.subr.mxu0 0.0
    %3621 = vmatpush1.msra.mxu0 %v3614
    %3622 = vmatprep.subr.mxu0 0.0
    %3623 = vmatpush1.msra.mxu0 0.0
    %3624 = vmatprep.subr.mxu0 0.0
    %3625 = vmatpush1.msra.mxu0 0.0
    %3626 = vmatprep.subr.mxu0 0.0
    %3627 = vmatpush1.msra.mxu0 0.0
    %3628 = vmatprep.subr.mxu0 0.0
    %3629 = vmatpush1.msra.mxu0 0.0
    %3630 = vmatprep.subr.mxu0 0.0
    %3631 = vmatpush1.msra.mxu0 0.0
    %3632 = vmatprep.subr.mxu0 0.0
    %3633 = vmatpush1.msra.mxu0 0.0
    %3634 = vmatprep.subr.mxu0 0.0
    %3635 = vmatpush1.msra.mxu0 0.0
    %3636 = vmatprep.subr.mxu0 0.0
    %3637 = vmatpush1.msra.mxu0 0.0
    %3638 = vmatprep.subr.mxu0 0.0
    %3639 = vmatpush1.msra.mxu0 0.0
    %3640 = vmatprep.subr.mxu0 0.0
    %3641 = vmatpush1.msra.mxu0 0.0
    %3642 = vmatprep.subr.mxu0 0.0
    %3643 = vmatpush1.msra.mxu0 0.0
    %3644 = vmatprep.subr.mxu0 0.0
    %3645 = vmatpush1.msra.mxu0 0.0
    %3646 = vmatprep.subr.mxu0 0.0
    %3647 = vmatpush1.msra.mxu0 0.0
    %3648 = vmatprep.subr.mxu0 0.0
    %3649 = vmatpush1.msra.mxu0 0.0
    %3650 = vmatprep.subr.mxu0 0.0
    %3651 = vmatpush1.msra.mxu0 0.0
    %3652 = vmatprep.subr.mxu0 0.0
    %3653 = vmatpush1.msra.mxu0 0.0
    %3654 = vmatprep.subr.mxu0 0.0
    %3655 = vmatpush1.msra.mxu0 0.0
    %3656 = vmatprep.subr.mxu0 0.0
    %3657 = vmatpush1.msra.mxu0 0.0
    %3658 = vmatprep.subr.mxu0 0.0
    %3659 = vmatpush1.msra.mxu0 0.0
    %3660 = vmatprep.subr.mxu0 0.0
    %3661 = vmatpush1.msra.mxu0 0.0
    %3662 = vmatprep.subr.mxu0 0.0
    %3663 = vmatpush1.msra.mxu0 0.0
    %3664 = vmatprep.subr.mxu0 0.0
    %3665 = vmatpush1.msra.mxu0 0.0
    %3666 = vmatprep.subr.mxu0 0.0
    %3667 = vmatpush1.msra.mxu0 0.0
    %3668 = vmatprep.subr.mxu0 0.0
    %3669 = vmatpush1.msra.mxu0 0.0
    %3670 = vmatprep.subr.mxu0 0.0
    %3671 = vmatpush1.msra.mxu0 0.0
    %3672 = vmatprep.subr.mxu0 0.0
    %3673 = vmatpush1.msra.mxu0 0.0
    %3674 = vmatprep.subr.mxu0 0.0
    %3675 = vmatpush1.msra.mxu0 0.0
    %3676 = vmatprep.subr.mxu0 0.0
    %3677 = vmatpush1.msra.mxu0 0.0
    %3678 = vmatprep.subr.mxu0 0.0
    %3679 = vmatpush1.msra.mxu0 0.0
    %3680 = vmatprep.mubr.f32.mxu0 0.0
    %3681 = vmatmul.mubr.f32.gmra.mrb[0].mxu0 %v3608
    %v3682 = vpop.f32.mrb[0].mxu0
    %v3683 = vadd.f32 0.0, %v3682
    %v3684 = vpop.f32.mrb[0].mxu0
    %3685 = vmatprep.mubr.f32.mxu0 0.0
    %3686 = vmatmul.mubr.f32.gmra.mrb[0].mxu0 %v3611
    %v3687 = vpop.f32.mrb[0].mxu0
    %v3688 = vadd.f32 0.0, %v3687
    %v3689 = vpop.f32.mrb[0].mxu0
    %3690 = vdwg.mxu0
    %s3691 = scalar_lea.vmem %s47, 16
    %v3692 = vld [vmem:[%s3691] sm:$0xff]
    %v3693 = vld [vmem:[%s3691 + $0x8] sm:$0x3]
    %v3695 = vsel %vm2731, %v3692, 0
    %v3698 = vsel %vm2731, %v3693, 0
    %3700 = vmatprep.subr.mxu0 0.0
    %3701 = vmatpush1.msra.mxu0 %v3601
    %3702 = vmatprep.subr.mxu0 0.0
    %3703 = vmatpush1.msra.mxu0 %v3602
    %3704 = vmatprep.subr.mxu0 0.0
    %3705 = vmatpush1.msra.mxu0 %v3614
    %3706 = vmatprep.subr.mxu0 0.0
    %3707 = vmatpush1.msra.mxu0 0.0
    %3708 = vmatprep.subr.mxu0 0.0
    %3709 = vmatpush1.msra.mxu0 0.0
    %3710 = vmatprep.subr.mxu0 0.0
    %3711 = vmatpush1.msra.mxu0 0.0
    %3712 = vmatprep.subr.mxu0 0.0
    %3713 = vmatpush1.msra.mxu0 0.0
    %3714 = vmatprep.subr.mxu0 0.0
    %3715 = vmatpush1.msra.mxu0 0.0
    %3716 = vmatprep.subr.mxu0 0.0
    %3717 = vmatpush1.msra.mxu0 0.0
    %3718 = vmatprep.subr.mxu0 0.0
    %3719 = vmatpush1.msra.mxu0 0.0
    %3720 = vmatprep.subr.mxu0 0.0
    %3721 = vmatpush1.msra.mxu0 0.0
    %3722 = vmatprep.subr.mxu0 0.0
    %3723 = vmatpush1.msra.mxu0 0.0
    %3724 = vmatprep.subr.mxu0 0.0
    %3725 = vmatpush1.msra.mxu0 0.0
    %3726 = vmatprep.subr.mxu0 0.0
    %3727 = vmatpush1.msra.mxu0 0.0
    %3728 = vmatprep.subr.mxu0 0.0
    %3729 = vmatpush1.msra.mxu0 0.0
    %3730 = vmatprep.subr.mxu0 0.0
    %3731 = vmatpush1.msra.mxu0 0.0
    %3732 = vmatprep.subr.mxu0 0.0
    %3733 = vmatpush1.msra.mxu0 0.0
    %3734 = vmatprep.subr.mxu0 0.0
    %3735 = vmatpush1.msra.mxu0 0.0
    %3736 = vmatprep.subr.mxu0 0.0
    %3737 = vmatpush1.msra.mxu0 0.0
    %3738 = vmatprep.subr.mxu0 0.0
    %3739 = vmatpush1.msra.mxu0 0.0
    %3740 = vmatprep.subr.mxu0 0.0
    %3741 = vmatpush1.msra.mxu0 0.0
    %3742 = vmatprep.subr.mxu0 0.0
    %3743 = vmatpush1.msra.mxu0 0.0
    %3744 = vmatprep.subr.mxu0 0.0
    %3745 = vmatpush1.msra.mxu0 0.0
    %3746 = vmatprep.subr.mxu0 0.0
    %3747 = vmatpush1.msra.mxu0 0.0
    %3748 = vmatprep.subr.mxu0 0.0
    %3749 = vmatpush1.msra.mxu0 0.0
    %3750 = vmatprep.subr.mxu0 0.0
    %3751 = vmatpush1.msra.mxu0 0.0
    %3752 = vmatprep.subr.mxu0 0.0
    %3753 = vmatpush1.msra.mxu0 0.0
    %3754 = vmatprep.subr.mxu0 0.0
    %3755 = vmatpush1.msra.mxu0 0.0
    %3756 = vmatprep.subr.mxu0 0.0
    %3757 = vmatpush1.msra.mxu0 0.0
    %3758 = vmatprep.subr.mxu0 0.0
    %3759 = vmatpush1.msra.mxu0 0.0
    %3760 = vmatprep.subr.mxu0 0.0
    %3761 = vmatpush1.msra.mxu0 0.0
    %3762 = vmatprep.subr.mxu0 0.0
    %3763 = vmatpush1.msra.mxu0 0.0
    %3764 = vmatprep.mubr.f32.mxu0 0.0
    %3765 = vmatmul.mubr.f32.gmra.mrb[0].mxu0 %v3695
    %v3766 = vpop.f32.mrb[0].mxu0
    %v3767 = vadd.f32 0.0, %v3766
    %v3768 = vpop.f32.mrb[0].mxu0
    %3769 = vmatprep.mubr.f32.mxu0 0.0
    %3770 = vmatmul.mubr.f32.gmra.mrb[0].mxu0 %v3698
    %v3771 = vpop.f32.mrb[0].mxu0
    %v3772 = vadd.f32 0.0, %v3771
    %v3773 = vpop.f32.mrb[0].mxu0
    %3774 = vdwg.mxu0
    %s3775 = scalar_lea.vmem %s47, 32
    %v3776 = vld [vmem:[%s3775] sm:$0xff]
    %v3777 = vld [vmem:[%s3775 + $0x8] sm:$0x3]
    %v3779 = vsel %vm2731, %v3776, 0
    %v3782 = vsel %vm2731, %v3777, 0
    %3784 = vmatprep.subr.mxu0 0.0
    %3785 = vmatpush1.msra.mxu0 %v3601
    %3786 = vmatprep.subr.mxu0 0.0
    %3787 = vmatpush1.msra.mxu0 %v3602
    %3788 = vmatprep.subr.mxu0 0.0
    %3789 = vmatpush1.msra.mxu0 %v3614
    %3790 = vmatprep.subr.mxu0 0.0
    %3791 = vmatpush1.msra.mxu0 0.0
    %3792 = vmatprep.subr.mxu0 0.0
    %3793 = vmatpush1.msra.mxu0 0.0
    %3794 = vmatprep.subr.mxu0 0.0
    %3795 = vmatpush1.msra.mxu0 0.0
    %3796 = vmatprep.subr.mxu0 0.0
    %3797 = vmatpush1.msra.mxu0 0.0
    %3798 = vmatprep.subr.mxu0 0.0
    %3799 = vmatpush1.msra.mxu0 0.0
    %3800 = vmatprep.subr.mxu0 0.0
    %3801 = vmatpush1.msra.mxu0 0.0
    %3802 = vmatprep.subr.mxu0 0.0
    %3803 = vmatpush1.msra.mxu0 0.0
    %3804 = vmatprep.subr.mxu0 0.0
    %3805 = vmatpush1.msra.mxu0 0.0
    %3806 = vmatprep.subr.mxu0 0.0
    %3807 = vmatpush1.msra.mxu0 0.0
    %3808 = vmatprep.subr.mxu0 0.0
    %3809 = vmatpush1.msra.mxu0 0.0
    %3810 = vmatprep.subr.mxu0 0.0
    %3811 = vmatpush1.msra.mxu0 0.0
    %3812 = vmatprep.subr.mxu0 0.0
    %3813 = vmatpush1.msra.mxu0 0.0
    %3814 = vmatprep.subr.mxu0 0.0
    %3815 = vmatpush1.msra.mxu0 0.0
    %3816 = vmatprep.subr.mxu0 0.0
    %3817 = vmatpush1.msra.mxu0 0.0
    %3818 = vmatprep.subr.mxu0 0.0
    %3819 = vmatpush1.msra.mxu0 0.0
    %3820 = vmatprep.subr.mxu0 0.0
    %3821 = vmatpush1.msra.mxu0 0.0
    %3822 = vmatprep.subr.mxu0 0.0
    %3823 = vmatpush1.msra.mxu0 0.0
    %3824 = vmatprep.subr.mxu0 0.0
    %3825 = vmatpush1.msra.mxu0 0.0
    %3826 = vmatprep.subr.mxu0 0.0
    %3827 = vmatpush1.msra.mxu0 0.0
    %3828 = vmatprep.subr.mxu0 0.0
    %3829 = vmatpush1.msra.mxu0 0.0
    %3830 = vmatprep.subr.mxu0 0.0
    %3831 = vmatpush1.msra.mxu0 0.0
    %3832 = vmatprep.subr.mxu0 0.0
    %3833 = vmatpush1.msra.mxu0 0.0
    %3834 = vmatprep.subr.mxu0 0.0
    %3835 = vmatpush1.msra.mxu0 0.0
    %3836 = vmatprep.subr.mxu0 0.0
    %3837 = vmatpush1.msra.mxu0 0.0
    %3838 = vmatprep.subr.mxu0 0.0
    %3839 = vmatpush1.msra.mxu0 0.0
    %3840 = vmatprep.subr.mxu0 0.0
    %3841 = vmatpush1.msra.mxu0 0.0
    %3842 = vmatprep.subr.mxu0 0.0
    %3843 = vmatpush1.msra.mxu0 0.0
    %3844 = vmatprep.subr.mxu0 0.0
    %3845 = vmatpush1.msra.mxu0 0.0
    %3846 = vmatprep.subr.mxu0 0.0
    %3847 = vmatpush1.msra.mxu0 0.0
    %3848 = vmatprep.mubr.f32.mxu0 0.0
    %3849 = vmatmul.mubr.f32.gmra.mrb[0].mxu0 %v3779
    %v3850 = vpop.f32.mrb[0].mxu0
    %v3851 = vadd.f32 0.0, %v3850
    %v3852 = vpop.f32.mrb[0].mxu0
    %3853 = vmatprep.mubr.f32.mxu0 0.0
    %3854 = vmatmul.mubr.f32.gmra.mrb[0].mxu0 %v3782
    %v3855 = vpop.f32.mrb[0].mxu0
    %v3856 = vadd.f32 0.0, %v3855
    %v3857 = vpop.f32.mrb[0].mxu0
    %3858 = vdwg.mxu0
    %3861 = vrot.lane.b32.xlu0 %v3767, 32
    %v3862 = vpop.permute.xlu0 %3861
    %3863 = vrot.lane.b32.xlu0 %v3772, 32
    %v3864 = vpop.permute.xlu0 %3863
    %3869 = vrot.lane.b32.xlu0 %v3851, 64
    %v3870 = vpop.permute.xlu0 %3869
    %3871 = vrot.lane.b32.xlu0 %v3856, 64
    %v3872 = vpop.permute.xlu0 %3871
    %v3875 = vsel %vm1184, %v3683, %v3862
    %v3876 = vsel %vm1184, %v3688, %v3864
    %v3877 = vsel %vm3037, %v3875, %v3870
    %v3878 = vsel %vm3037, %v3876, %v3872
    %v3879 = vld [vmem:[%s45] sm:$0xff]
    %v3880 = vld [vmem:[%s45 + $0x8] sm:$0xff]
    %v3881 = vld [vmem:[%s45 + $0x10] sm:$0xff]
    %v3882 = vld [vmem:[%s45 + $0x18] sm:$0xff]
    %v3883 = vld [vmem:[%s45 + $0x20] sm:$0xff]
    %v3884 = vld [vmem:[%s45 + $0x28] sm:$0xff]
    %v3885 = vld [vmem:[%s45 + $0x30] sm:$0xff]
    %v3886 = vld [vmem:[%s45 + $0x38] sm:$0xff]
    %v3887 = vld [vmem:[%s45 + $0x40] sm:$0xff]
    %v3888 = vld [vmem:[%s45 + $0x48] sm:$0xff]
    %v3889 = vld [vmem:[%s45 + $0x50] sm:$0xff]
    %v3890 = vld [vmem:[%s45 + $0x58] sm:$0xff]
    %v3891 = vlaneseq
    %v3892 = vshrl.u32 %v3891, 7
    %v3893 = vsub.s32 0, %v3892
    %v3894 = vrot.slane %v3604, %v3893
    %v3896 = vsel %vm3057, %v3877, 0
    %v3899 = vsel %vm3057, %v3878, 0
    %3901 = vmatprep.subr.mxu0 0.0
    %3902 = vmatpush1.msra.mxu0 %v3879
    %3903 = vmatprep.subr.mxu0 0.0
    %3904 = vmatpush1.msra.mxu0 %v3880
    %3905 = vmatprep.subr.mxu0 0.0
    %3906 = vmatpush1.msra.mxu0 %v3881
    %3907 = vmatprep.subr.mxu0 0.0
    %3908 = vmatpush1.msra.mxu0 %v3882
    %3909 = vmatprep.subr.mxu0 0.0
    %3910 = vmatpush1.msra.mxu0 %v3883
    %3911 = vmatprep.subr.mxu0 0.0
    %3912 = vmatpush1.msra.mxu0 %v3884
    %3913 = vmatprep.subr.mxu0 0.0
    %3914 = vmatpush1.msra.mxu0 %v3885
    %3915 = vmatprep.subr.mxu0 0.0
    %3916 = vmatpush1.msra.mxu0 %v3886
    %3917 = vmatprep.subr.mxu0 0.0
    %3918 = vmatpush1.msra.mxu0 %v3887
    %3919 = vmatprep.subr.mxu0 0.0
    %3920 = vmatpush1.msra.mxu0 %v3888
    %3921 = vmatprep.subr.mxu0 0.0
    %3922 = vmatpush1.msra.mxu0 %v3889
    %3923 = vmatprep.subr.mxu0 0.0
    %3924 = vmatpush1.msra.mxu0 %v3890
    %3925 = vmatprep.subr.mxu0 0.0
    %3926 = vmatpush1.msra.mxu0 0.0
    %3927 = vmatprep.subr.mxu0 0.0
    %3928 = vmatpush1.msra.mxu0 0.0
    %3929 = vmatprep.subr.mxu0 0.0
    %3930 = vmatpush1.msra.mxu0 0.0
    %3931 = vmatprep.subr.mxu0 0.0
    %3932 = vmatpush1.msra.mxu0 0.0
    %3933 = vmatprep.subr.mxu0 0.0
    %3934 = vmatpush1.msra.mxu0 0.0
    %3935 = vmatprep.subr.mxu0 0.0
    %3936 = vmatpush1.msra.mxu0 0.0
    %3937 = vmatprep.subr.mxu0 0.0
    %3938 = vmatpush1.msra.mxu0 0.0
    %3939 = vmatprep.subr.mxu0 0.0
    %3940 = vmatpush1.msra.mxu0 0.0
    %3941 = vmatprep.subr.mxu0 0.0
    %3942 = vmatpush1.msra.mxu0 0.0
    %3943 = vmatprep.subr.mxu0 0.0
    %3944 = vmatpush1.msra.mxu0 0.0
    %3945 = vmatprep.subr.mxu0 0.0
    %3946 = vmatpush1.msra.mxu0 0.0
    %3947 = vmatprep.subr.mxu0 0.0
    %3948 = vmatpush1.msra.mxu0 0.0
    %3949 = vmatprep.subr.mxu0 0.0
    %3950 = vmatpush1.msra.mxu0 0.0
    %3951 = vmatprep.subr.mxu0 0.0
    %3952 = vmatpush1.msra.mxu0 0.0
    %3953 = vmatprep.subr.mxu0 0.0
    %3954 = vmatpush1.msra.mxu0 0.0
    %3955 = vmatprep.subr.mxu0 0.0
    %3956 = vmatpush1.msra.mxu0 0.0
    %3957 = vmatprep.subr.mxu0 0.0
    %3958 = vmatpush1.msra.mxu0 0.0
    %3959 = vmatprep.subr.mxu0 0.0
    %3960 = vmatpush1.msra.mxu0 0.0
    %3961 = vmatprep.subr.mxu0 0.0
    %3962 = vmatpush1.msra.mxu0 0.0
    %3963 = vmatprep.subr.mxu0 0.0
    %3964 = vmatpush1.msra.mxu0 0.0
    %3965 = vmatprep.mubr.f32.mxu0 0.0
    %3966 = vmatmul.mubr.f32.gmra.mrb[0].mxu0 %v3896
    %v3967 = vpop.f32.mrb[0].mxu0
    %v3968 = vadd.f32 %v3894, %v3967
    %v3969 = vpop.f32.mrb[0].mxu0
    %3970 = vmatprep.mubr.f32.mxu0 0.0
    %3971 = vmatmul.mubr.f32.gmra.mrb[0].mxu0 %v3899
    %v3972 = vpop.f32.mrb[0].mxu0
    %v3973 = vadd.f32 %v3894, %v3972
    %v3974 = vpop.f32.mrb[0].mxu0
    %3975 = vdwg.mxu0
    %v3976 = vmax.f32 %v3968, 0.0
    %v3977 = vmax.f32 %v3973, 0.0
    %v3978 = vld [vmem:[#allocation2 + $0xc] sm:$0x1]
    %v3979 = vld [vmem:[%s51] sm:$0xff]
    %v3980 = vld [vmem:[%s51 + $0x8] sm:$0x3]
    %vm3981 = vcmask 80896
    %v3983 = vsel %vm3981, %v3979, 0
    %v3986 = vsel %vm3981, %v3980, 0
    %v3989 = vsel %vm1333, %v3977, 0
    %3991 = vmatprep.subr.mxu0 0.0
    %3992 = vmatpush1.msra.mxu0 %v3976
    %3993 = vmatprep.subr.mxu0 0.0
    %3994 = vmatpush1.msra.mxu0 %v3989
    %3995 = vmatprep.subr.mxu0 0.0
    %3996 = vmatpush1.msra.mxu0 0.0
    %3997 = vmatprep.subr.mxu0 0.0
    %3998 = vmatpush1.msra.mxu0 0.0
    %3999 = vmatprep.subr.mxu0 0.0
    %4000 = vmatpush1.msra.mxu0 0.0
    %4001 = vmatprep.subr.mxu0 0.0
    %4002 = vmatpush1.msra.mxu0 0.0
    %4003 = vmatprep.subr.mxu0 0.0
    %4004 = vmatpush1.msra.mxu0 0.0
    %4005 = vmatprep.subr.mxu0 0.0
    %4006 = vmatpush1.msra.mxu0 0.0
    %4007 = vmatprep.subr.mxu0 0.0
    %4008 = vmatpush1.msra.mxu0 0.0
    %4009 = vmatprep.subr.mxu0 0.0
    %4010 = vmatpush1.msra.mxu0 0.0
    %4011 = vmatprep.subr.mxu0 0.0
    %4012 = vmatpush1.msra.mxu0 0.0
    %4013 = vmatprep.subr.mxu0 0.0
    %4014 = vmatpush1.msra.mxu0 0.0
    %4015 = vmatprep.subr.mxu0 0.0
    %4016 = vmatpush1.msra.mxu0 0.0
    %4017 = vmatprep.subr.mxu0 0.0
    %4018 = vmatpush1.msra.mxu0 0.0
    %4019 = vmatprep.subr.mxu0 0.0
    %4020 = vmatpush1.msra.mxu0 0.0
    %4021 = vmatprep.subr.mxu0 0.0
    %4022 = vmatpush1.msra.mxu0 0.0
    %4023 = vmatprep.subr.mxu0 0.0
    %4024 = vmatpush1.msra.mxu0 0.0
    %4025 = vmatprep.subr.mxu0 0.0
    %4026 = vmatpush1.msra.mxu0 0.0
    %4027 = vmatprep.subr.mxu0 0.0
    %4028 = vmatpush1.msra.mxu0 0.0
    %4029 = vmatprep.subr.mxu0 0.0
    %4030 = vmatpush1.msra.mxu0 0.0
    %4031 = vmatprep.subr.mxu0 0.0
    %4032 = vmatpush1.msra.mxu0 0.0
    %4033 = vmatprep.subr.mxu0 0.0
    %4034 = vmatpush1.msra.mxu0 0.0
    %4035 = vmatprep.subr.mxu0 0.0
    %4036 = vmatpush1.msra.mxu0 0.0
    %4037 = vmatprep.subr.mxu0 0.0
    %4038 = vmatpush1.msra.mxu0 0.0
    %4039 = vmatprep.subr.mxu0 0.0
    %4040 = vmatpush1.msra.mxu0 0.0
    %4041 = vmatprep.subr.mxu0 0.0
    %4042 = vmatpush1.msra.mxu0 0.0
    %4043 = vmatprep.subr.mxu0 0.0
    %4044 = vmatpush1.msra.mxu0 0.0
    %4045 = vmatprep.subr.mxu0 0.0
    %4046 = vmatpush1.msra.mxu0 0.0
    %4047 = vmatprep.subr.mxu0 0.0
    %4048 = vmatpush1.msra.mxu0 0.0
    %4049 = vmatprep.subr.mxu0 0.0
    %4050 = vmatpush1.msra.mxu0 0.0
    %4051 = vmatprep.subr.mxu0 0.0
    %4052 = vmatpush1.msra.mxu0 0.0
    %4053 = vmatprep.subr.mxu0 0.0
    %4054 = vmatpush1.msra.mxu0 0.0
    %4055 = vmatprep.mubr.f32.mxu0 0.0
    %4056 = vmatmul.mubr.f32.gmra.mrb[0].mxu0 %v3983
    %v4057 = vpop.f32.mrb[0].mxu0
    %v4058 = vadd.f32 0.0, %v4057
    %v4059 = vpop.f32.mrb[0].mxu0
    %4060 = vmatprep.mubr.f32.mxu0 0.0
    %4061 = vmatmul.mubr.f32.gmra.mrb[0].mxu0 %v3986
    %v4062 = vpop.f32.mrb[0].mxu0
    %v4063 = vadd.f32 0.0, %v4062
    %v4064 = vpop.f32.mrb[0].mxu0
    %4065 = vdwg.mxu0
    %s4066 = scalar_lea.vmem %s51, 16
    %v4067 = vld [vmem:[%s4066] sm:$0xff]
    %v4068 = vld [vmem:[%s4066 + $0x8] sm:$0x3]
    %v4070 = vsel %vm3981, %v4067, 0
    %v4073 = vsel %vm3981, %v4068, 0
    %4075 = vmatprep.subr.mxu0 0.0
    %4076 = vmatpush1.msra.mxu0 %v3976
    %4077 = vmatprep.subr.mxu0 0.0
    %4078 = vmatpush1.msra.mxu0 %v3989
    %4079 = vmatprep.subr.mxu0 0.0
    %4080 = vmatpush1.msra.mxu0 0.0
    %4081 = vmatprep.subr.mxu0 0.0
    %4082 = vmatpush1.msra.mxu0 0.0
    %4083 = vmatprep.subr.mxu0 0.0
    %4084 = vmatpush1.msra.mxu0 0.0
    %4085 = vmatprep.subr.mxu0 0.0
    %4086 = vmatpush1.msra.mxu0 0.0
    %4087 = vmatprep.subr.mxu0 0.0
    %4088 = vmatpush1.msra.mxu0 0.0
    %4089 = vmatprep.subr.mxu0 0.0
    %4090 = vmatpush1.msra.mxu0 0.0
    %4091 = vmatprep.subr.mxu0 0.0
    %4092 = vmatpush1.msra.mxu0 0.0
    %4093 = vmatprep.subr.mxu0 0.0
    %4094 = vmatpush1.msra.mxu0 0.0
    %4095 = vmatprep.subr.mxu0 0.0
    %4096 = vmatpush1.msra.mxu0 0.0
    %4097 = vmatprep.subr.mxu0 0.0
    %4098 = vmatpush1.msra.mxu0 0.0
    %4099 = vmatprep.subr.mxu0 0.0
    %4100 = vmatpush1.msra.mxu0 0.0
    %4101 = vmatprep.subr.mxu0 0.0
    %4102 = vmatpush1.msra.mxu0 0.0
    %4103 = vmatprep.subr.mxu0 0.0
    %4104 = vmatpush1.msra.mxu0 0.0
    %4105 = vmatprep.subr.mxu0 0.0
    %4106 = vmatpush1.msra.mxu0 0.0
    %4107 = vmatprep.subr.mxu0 0.0
    %4108 = vmatpush1.msra.mxu0 0.0
    %4109 = vmatprep.subr.mxu0 0.0
    %4110 = vmatpush1.msra.mxu0 0.0
    %4111 = vmatprep.subr.mxu0 0.0
    %4112 = vmatpush1.msra.mxu0 0.0
    %4113 = vmatprep.subr.mxu0 0.0
    %4114 = vmatpush1.msra.mxu0 0.0
    %4115 = vmatprep.subr.mxu0 0.0
    %4116 = vmatpush1.msra.mxu0 0.0
    %4117 = vmatprep.subr.mxu0 0.0
    %4118 = vmatpush1.msra.mxu0 0.0
    %4119 = vmatprep.subr.mxu0 0.0
    %4120 = vmatpush1.msra.mxu0 0.0
    %4121 = vmatprep.subr.mxu0 0.0
    %4122 = vmatpush1.msra.mxu0 0.0
    %4123 = vmatprep.subr.mxu0 0.0
    %4124 = vmatpush1.msra.mxu0 0.0
    %4125 = vmatprep.subr.mxu0 0.0
    %4126 = vmatpush1.msra.mxu0 0.0
    %4127 = vmatprep.subr.mxu0 0.0
    %4128 = vmatpush1.msra.mxu0 0.0
    %4129 = vmatprep.subr.mxu0 0.0
    %4130 = vmatpush1.msra.mxu0 0.0
    %4131 = vmatprep.subr.mxu0 0.0
    %4132 = vmatpush1.msra.mxu0 0.0
    %4133 = vmatprep.subr.mxu0 0.0
    %4134 = vmatpush1.msra.mxu0 0.0
    %4135 = vmatprep.subr.mxu0 0.0
    %4136 = vmatpush1.msra.mxu0 0.0
    %4137 = vmatprep.subr.mxu0 0.0
    %4138 = vmatpush1.msra.mxu0 0.0
    %4139 = vmatprep.mubr.f32.mxu0 0.0
    %4140 = vmatmul.mubr.f32.gmra.mrb[0].mxu0 %v4070
    %v4141 = vpop.f32.mrb[0].mxu0
    %v4142 = vadd.f32 0.0, %v4141
    %v4143 = vpop.f32.mrb[0].mxu0
    %4144 = vmatprep.mubr.f32.mxu0 0.0
    %4145 = vmatmul.mubr.f32.gmra.mrb[0].mxu0 %v4073
    %v4146 = vpop.f32.mrb[0].mxu0
    %v4147 = vadd.f32 0.0, %v4146
    %v4148 = vpop.f32.mrb[0].mxu0
    %4149 = vdwg.mxu0
    %s4150 = scalar_lea.vmem %s51, 32
    %v4151 = vld [vmem:[%s4150] sm:$0xff]
    %v4152 = vld [vmem:[%s4150 + $0x8] sm:$0x3]
    %v4154 = vsel %vm3981, %v4151, 0
    %v4157 = vsel %vm3981, %v4152, 0
    %4159 = vmatprep.subr.mxu0 0.0
    %4160 = vmatpush1.msra.mxu0 %v3976
    %4161 = vmatprep.subr.mxu0 0.0
    %4162 = vmatpush1.msra.mxu0 %v3989
    %4163 = vmatprep.subr.mxu0 0.0
    %4164 = vmatpush1.msra.mxu0 0.0
    %4165 = vmatprep.subr.mxu0 0.0
    %4166 = vmatpush1.msra.mxu0 0.0
    %4167 = vmatprep.subr.mxu0 0.0
    %4168 = vmatpush1.msra.mxu0 0.0
    %4169 = vmatprep.subr.mxu0 0.0
    %4170 = vmatpush1.msra.mxu0 0.0
    %4171 = vmatprep.subr.mxu0 0.0
    %4172 = vmatpush1.msra.mxu0 0.0
    %4173 = vmatprep.subr.mxu0 0.0
    %4174 = vmatpush1.msra.mxu0 0.0
    %4175 = vmatprep.subr.mxu0 0.0
    %4176 = vmatpush1.msra.mxu0 0.0
    %4177 = vmatprep.subr.mxu0 0.0
    %4178 = vmatpush1.msra.mxu0 0.0
    %4179 = vmatprep.subr.mxu0 0.0
    %4180 = vmatpush1.msra.mxu0 0.0
    %4181 = vmatprep.subr.mxu0 0.0
    %4182 = vmatpush1.msra.mxu0 0.0
    %4183 = vmatprep.subr.mxu0 0.0
    %4184 = vmatpush1.msra.mxu0 0.0
    %4185 = vmatprep.subr.mxu0 0.0
    %4186 = vmatpush1.msra.mxu0 0.0
    %4187 = vmatprep.subr.mxu0 0.0
    %4188 = vmatpush1.msra.mxu0 0.0
    %4189 = vmatprep.subr.mxu0 0.0
    %4190 = vmatpush1.msra.mxu0 0.0
    %4191 = vmatprep.subr.mxu0 0.0
    %4192 = vmatpush1.msra.mxu0 0.0
    %4193 = vmatprep.subr.mxu0 0.0
    %4194 = vmatpush1.msra.mxu0 0.0
    %4195 = vmatprep.subr.mxu0 0.0
    %4196 = vmatpush1.msra.mxu0 0.0
    %4197 = vmatprep.subr.mxu0 0.0
    %4198 = vmatpush1.msra.mxu0 0.0
    %4199 = vmatprep.subr.mxu0 0.0
    %4200 = vmatpush1.msra.mxu0 0.0
    %4201 = vmatprep.subr.mxu0 0.0
    %4202 = vmatpush1.msra.mxu0 0.0
    %4203 = vmatprep.subr.mxu0 0.0
    %4204 = vmatpush1.msra.mxu0 0.0
    %4205 = vmatprep.subr.mxu0 0.0
    %4206 = vmatpush1.msra.mxu0 0.0
    %4207 = vmatprep.subr.mxu0 0.0
    %4208 = vmatpush1.msra.mxu0 0.0
    %4209 = vmatprep.subr.mxu0 0.0
    %4210 = vmatpush1.msra.mxu0 0.0
    %4211 = vmatprep.subr.mxu0 0.0
    %4212 = vmatpush1.msra.mxu0 0.0
    %4213 = vmatprep.subr.mxu0 0.0
    %4214 = vmatpush1.msra.mxu0 0.0
    %4215 = vmatprep.subr.mxu0 0.0
    %4216 = vmatpush1.msra.mxu0 0.0
    %4217 = vmatprep.subr.mxu0 0.0
    %4218 = vmatpush1.msra.mxu0 0.0
    %4219 = vmatprep.subr.mxu0 0.0
    %4220 = vmatpush1.msra.mxu0 0.0
    %4221 = vmatprep.subr.mxu0 0.0
    %4222 = vmatpush1.msra.mxu0 0.0
    %4223 = vmatprep.mubr.f32.mxu0 0.0
    %4224 = vmatmul.mubr.f32.gmra.mrb[0].mxu0 %v4154
    %v4225 = vpop.f32.mrb[0].mxu0
    %v4226 = vadd.f32 0.0, %v4225
    %v4227 = vpop.f32.mrb[0].mxu0
    %4228 = vmatprep.mubr.f32.mxu0 0.0
    %4229 = vmatmul.mubr.f32.gmra.mrb[0].mxu0 %v4157
    %v4230 = vpop.f32.mrb[0].mxu0
    %v4231 = vadd.f32 0.0, %v4230
    %v4232 = vpop.f32.mrb[0].mxu0
    %4233 = vdwg.mxu0
    %4236 = vrot.lane.b32.xlu0 %v4142, 64
    %v4237 = vpop.permute.xlu0 %4236
    %4238 = vrot.lane.b32.xlu0 %v4147, 64
    %v4239 = vpop.permute.xlu0 %4238
    %v4242 = vsel %vm3037, %v4058, %v4237
    %v4243 = vsel %vm3037, %v4063, %v4239
    %v4244 = vld [vmem:[%s49] sm:$0xff]
    %v4245 = vld [vmem:[%s49 + $0x8] sm:$0xff]
    %v4246 = vld [vmem:[%s49 + $0x10] sm:$0xff]
    %v4247 = vld [vmem:[%s49 + $0x18] sm:$0xff]
    %v4248 = vld [vmem:[%s49 + $0x20] sm:$0xff]
    %v4249 = vld [vmem:[%s49 + $0x28] sm:$0xff]
    %v4250 = vld [vmem:[%s49 + $0x30] sm:$0xff]
    %v4251 = vld [vmem:[%s49 + $0x38] sm:$0xff]
    %v4252 = vld [vmem:[%s49 + $0x40] sm:$0xff]
    %v4253 = vld [vmem:[%s49 + $0x48] sm:$0xff]
    %v4254 = vld [vmem:[%s49 + $0x50] sm:$0xff]
    %v4255 = vld [vmem:[%s49 + $0x58] sm:$0xff]
    %v4256 = vld [vmem:[%s49 + $0x60] sm:$0xff]
    %v4257 = vld [vmem:[%s49 + $0x68] sm:$0xff]
    %v4258 = vld [vmem:[%s49 + $0x70] sm:$0xff]
    %v4259 = vld [vmem:[%s49 + $0x78] sm:$0xff]
    %v4260 = vld [vmem:[%s49 + $0x80] sm:$0xff]
    %v4261 = vld [vmem:[%s49 + $0x88] sm:$0xff]
    %v4262 = vld [vmem:[%s49 + $0x90] sm:$0xff]
    %v4263 = vld [vmem:[%s49 + $0x98] sm:$0xff]
    %v4264 = vld [vmem:[%s49 + $0xa0] sm:$0xff]
    %v4265 = vld [vmem:[%s49 + $0xa8] sm:$0xff]
    %v4266 = vld [vmem:[%s49 + $0xb0] sm:$0xff]
    %v4267 = vld [vmem:[%s49 + $0xb8] sm:$0xff]
    %v4268 = vlaneseq
    %v4269 = vshrl.u32 %v4268, 7
    %v4270 = vsub.s32 0, %v4269
    %v4271 = vrot.slane %v3978, %v4270
    %v4273 = vsel %vm3037, %v4226, 0
    %v4276 = vsel %vm3037, %v4231, 0
    %4278 = vmatprep.subr.mxu0 0.0
    %4279 = vmatpush1.msra.mxu0 %v4244
    %4280 = vmatprep.subr.mxu0 0.0
    %4281 = vmatpush1.msra.mxu0 %v4245
    %4282 = vmatprep.subr.mxu0 0.0
    %4283 = vmatpush1.msra.mxu0 %v4246
    %4284 = vmatprep.subr.mxu0 0.0
    %4285 = vmatpush1.msra.mxu0 %v4247
    %4286 = vmatprep.subr.mxu0 0.0
    %4287 = vmatpush1.msra.mxu0 %v4248
    %4288 = vmatprep.subr.mxu0 0.0
    %4289 = vmatpush1.msra.mxu0 %v4249
    %4290 = vmatprep.subr.mxu0 0.0
    %4291 = vmatpush1.msra.mxu0 %v4250
    %4292 = vmatprep.subr.mxu0 0.0
    %4293 = vmatpush1.msra.mxu0 %v4251
    %4294 = vmatprep.subr.mxu0 0.0
    %4295 = vmatpush1.msra.mxu0 %v4252
    %4296 = vmatprep.subr.mxu0 0.0
    %4297 = vmatpush1.msra.mxu0 %v4253
    %4298 = vmatprep.subr.mxu0 0.0
    %4299 = vmatpush1.msra.mxu0 %v4254
    %4300 = vmatprep.subr.mxu0 0.0
    %4301 = vmatpush1.msra.mxu0 %v4255
    %4302 = vmatprep.subr.mxu0 0.0
    %4303 = vmatpush1.msra.mxu0 %v4256
    %4304 = vmatprep.subr.mxu0 0.0
    %4305 = vmatpush1.msra.mxu0 %v4257
    %4306 = vmatprep.subr.mxu0 0.0
    %4307 = vmatpush1.msra.mxu0 %v4258
    %4308 = vmatprep.subr.mxu0 0.0
    %4309 = vmatpush1.msra.mxu0 %v4259
    %4310 = vmatprep.subr.mxu0 0.0
    %4311 = vmatpush1.msra.mxu0 %v4260
    %4312 = vmatprep.subr.mxu0 0.0
    %4313 = vmatpush1.msra.mxu0 %v4261
    %4314 = vmatprep.subr.mxu0 0.0
    %4315 = vmatpush1.msra.mxu0 %v4262
    %4316 = vmatprep.subr.mxu0 0.0
    %4317 = vmatpush1.msra.mxu0 %v4263
    %4318 = vmatprep.subr.mxu0 0.0
    %4319 = vmatpush1.msra.mxu0 %v4264
    %4320 = vmatprep.subr.mxu0 0.0
    %4321 = vmatpush1.msra.mxu0 %v4265
    %4322 = vmatprep.subr.mxu0 0.0
    %4323 = vmatpush1.msra.mxu0 %v4266
    %4324 = vmatprep.subr.mxu0 0.0
    %4325 = vmatpush1.msra.mxu0 %v4267
    %4326 = vmatprep.subr.mxu0 0.0
    %4327 = vmatpush1.msra.mxu0 0.0
    %4328 = vmatprep.subr.mxu0 0.0
    %4329 = vmatpush1.msra.mxu0 0.0
    %4330 = vmatprep.subr.mxu0 0.0
    %4331 = vmatpush1.msra.mxu0 0.0
    %4332 = vmatprep.subr.mxu0 0.0
    %4333 = vmatpush1.msra.mxu0 0.0
    %4334 = vmatprep.subr.mxu0 0.0
    %4335 = vmatpush1.msra.mxu0 0.0
    %4336 = vmatprep.subr.mxu0 0.0
    %4337 = vmatpush1.msra.mxu0 0.0
    %4338 = vmatprep.subr.mxu0 0.0
    %4339 = vmatpush1.msra.mxu0 0.0
    %4340 = vmatprep.subr.mxu0 0.0
    %4341 = vmatpush1.msra.mxu0 0.0
    %4342 = vmatprep.mubr.f32.mxu0 %v4273
    %4343 = vmatmul.mubr.f32.gmra.mrb[0].mxu0 %v4242
    %v4344 = vpop.f32.mrb[0].mxu0
    %v4345 = vadd.f32 %v4271, %v4344
    %v4346 = vpop.f32.mrb[0].mxu0
    %4347 = vmatprep.mubr.f32.mxu0 %v4276
    %4348 = vmatmul.mubr.f32.gmra.mrb[0].mxu0 %v4243
    %v4349 = vpop.f32.mrb[0].mxu0
    %v4350 = vadd.f32 %v4271, %v4349
    %v4351 = vpop.f32.mrb[0].mxu0
    %4352 = vdwg.mxu0
    %v4353 = vld [vmem:[#allocation2 + $0xd] sm:$0x1]
    %v4354 = vld [vmem:[#allocation2 + $0xe] sm:$0x1]
    %v4355 = vand.u32 2147483647, %v4345
    %v4356 = vand.u32 2147483647, %v4350
    %v4357 = vld [vmem:[%s57] sm:$0x3]
    %v4359 = vsel %vm3981, %v4357, 0
    %v4362 = vsel %vm1333, %v4356, 0
    %4364 = vmatprep.subr.mxu0 0.0
    %4365 = vmatpush1.msra.mxu0 %v4355
    %4366 = vmatprep.subr.mxu0 0.0
    %4367 = vmatpush1.msra.mxu0 %v4362
    %4368 = vmatprep.subr.mxu0 0.0
    %4369 = vmatpush1.msra.mxu0 0.0
    %4370 = vmatprep.subr.mxu0 0.0
    %4371 = vmatpush1.msra.mxu0 0.0
    %4372 = vmatprep.subr.mxu0 0.0
    %4373 = vmatpush1.msra.mxu0 0.0
    %4374 = vmatprep.subr.mxu0 0.0
    %4375 = vmatpush1.msra.mxu0 0.0
    %4376 = vmatprep.subr.mxu0 0.0
    %4377 = vmatpush1.msra.mxu0 0.0
    %4378 = vmatprep.subr.mxu0 0.0
    %4379 = vmatpush1.msra.mxu0 0.0
    %4380 = vmatprep.subr.mxu0 0.0
    %4381 = vmatpush1.msra.mxu0 0.0
    %4382 = vmatprep.subr.mxu0 0.0
    %4383 = vmatpush1.msra.mxu0 0.0
    %4384 = vmatprep.subr.mxu0 0.0
    %4385 = vmatpush1.msra.mxu0 0.0
    %4386 = vmatprep.subr.mxu0 0.0
    %4387 = vmatpush1.msra.mxu0 0.0
    %4388 = vmatprep.subr.mxu0 0.0
    %4389 = vmatpush1.msra.mxu0 0.0
    %4390 = vmatprep.subr.mxu0 0.0
    %4391 = vmatpush1.msra.mxu0 0.0
    %4392 = vmatprep.subr.mxu0 0.0
    %4393 = vmatpush1.msra.mxu0 0.0
    %4394 = vmatprep.subr.mxu0 0.0
    %4395 = vmatpush1.msra.mxu0 0.0
    %4396 = vmatprep.subr.mxu0 0.0
    %4397 = vmatpush1.msra.mxu0 0.0
    %4398 = vmatprep.subr.mxu0 0.0
    %4399 = vmatpush1.msra.mxu0 0.0
    %4400 = vmatprep.subr.mxu0 0.0
    %4401 = vmatpush1.msra.mxu0 0.0
    %4402 = vmatprep.subr.mxu0 0.0
    %4403 = vmatpush1.msra.mxu0 0.0
    %4404 = vmatprep.subr.mxu0 0.0
    %4405 = vmatpush1.msra.mxu0 0.0
    %4406 = vmatprep.subr.mxu0 0.0
    %4407 = vmatpush1.msra.mxu0 0.0
    %4408 = vmatprep.subr.mxu0 0.0
    %4409 = vmatpush1.msra.mxu0 0.0
    %4410 = vmatprep.subr.mxu0 0.0
    %4411 = vmatpush1.msra.mxu0 0.0
    %4412 = vmatprep.subr.mxu0 0.0
    %4413 = vmatpush1.msra.mxu0 0.0
    %4414 = vmatprep.subr.mxu0 0.0
    %4415 = vmatpush1.msra.mxu0 0.0
    %4416 = vmatprep.subr.mxu0 0.0
    %4417 = vmatpush1.msra.mxu0 0.0
    %4418 = vmatprep.subr.mxu0 0.0
    %4419 = vmatpush1.msra.mxu0 0.0
    %4420 = vmatprep.subr.mxu0 0.0
    %4421 = vmatpush1.msra.mxu0 0.0
    %4422 = vmatprep.subr.mxu0 0.0
    %4423 = vmatpush1.msra.mxu0 0.0
    %4424 = vmatprep.subr.mxu0 0.0
    %4425 = vmatpush1.msra.mxu0 0.0
    %4426 = vmatprep.subr.mxu0 0.0
    %4427 = vmatpush1.msra.mxu0 0.0
    %4428 = vmatprep.mubr.f32.mxu0 0.0
    %4429 = vmatmul.mubr.f32.gmra.mrb[0].mxu0 %v4359
    %v4430 = vpop.f32.mrb[0].mxu0
    %v4431 = vadd.f32 0.0, %v4430
    %v4432 = vpop.f32.mrb[0].mxu0
    %4433 = vdwg.mxu0
    %v4434 = vld [vmem:[%s53] sm:$0xff]
    %v4435 = vld [vmem:[%s53 + $0x8] sm:$0xff]
    %v4436 = vld [vmem:[%s53 + $0x10] sm:$0xff]
    %v4437 = vld [vmem:[%s53 + $0x18] sm:$0xff]
    %v4438 = vld [vmem:[%s53 + $0x20] sm:$0xff]
    %v4439 = vld [vmem:[%s53 + $0x28] sm:$0xff]
    %v4440 = vld [vmem:[%s53 + $0x30] sm:$0xff]
    %v4441 = vld [vmem:[%s53 + $0x38] sm:$0xff]
    %v4442 = vlaneseq
    %v4443 = vshrl.u32 %v4442, 7
    %v4444 = vsub.s32 0, %v4443
    %v4445 = vrot.slane %v4353, %v4444
    %v4447 = vsel %vm3037, %v4431, 0
    %4449 = vmatprep.subr.mxu0 0.0
    %4450 = vmatpush1.msra.mxu0 %v4434
    %4451 = vmatprep.subr.mxu0 0.0
    %4452 = vmatpush1.msra.mxu0 %v4435
    %4453 = vmatprep.subr.mxu0 0.0
    %4454 = vmatpush1.msra.mxu0 %v4436
    %4455 = vmatprep.subr.mxu0 0.0
    %4456 = vmatpush1.msra.mxu0 %v4437
    %4457 = vmatprep.subr.mxu0 0.0
    %4458 = vmatpush1.msra.mxu0 %v4438
    %4459 = vmatprep.subr.mxu0 0.0
    %4460 = vmatpush1.msra.mxu0 %v4439
    %4461 = vmatprep.subr.mxu0 0.0
    %4462 = vmatpush1.msra.mxu0 %v4440
    %4463 = vmatprep.subr.mxu0 0.0
    %4464 = vmatpush1.msra.mxu0 %v4441
    %4465 = vmatprep.subr.mxu0 0.0
    %4466 = vmatpush1.msra.mxu0 0.0
    %4467 = vmatprep.subr.mxu0 0.0
    %4468 = vmatpush1.msra.mxu0 0.0
    %4469 = vmatprep.subr.mxu0 0.0
    %4470 = vmatpush1.msra.mxu0 0.0
    %4471 = vmatprep.subr.mxu0 0.0
    %4472 = vmatpush1.msra.mxu0 0.0
    %4473 = vmatprep.subr.mxu0 0.0
    %4474 = vmatpush1.msra.mxu0 0.0
    %4475 = vmatprep.subr.mxu0 0.0
    %4476 = vmatpush1.msra.mxu0 0.0
    %4477 = vmatprep.subr.mxu0 0.0
    %4478 = vmatpush1.msra.mxu0 0.0
    %4479 = vmatprep.subr.mxu0 0.0
    %4480 = vmatpush1.msra.mxu0 0.0
    %4481 = vmatprep.subr.mxu0 0.0
    %4482 = vmatpush1.msra.mxu0 0.0
    %4483 = vmatprep.subr.mxu0 0.0
    %4484 = vmatpush1.msra.mxu0 0.0
    %4485 = vmatprep.subr.mxu0 0.0
    %4486 = vmatpush1.msra.mxu0 0.0
    %4487 = vmatprep.subr.mxu0 0.0
    %4488 = vmatpush1.msra.mxu0 0.0
    %4489 = vmatprep.subr.mxu0 0.0
    %4490 = vmatpush1.msra.mxu0 0.0
    %4491 = vmatprep.subr.mxu0 0.0
    %4492 = vmatpush1.msra.mxu0 0.0
    %4493 = vmatprep.subr.mxu0 0.0
    %4494 = vmatpush1.msra.mxu0 0.0
    %4495 = vmatprep.subr.mxu0 0.0
    %4496 = vmatpush1.msra.mxu0 0.0
    %4497 = vmatprep.subr.mxu0 0.0
    %4498 = vmatpush1.msra.mxu0 0.0
    %4499 = vmatprep.subr.mxu0 0.0
    %4500 = vmatpush1.msra.mxu0 0.0
    %4501 = vmatprep.subr.mxu0 0.0
    %4502 = vmatpush1.msra.mxu0 0.0
    %4503 = vmatprep.subr.mxu0 0.0
    %4504 = vmatpush1.msra.mxu0 0.0
    %4505 = vmatprep.subr.mxu0 0.0
    %4506 = vmatpush1.msra.mxu0 0.0
    %4507 = vmatprep.subr.mxu0 0.0
    %4508 = vmatpush1.msra.mxu0 0.0
    %4509 = vmatprep.subr.mxu0 0.0
    %4510 = vmatpush1.msra.mxu0 0.0
    %4511 = vmatprep.subr.mxu0 0.0
    %4512 = vmatpush1.msra.mxu0 0.0
    %4513 = vmatprep.mubr.f32.mxu0 0.0
    %4514 = vmatmul.mubr.f32.gmra.mrb[0].mxu0 %v4447
    %v4515 = vpop.f32.mrb[0].mxu0
    %v4516 = vadd.f32 %v4445, %v4515
    %v4517 = vpop.f32.mrb[0].mxu0
    %4518 = vdwg.mxu0
    %v4519 = vmax.f32 %v4516, 0.0
    %v4520 = vld [vmem:[%s55] sm:$0xff]
    %v4521 = vld [vmem:[%s55 + $0x8] sm:$0xff]
    %v4522 = vld [vmem:[%s55 + $0x10] sm:$0xff]
    %v4523 = vld [vmem:[%s55 + $0x18] sm:$0xff]
    %v4524 = vld [vmem:[%s55 + $0x20] sm:$0xff]
    %v4525 = vld [vmem:[%s55 + $0x28] sm:$0xff]
    %v4526 = vld [vmem:[%s55 + $0x30] sm:$0xff]
    %v4527 = vld [vmem:[%s55 + $0x38] sm:$0xff]
    %v4528 = vlaneseq
    %v4529 = vshrl.u32 %v4528, 7
    %v4530 = vsub.s32 0, %v4529
    %v4531 = vrot.slane %v4354, %v4530
    %v4533 = vsel %vm3037, %v4519, 0
    %4535 = vmatprep.subr.mxu0 0.0
    %4536 = vmatpush1.msra.mxu0 %v4520
    %4537 = vmatprep.subr.mxu0 0.0
    %4538 = vmatpush1.msra.mxu0 %v4521
    %4539 = vmatprep.subr.mxu0 0.0
    %4540 = vmatpush1.msra.mxu0 %v4522
    %4541 = vmatprep.subr.mxu0 0.0
    %4542 = vmatpush1.msra.mxu0 %v4523
    %4543 = vmatprep.subr.mxu0 0.0
    %4544 = vmatpush1.msra.mxu0 %v4524
    %4545 = vmatprep.subr.mxu0 0.0
    %4546 = vmatpush1.msra.mxu0 %v4525
    %4547 = vmatprep.subr.mxu0 0.0
    %4548 = vmatpush1.msra.mxu0 %v4526
    %4549 = vmatprep.subr.mxu0 0.0
    %4550 = vmatpush1.msra.mxu0 %v4527
    %4551 = vmatprep.subr.mxu0 0.0
    %4552 = vmatpush1.msra.mxu0 0.0
    %4553 = vmatprep.subr.mxu0 0.0
    %4554 = vmatpush1.msra.mxu0 0.0
    %4555 = vmatprep.subr.mxu0 0.0
    %4556 = vmatpush1.msra.mxu0 0.0
    %4557 = vmatprep.subr.mxu0 0.0
    %4558 = vmatpush1.msra.mxu0 0.0
    %4559 = vmatprep.subr.mxu0 0.0
    %4560 = vmatpush1.msra.mxu0 0.0
    %4561 = vmatprep.subr.mxu0 0.0
    %4562 = vmatpush1.msra.mxu0 0.0
    %4563 = vmatprep.subr.mxu0 0.0
    %4564 = vmatpush1.msra.mxu0 0.0
    %4565 = vmatprep.subr.mxu0 0.0
    %4566 = vmatpush1.msra.mxu0 0.0
    %4567 = vmatprep.subr.mxu0 0.0
    %4568 = vmatpush1.msra.mxu0 0.0
    %4569 = vmatprep.subr.mxu0 0.0
    %4570 = vmatpush1.msra.mxu0 0.0
    %4571 = vmatprep.subr.mxu0 0.0
    %4572 = vmatpush1.msra.mxu0 0.0
    %4573 = vmatprep.subr.mxu0 0.0
    %4574 = vmatpush1.msra.mxu0 0.0
    %4575 = vmatprep.subr.mxu0 0.0
    %4576 = vmatpush1.msra.mxu0 0.0
    %4577 = vmatprep.subr.mxu0 0.0
    %4578 = vmatpush1.msra.mxu0 0.0
    %4579 = vmatprep.subr.mxu0 0.0
    %4580 = vmatpush1.msra.mxu0 0.0
    %4581 = vmatprep.subr.mxu0 0.0
    %4582 = vmatpush1.msra.mxu0 0.0
    %4583 = vmatprep.subr.mxu0 0.0
    %4584 = vmatpush1.msra.mxu0 0.0
    %4585 = vmatprep.subr.mxu0 0.0
    %4586 = vmatpush1.msra.mxu0 0.0
    %4587 = vmatprep.subr.mxu0 0.0
    %4588 = vmatpush1.msra.mxu0 0.0
    %4589 = vmatprep.subr.mxu0 0.0
    %4590 = vmatpush1.msra.mxu0 0.0
    %4591 = vmatprep.subr.mxu0 0.0
    %4592 = vmatpush1.msra.mxu0 0.0
    %4593 = vmatprep.subr.mxu0 0.0
    %4594 = vmatpush1.msra.mxu0 0.0
    %4595 = vmatprep.subr.mxu0 0.0
    %4596 = vmatpush1.msra.mxu0 0.0
    %4597 = vmatprep.subr.mxu0 0.0
    %4598 = vmatpush1.msra.mxu0 0.0
    %4599 = vmatprep.mubr.f32.mxu0 0.0
    %4600 = vmatmul.mubr.f32.gmra.mrb[0].mxu0 %v4533
    %v4601 = vpop.f32.mrb[0].mxu0
    %v4602 = vadd.f32 %v4531, %v4601
    %v4603 = vpop.f32.mrb[0].mxu0
    %4604 = vdwg.mxu0
    %v4605 = vsub.f32 0.0, %v4602
    %v4606 = vmul.f32 %v4605, 1.442695
    %v4607 = vpow.pop %v4606
    %v4608 = vadd.f32 %v4607, 1.0
    %v4609 = vrcp.pop %v4608
    %v4610 = vld [vmem:[%s59] sm:$0xff]
    %v4611 = vld [vmem:[%s59 + $0x8] sm:$0x3]
    %v4612 = vmul.f32 %v4431, %v4609
    %v4614 = vsel %vm634, %v4610, 0
    %v4617 = vsel %vm634, %v4611, 0
    %v4620 = vsel %vm1333, %v4612, 0
    %4622 = vmatprep.subr.mxu0 0.0
    %4623 = vmatpush1.msra.mxu0 %v4620
    %4624 = vmatprep.subr.mxu0 0.0
    %4625 = vmatpush1.msra.mxu0 0.0
    %4626 = vmatprep.subr.mxu0 0.0
    %4627 = vmatpush1.msra.mxu0 0.0
    %4628 = vmatprep.subr.mxu0 0.0
    %4629 = vmatpush1.msra.mxu0 0.0
    %4630 = vmatprep.subr.mxu0 0.0
    %4631 = vmatpush1.msra.mxu0 0.0
    %4632 = vmatprep.subr.mxu0 0.0
    %4633 = vmatpush1.msra.mxu0 0.0
    %4634 = vmatprep.subr.mxu0 0.0
    %4635 = vmatpush1.msra.mxu0 0.0
    %4636 = vmatprep.subr.mxu0 0.0
    %4637 = vmatpush1.msra.mxu0 0.0
    %4638 = vmatprep.subr.mxu0 0.0
    %4639 = vmatpush1.msra.mxu0 0.0
    %4640 = vmatprep.subr.mxu0 0.0
    %4641 = vmatpush1.msra.mxu0 0.0
    %4642 = vmatprep.subr.mxu0 0.0
    %4643 = vmatpush1.msra.mxu0 0.0
    %4644 = vmatprep.subr.mxu0 0.0
    %4645 = vmatpush1.msra.mxu0 0.0
    %4646 = vmatprep.subr.mxu0 0.0
    %4647 = vmatpush1.msra.mxu0 0.0
    %4648 = vmatprep.subr.mxu0 0.0
    %4649 = vmatpush1.msra.mxu0 0.0
    %4650 = vmatprep.subr.mxu0 0.0
    %4651 = vmatpush1.msra.mxu0 0.0
    %4652 = vmatprep.subr.mxu0 0.0
    %4653 = vmatpush1.msra.mxu0 0.0
    %4654 = vmatprep.subr.mxu0 0.0
    %4655 = vmatpush1.msra.mxu0 0.0
    %4656 = vmatprep.subr.mxu0 0.0
    %4657 = vmatpush1.msra.mxu0 0.0
    %4658 = vmatprep.subr.mxu0 0.0
    %4659 = vmatpush1.msra.mxu0 0.0
    %4660 = vmatprep.subr.mxu0 0.0
    %4661 = vmatpush1.msra.mxu0 0.0
    %4662 = vmatprep.subr.mxu0 0.0
    %4663 = vmatpush1.msra.mxu0 0.0
    %4664 = vmatprep.subr.mxu0 0.0
    %4665 = vmatpush1.msra.mxu0 0.0
    %4666 = vmatprep.subr.mxu0 0.0
    %4667 = vmatpush1.msra.mxu0 0.0
    %4668 = vmatprep.subr.mxu0 0.0
    %4669 = vmatpush1.msra.mxu0 0.0
    %4670 = vmatprep.subr.mxu0 0.0
    %4671 = vmatpush1.msra.mxu0 0.0
    %4672 = vmatprep.subr.mxu0 0.0
    %4673 = vmatpush1.msra.mxu0 0.0
    %4674 = vmatprep.subr.mxu0 0.0
    %4675 = vmatpush1.msra.mxu0 0.0
    %4676 = vmatprep.subr.mxu0 0.0
    %4677 = vmatpush1.msra.mxu0 0.0
    %4678 = vmatprep.subr.mxu0 0.0
    %4679 = vmatpush1.msra.mxu0 0.0
    %4680 = vmatprep.subr.mxu0 0.0
    %4681 = vmatpush1.msra.mxu0 0.0
    %4682 = vmatprep.subr.mxu0 0.0
    %4683 = vmatpush1.msra.mxu0 0.0
    %4684 = vmatprep.subr.mxu0 0.0
    %4685 = vmatpush1.msra.mxu0 0.0
    %4686 = vmatprep.mubr.f32.mxu0 0.0
    %4687 = vmatmul.mubr.f32.gmra.mrb[0].mxu0 %v4614
    %v4688 = vpop.f32.mrb[0].mxu0
    %v4689 = vadd.f32 0.0, %v4688
    %v4690 = vpop.f32.mrb[0].mxu0
    %4691 = vmatprep.mubr.f32.mxu0 0.0
    %4692 = vmatmul.mubr.f32.gmra.mrb[0].mxu0 %v4617
    %v4693 = vpop.f32.mrb[0].mxu0
    %v4694 = vadd.f32 0.0, %v4693
    %v4695 = vpop.f32.mrb[0].mxu0
    %4696 = vdwg.mxu0
    %v4697 = vsub.f32 0.0, %v4689
    %v4698 = vsub.f32 0.0, %v4694
    %v4699 = vmax.f32 %v4697, %v4345
    %v4700 = vmax.f32 %v4698, %v4350
    %v4701 = vmin.f32 %v4689, %v4699
    %v4702 = vmin.f32 %v4694, %v4700
    %v4703 = vsub.f32 %v4345, %v4701
    %v4704 = vsub.f32 %v4350, %v4702
    %v4705 = vld [vmem:[%s61] sm:$0xff]
    %v4706 = vld [vmem:[%s61 + $0x8] sm:$0xff]
    %v4707 = vld [vmem:[%s61 + $0x10] sm:$0xff]
    %v4708 = vld [vmem:[%s61 + $0x18] sm:$0xff]
    %v4709 = vld [vmem:[#allocation2 + $0xf] sm:$0x1]
    %v4710 = vlaneseq
    %v4711 = vshrl.u32 %v4710, 7
    %v4712 = vsub.s32 0, %v4711
    %v4713 = vrot.slane %v4709, %v4712
    %v4714 = vsel %vm1184, %v3767, 0
    %v4716 = vsel %vm1184, %v3772, 0
    %4718 = vmatprep.subr.mxu0 0.0
    %4719 = vmatpush1.msra.mxu0 %v4705
    %4720 = vmatprep.subr.mxu0 0.0
    %4721 = vmatpush1.msra.mxu0 %v4706
    %4722 = vmatprep.subr.mxu0 0.0
    %4723 = vmatpush1.msra.mxu0 %v4707
    %4724 = vmatprep.subr.mxu0 0.0
    %4725 = vmatpush1.msra.mxu0 %v4708
    %4726 = vmatprep.subr.mxu0 0.0
    %4727 = vmatpush1.msra.mxu0 0.0
    %4728 = vmatprep.subr.mxu0 0.0
    %4729 = vmatpush1.msra.mxu0 0.0
    %4730 = vmatprep.subr.mxu0 0.0
    %4731 = vmatpush1.msra.mxu0 0.0
    %4732 = vmatprep.subr.mxu0 0.0
    %4733 = vmatpush1.msra.mxu0 0.0
    %4734 = vmatprep.subr.mxu0 0.0
    %4735 = vmatpush1.msra.mxu0 0.0
    %4736 = vmatprep.subr.mxu0 0.0
    %4737 = vmatpush1.msra.mxu0 0.0
    %4738 = vmatprep.subr.mxu0 0.0
    %4739 = vmatpush1.msra.mxu0 0.0
    %4740 = vmatprep.subr.mxu0 0.0
    %4741 = vmatpush1.msra.mxu0 0.0
    %4742 = vmatprep.subr.mxu0 0.0
    %4743 = vmatpush1.msra.mxu0 0.0
    %4744 = vmatprep.subr.mxu0 0.0
    %4745 = vmatpush1.msra.mxu0 0.0
    %4746 = vmatprep.subr.mxu0 0.0
    %4747 = vmatpush1.msra.mxu0 0.0
    %4748 = vmatprep.subr.mxu0 0.0
    %4749 = vmatpush1.msra.mxu0 0.0
    %4750 = vmatprep.subr.mxu0 0.0
    %4751 = vmatpush1.msra.mxu0 0.0
    %4752 = vmatprep.subr.mxu0 0.0
    %4753 = vmatpush1.msra.mxu0 0.0
    %4754 = vmatprep.subr.mxu0 0.0
    %4755 = vmatpush1.msra.mxu0 0.0
    %4756 = vmatprep.subr.mxu0 0.0
    %4757 = vmatpush1.msra.mxu0 0.0
    %4758 = vmatprep.subr.mxu0 0.0
    %4759 = vmatpush1.msra.mxu0 0.0
    %4760 = vmatprep.subr.mxu0 0.0
    %4761 = vmatpush1.msra.mxu0 0.0
    %4762 = vmatprep.subr.mxu0 0.0
    %4763 = vmatpush1.msra.mxu0 0.0
    %4764 = vmatprep.subr.mxu0 0.0
    %4765 = vmatpush1.msra.mxu0 0.0
    %4766 = vmatprep.subr.mxu0 0.0
    %4767 = vmatpush1.msra.mxu0 0.0
    %4768 = vmatprep.subr.mxu0 0.0
    %4769 = vmatpush1.msra.mxu0 0.0
    %4770 = vmatprep.subr.mxu0 0.0
    %4771 = vmatpush1.msra.mxu0 0.0
    %4772 = vmatprep.subr.mxu0 0.0
    %4773 = vmatpush1.msra.mxu0 0.0
    %4774 = vmatprep.subr.mxu0 0.0
    %4775 = vmatpush1.msra.mxu0 0.0
    %4776 = vmatprep.subr.mxu0 0.0
    %4777 = vmatpush1.msra.mxu0 0.0
    %4778 = vmatprep.subr.mxu0 0.0
    %4779 = vmatpush1.msra.mxu0 0.0
    %4780 = vmatprep.subr.mxu0 0.0
    %4781 = vmatpush1.msra.mxu0 0.0
    %4782 = vmatprep.mubr.f32.mxu0 0.0
    %4783 = vmatmul.mubr.f32.gmra.mrb[0].mxu0 %v4714
    %v4784 = vpop.f32.mrb[0].mxu0
    %v4785 = vadd.f32 %v4713, %v4784
    %v4786 = vpop.f32.mrb[0].mxu0
    %4787 = vmatprep.mubr.f32.mxu0 0.0
    %4788 = vmatmul.mubr.f32.gmra.mrb[0].mxu0 %v4716
    %v4789 = vpop.f32.mrb[0].mxu0
    %v4790 = vadd.f32 %v4713, %v4789
    %v4791 = vpop.f32.mrb[0].mxu0
    %4792 = vdwg.mxu0
    %v4793 = vadd.f32 %v4703, %v4785
    %v4794 = vadd.f32 %v4704, %v4790
    %v4795 = vmax.f32 %v4793, 0.0
    %v4796 = vmax.f32 %v4794, 0.0
    %v4798 = vsel %vm1333, %v4796, 0
    %4800 = vmatprep.subr.mxu0 0.0
    %4801 = vmatpush1.msra.mxu0 %v4795
    %4802 = vmatprep.subr.mxu0 0.0
    %4803 = vmatpush1.msra.mxu0 %v4798
    %4804 = vmatprep.subr.mxu0 0.0
    %4805 = vmatpush1.msra.mxu0 0.0
    %4806 = vmatprep.subr.mxu0 0.0
    %4807 = vmatpush1.msra.mxu0 0.0
    %4808 = vmatprep.subr.mxu0 0.0
    %4809 = vmatpush1.msra.mxu0 0.0
    %4810 = vmatprep.subr.mxu0 0.0
    %4811 = vmatpush1.msra.mxu0 0.0
    %4812 = vmatprep.subr.mxu0 0.0
    %4813 = vmatpush1.msra.mxu0 0.0
    %4814 = vmatprep.subr.mxu0 0.0
    %4815 = vmatpush1.msra.mxu0 0.0
    %4816 = vmatprep.subr.mxu0 0.0
    %4817 = vmatpush1.msra.mxu0 0.0
    %4818 = vmatprep.subr.mxu0 0.0
    %4819 = vmatpush1.msra.mxu0 0.0
    %4820 = vmatprep.subr.mxu0 0.0
    %4821 = vmatpush1.msra.mxu0 0.0
    %4822 = vmatprep.subr.mxu0 0.0
    %4823 = vmatpush1.msra.mxu0 0.0
    %4824 = vmatprep.subr.mxu0 0.0
    %4825 = vmatpush1.msra.mxu0 0.0
    %4826 = vmatprep.subr.mxu0 0.0
    %4827 = vmatpush1.msra.mxu0 0.0
    %4828 = vmatprep.subr.mxu0 0.0
    %4829 = vmatpush1.msra.mxu0 0.0
    %4830 = vmatprep.subr.mxu0 0.0
    %4831 = vmatpush1.msra.mxu0 0.0
    %4832 = vmatprep.subr.mxu0 0.0
    %4833 = vmatpush1.msra.mxu0 0.0
    %4834 = vmatprep.subr.mxu0 0.0
    %4835 = vmatpush1.msra.mxu0 0.0
    %4836 = vmatprep.subr.mxu0 0.0
    %4837 = vmatpush1.msra.mxu0 0.0
    %4838 = vmatprep.subr.mxu0 0.0
    %4839 = vmatpush1.msra.mxu0 0.0
    %4840 = vmatprep.subr.mxu0 0.0
    %4841 = vmatpush1.msra.mxu0 0.0
    %4842 = vmatprep.subr.mxu0 0.0
    %4843 = vmatpush1.msra.mxu0 0.0
    %4844 = vmatprep.subr.mxu0 0.0
    %4845 = vmatpush1.msra.mxu0 0.0
    %4846 = vmatprep.subr.mxu0 0.0
    %4847 = vmatpush1.msra.mxu0 0.0
    %4848 = vmatprep.subr.mxu0 0.0
    %4849 = vmatpush1.msra.mxu0 0.0
    %4850 = vmatprep.subr.mxu0 0.0
    %4851 = vmatpush1.msra.mxu0 0.0
    %4852 = vmatprep.subr.mxu0 0.0
    %4853 = vmatpush1.msra.mxu0 0.0
    %4854 = vmatprep.subr.mxu0 0.0
    %4855 = vmatpush1.msra.mxu0 0.0
    %4856 = vmatprep.subr.mxu0 0.0
    %4857 = vmatpush1.msra.mxu0 0.0
    %4858 = vmatprep.subr.mxu0 0.0
    %4859 = vmatpush1.msra.mxu0 0.0
    %4860 = vmatprep.subr.mxu0 0.0
    %4861 = vmatpush1.msra.mxu0 0.0
    %4862 = vmatprep.subr.mxu0 0.0
    %4863 = vmatpush1.msra.mxu0 0.0
    %4864 = vmatprep.mubr.f32.mxu0 0.0
    %4865 = vmatmul.mubr.f32.gmra.mrb[0].mxu0 %v4359
    %v4866 = vpop.f32.mrb[0].mxu0
    %v4867 = vadd.f32 0.0, %v4866
    %v4868 = vpop.f32.mrb[0].mxu0
    %4869 = vdwg.mxu0
    %v4870 = vld [vmem:[%s63] sm:$0xff]
    %v4871 = vld [vmem:[%s63 + $0x8] sm:$0xff]
    %v4872 = vld [vmem:[%s63 + $0x10] sm:$0xff]
    %v4873 = vld [vmem:[%s63 + $0x18] sm:$0xff]
    %v4874 = vld [vmem:[%s63 + $0x20] sm:$0xff]
    %v4875 = vld [vmem:[%s63 + $0x28] sm:$0xff]
    %v4876 = vld [vmem:[%s63 + $0x30] sm:$0xff]
    %v4877 = vld [vmem:[%s63 + $0x38] sm:$0xff]
    %v4878 = vld [vmem:[#allocation2 + $0x10] sm:$0x1]
    %v4879 = vlaneseq
    %v4880 = vshrl.u32 %v4879, 7
    %v4881 = vsub.s32 0, %v4880
    %v4882 = vrot.slane %v4878, %v4881
    %v4884 = vsel %vm3037, %v4867, 0
    %4886 = vmatprep.subr.mxu0 0.0
    %4887 = vmatpush1.msra.mxu0 %v4870
    %4888 = vmatprep.subr.mxu0 0.0
    %4889 = vmatpush1.msra.mxu0 %v4871
    %4890 = vmatprep.subr.mxu0 0.0
    %4891 = vmatpush1.msra.mxu0 %v4872
    %4892 = vmatprep.subr.mxu0 0.0
    %4893 = vmatpush1.msra.mxu0 %v4873
    %4894 = vmatprep.subr.mxu0 0.0
    %4895 = vmatpush1.msra.mxu0 %v4874
    %4896 = vmatprep.subr.mxu0 0.0
    %4897 = vmatpush1.msra.mxu0 %v4875
    %4898 = vmatprep.subr.mxu0 0.0
    %4899 = vmatpush1.msra.mxu0 %v4876
    %4900 = vmatprep.subr.mxu0 0.0
    %4901 = vmatpush1.msra.mxu0 %v4877
    %4902 = vmatprep.subr.mxu0 0.0
    %4903 = vmatpush1.msra.mxu0 0.0
    %4904 = vmatprep.subr.mxu0 0.0
    %4905 = vmatpush1.msra.mxu0 0.0
    %4906 = vmatprep.subr.mxu0 0.0
    %4907 = vmatpush1.msra.mxu0 0.0
    %4908 = vmatprep.subr.mxu0 0.0
    %4909 = vmatpush1.msra.mxu0 0.0
    %4910 = vmatprep.subr.mxu0 0.0
    %4911 = vmatpush1.msra.mxu0 0.0
    %4912 = vmatprep.subr.mxu0 0.0
    %4913 = vmatpush1.msra.mxu0 0.0
    %4914 = vmatprep.subr.mxu0 0.0
    %4915 = vmatpush1.msra.mxu0 0.0
    %4916 = vmatprep.subr.mxu0 0.0
    %4917 = vmatpush1.msra.mxu0 0.0
    %4918 = vmatprep.subr.mxu0 0.0
    %4919 = vmatpush1.msra.mxu0 0.0
    %4920 = vmatprep.subr.mxu0 0.0
    %4921 = vmatpush1.msra.mxu0 0.0
    %4922 = vmatprep.subr.mxu0 0.0
    %4923 = vmatpush1.msra.mxu0 0.0
    %4924 = vmatprep.subr.mxu0 0.0
    %4925 = vmatpush1.msra.mxu0 0.0
    %4926 = vmatprep.subr.mxu0 0.0
    %4927 = vmatpush1.msra.mxu0 0.0
    %4928 = vmatprep.subr.mxu0 0.0
    %4929 = vmatpush1.msra.mxu0 0.0
    %4930 = vmatprep.subr.mxu0 0.0
    %4931 = vmatpush1.msra.mxu0 0.0
    %4932 = vmatprep.subr.mxu0 0.0
    %4933 = vmatpush1.msra.mxu0 0.0
    %4934 = vmatprep.subr.mxu0 0.0
    %4935 = vmatpush1.msra.mxu0 0.0
    %4936 = vmatprep.subr.mxu0 0.0
    %4937 = vmatpush1.msra.mxu0 0.0
    %4938 = vmatprep.subr.mxu0 0.0
    %4939 = vmatpush1.msra.mxu0 0.0
    %4940 = vmatprep.subr.mxu0 0.0
    %4941 = vmatpush1.msra.mxu0 0.0
    %4942 = vmatprep.subr.mxu0 0.0
    %4943 = vmatpush1.msra.mxu0 0.0
    %4944 = vmatprep.subr.mxu0 0.0
    %4945 = vmatpush1.msra.mxu0 0.0
    %4946 = vmatprep.subr.mxu0 0.0
    %4947 = vmatpush1.msra.mxu0 0.0
    %4948 = vmatprep.subr.mxu0 0.0
    %4949 = vmatpush1.msra.mxu0 0.0
    %4950 = vmatprep.mubr.f32.mxu0 0.0
    %4951 = vmatmul.mubr.f32.gmra.mrb[0].mxu0 %v4884
    %v4952 = vpop.f32.mrb[0].mxu0
    %v4953 = vadd.f32 %v4882, %v4952
    %v4954 = vpop.f32.mrb[0].mxu0
    %4955 = vdwg.mxu0
    %4956 = vst [vmem:[#allocation8] sm:$0x3] %v4953
    // Predicated region
    $region142: #{tpu_custom_call.1} parent=1 // pred_check
      _
    $region143: #{tpu_custom_call.1} parent=1 // pred_check_branch
      %4958 = sbr.rel (0) target = $region145
    $region144: #{tpu_custom_call.1} parent=1 // pred_region
      %s4960 = ssub.s32 32, 32
      %4961 = vsyncadd [#allocation4], %s4960
      %s4963 = sshll.u32 [#allocation8], 4
      %s4964 = int_to_ptr.vmem [resolvable:$true] %s4963
      %4966 = dma.vmem_to_hbm [thread:$0]  %s4964, 32, %s65, [#allocation4]
    $region145: #{tpu_custom_call.1} parent=1 // pred_fallthru
      _
    // Predicated region
    $region146: #{tpu_custom_call.1} parent=1 // pred_check
      _
    $region147: #{tpu_custom_call.1} parent=1 // pred_check_branch
      %4968 = sbr.rel (0) target = $region149
    $region148: #{tpu_custom_call.1} parent=1 // pred_region
      %4969 = dma.done [#allocation4], 32
    $region149: #{tpu_custom_call.1} parent=1 // pred_fallthru
      _
    %4970 = vsyncpa [#allocation3], 1
    %4971 = vsyncpa [#allocation6], 1
    %4972 = vsyncpa [#allocation4], 1

</llo_original>
